<compile_context>
chip_gen: v5e
topology: v5e:2x2
jax: 0.10.0
libtpu: 0.0.40
codegen_flags: <defaults>
</compile_context>

<pallas_src>
import jax
import jax.numpy as jnp
from jax.experimental import pallas as pl
from jax.experimental.pallas import tpu as pltpu


def fire_kernel(x_ref, wsq_ref, bsq_ref, we1_ref, be1_ref, we3_ref, be3_ref,
                o_ref, pad_ref):
    Bb, H, W, Cin = x_ref.shape
    Csq = wsq_ref.shape[1]
    Ce1 = we1_ref.shape[1]
    Ce3 = we3_ref.shape[1]
    Hp, Wp = H + 2, W + 2
    M = Bb * H * W

    x = x_ref[...].reshape(M, Cin)                                    # (M, Cin)

    # squeeze: 1x1 conv + ReLU — one matmul over all Bb*H*W pixels.
    s = jnp.dot(x, wsq_ref[...], preferred_element_type=jnp.float32) + bsq_ref[...]
    s = jnp.maximum(s, 0.0)                                           # (M, Csq)

    # expand1x1: 1x1 conv + ReLU — store directly into the first Ce1 channels.
    o1 = jnp.dot(s, we1_ref[...], preferred_element_type=jnp.float32) + be1_ref[...]
    o1 = jnp.maximum(o1, 0.0)
    o_ref[:, :, :, 0:Ce1] = o1.reshape(Bb, H, W, Ce1).astype(o_ref.dtype)

    # expand3x3 (padding=1): zero only the 1-px border of the padded scratch
    # (interior is fully overwritten), then fuse all 9 taps along K and issue
    # a single matmul with K = 9*Csq.
    pad_ref[:, 0:1, :, :] = jnp.zeros((Bb, 1, Wp, Csq), jnp.float32)
    pad_ref[:, Hp - 1:Hp, :, :] = jnp.zeros((Bb, 1, Wp, Csq), jnp.float32)
    pad_ref[:, 1:H + 1, 0:1, :] = jnp.zeros((Bb, H, 1, Csq), jnp.float32)
    pad_ref[:, 1:H + 1, Wp - 1:Wp, :] = jnp.zeros((Bb, H, 1, Csq), jnp.float32)
    pad_ref[:, 1:H + 1, 1:W + 1, :] = s.reshape(Bb, H, W, Csq)

    patches = jnp.concatenate(
        [pad_ref[:, ky:ky + H, kx:kx + W, :]
         for ky in range(3) for kx in range(3)], axis=-1)             # (Bb,H,W,9*Csq)
    o3 = jnp.dot(patches.reshape(M, 9 * Csq), we3_ref[...],
                 preferred_element_type=jnp.float32) + be3_ref[...]
    o3 = jnp.maximum(o3, 0.0)
    o_ref[:, :, :, Ce1:Ce1 + Ce3] = o3.reshape(Bb, H, W, Ce3).astype(o_ref.dtype)


def _pick_batch_block(N, H, W, Cin, Csq, Ce1, Ce3, budget_bytes=20 << 20):
    """Largest divisor of N whose per-step VMEM footprint fits the budget."""
    def vmem_bytes(b):
        f = 4
        hw = H * W
        io = 2 * b * hw * Cin * f + 2 * b * hw * (Ce1 + Ce3) * f      # dbl-buffered blocks
        wts = 2 * (Cin * Csq + Csq + Csq * Ce1 + Ce1 + 9 * Csq * Ce3 + Ce3) * f
        scratch = b * (H + 2) * (W + 2) * Csq * f
        interm = b * hw * (11 * Csq + Ce1 + Ce3) * f                  # s, patches, o1, o3
        return io + wts + scratch + interm

    best = 1
    for b in range(1, N + 1):
        if N % b == 0 and vmem_bytes(b) <= budget_bytes:
            best = b
    return best, vmem_bytes(best)


def fire_forward_nhwc(x_nhwc, params):
    """Core Pallas Fire forward in NHWC: (N, H, W, Cin) -> (N, H, W, Ce1+Ce3)."""
    wsq, bsq, we1, be1, we3, be3 = params
    N, H, W, Cin = x_nhwc.shape
    Csq, Ce1, Ce3 = wsq.shape[1], we1.shape[1], we3.shape[2]
    Cout = Ce1 + Ce3

    # Flatten 3x3 weight so taps are contiguous along the contraction axis:
    # row k of we3_flat = tap (k // Csq), input channel (k % Csq).
    we3_flat = we3.reshape(9 * Csq, Ce3)

    Bb, est = _pick_batch_block(N, H, W, Cin, Csq, Ce1, Ce3)
    # v7x physical VMEM is 64 MiB (half of v5e/v6e) — cap there, keep headroom.
    vmem_limit = int(min(max(2 * est, 32 << 20), 64 << 20))

    return pl.pallas_call(
        fire_kernel,
        out_shape=jax.ShapeDtypeStruct((N, H, W, Cout), x_nhwc.dtype),
        grid_spec=pltpu.PrefetchScalarGridSpec(
            num_scalar_prefetch=0,
            grid=(N // Bb,),
            in_specs=[
                pl.BlockSpec((Bb, H, W, Cin), lambda n: (n, 0, 0, 0)),
                pl.BlockSpec((Cin, Csq), lambda n: (0, 0)),
                pl.BlockSpec((1, Csq), lambda n: (0, 0)),
                pl.BlockSpec((Csq, Ce1), lambda n: (0, 0)),
                pl.BlockSpec((1, Ce1), lambda n: (0, 0)),
                pl.BlockSpec((9 * Csq, Ce3), lambda n: (0, 0)),
                pl.BlockSpec((1, Ce3), lambda n: (0, 0)),
            ],
            out_specs=pl.BlockSpec((Bb, H, W, Cout), lambda n: (n, 0, 0, 0)),
            scratch_shapes=[pltpu.VMEM((Bb, H + 2, W + 2, Csq), jnp.float32)],
        ),
        compiler_params=pltpu.CompilerParams(
            dimension_semantics=("parallel",),     # batch iters independent: use both v7x TCs
            vmem_limit_bytes=vmem_limit),
    )(x_nhwc, wsq, bsq, we1, be1, we3_flat, be3)


def fire_forward(x_nchw, params):
    """PyTorch-layout Fire forward: (N, Cin, H, W) -> (N, Ce1+Ce3, H, W)."""
    # TODO(synk): when stacking Fire modules, stay NHWC end-to-end (call
    # fire_forward_nhwc directly) to avoid these HBM round-trip transposes.
    x = jnp.transpose(x_nchw, (0, 2, 3, 1))
    out = fire_forward_nhwc(x, params)
    return jnp.transpose(out, (0, 3, 1, 2))


def fire_ref(x_nchw, params):
    """Pure-JAX reference (lax.conv) for correctness check."""
    wsq, bsq, we1, be1, we3, be3 = params
    x = jnp.transpose(x_nchw, (0, 2, 3, 1))
    dn = ('NHWC', 'HWIO', 'NHWC')
    s = jax.lax.conv_general_dilated(
        x, wsq.reshape(1, 1, *wsq.shape), (1, 1), 'VALID',
        dimension_numbers=dn) + bsq.reshape(1, 1, 1, -1)
    s = jnp.maximum(s, 0.0)
    o1 = jax.lax.conv_general_dilated(
        s, we1.reshape(1, 1, *we1.shape), (1, 1), 'VALID',
        dimension_numbers=dn) + be1.reshape(1, 1, 1, -1)
    o1 = jnp.maximum(o1, 0.0)
    k3 = we3.reshape(3, 3, we3.shape[1], we3.shape[2])
    o3 = jax.lax.conv_general_dilated(
        s, k3, (1, 1), 'SAME', dimension_numbers=dn) + be3.reshape(1, 1, 1, -1)
    o3 = jnp.maximum(o3, 0.0)
    return jnp.transpose(jnp.concatenate([o1, o3], axis=-1), (0, 3, 1, 2))


def init_params(key, inplanes, squeeze_planes, e1_planes, e3_planes):
    ks = jax.random.split(key, 6)
    f = 0.1
    wsq = f * jax.random.normal(ks[0], (inplanes, squeeze_planes), jnp.float32)
    bsq = f * jax.random.normal(ks[1], (1, squeeze_planes), jnp.float32)
    we1 = f * jax.random.normal(ks[2], (squeeze_planes, e1_planes), jnp.float32)
    be1 = f * jax.random.normal(ks[3], (1, e1_planes), jnp.float32)
    # we3[ky*3+kx, cin, cout] == torch_weight[cout, cin, ky, kx]
    we3 = f * jax.random.normal(ks[4], (9, squeeze_planes, e3_planes), jnp.float32)
    be3 = f * jax.random.normal(ks[5], (1, e3_planes), jnp.float32)
    return (wsq, bsq, we1, be1, we3, be3)


if __name__ == "__main__":
    key = jax.random.PRNGKey(0)
    kx, kp = jax.random.split(key)

    N, Cin, H, W = 2, 8, 16, 16
    squeeze_planes, e1_planes, e3_planes = 4, 8, 8

    x = jax.random.normal(kx, (N, Cin, H, W), jnp.float32)
    params = init_params(kp, Cin, squeeze_planes, e1_planes, e3_planes)

    out = fire_forward(x, params)
    out = jax.block_until_ready(out)

    ref = fire_ref(x, params)
    assert out.shape == (N, e1_planes + e3_planes, H, W)
    assert jnp.allclose(out, ref, atol=1e-4, rtol=1e-4), "mismatch vs reference"

    print("KERNEL_OK")
</pallas_src>

<mosaic_0001>
module attributes {stable_mosaic.version = 11 : i64} {
  func.func @fire_kernel(%arg0: i32, %arg1: memref<2x16x16x8xf32, #tpu.memory_space<vmem>>, %arg2: memref<8x4xf32, #tpu.memory_space<vmem>>, %arg3: memref<1x4xf32, #tpu.memory_space<vmem>>, %arg4: memref<4x8xf32, #tpu.memory_space<vmem>>, %arg5: memref<1x8xf32, #tpu.memory_space<vmem>>, %arg6: memref<36x8xf32, #tpu.memory_space<vmem>>, %arg7: memref<1x8xf32, #tpu.memory_space<vmem>>, %arg8: memref<2x16x16x16xf32, #tpu.memory_space<vmem>>, %arg9: memref<2x18x18x4xf32, #tpu.memory_space<vmem>>) attributes {dimension_semantics = [#tpu.dimension_semantics<parallel>], iteration_bounds = array<i64: 1>, scalar_prefetch = 0 : i64, scratch_operands = 1 : i64, tpu.core_type = #tpu.core_type<tc>, window_params = [{transform_indices = @transform_0, window_bounds = array<i64: 2, 16, 16, 8>}, {pipeline_mode = #tpu.pipeline_mode<synchronous>, transform_indices = @transform_1, window_bounds = array<i64: 8, 4>}, {pipeline_mode = #tpu.pipeline_mode<synchronous>, transform_indices = @transform_2, window_bounds = array<i64: 1, 4>}, {pipeline_mode = #tpu.pipeline_mode<synchronous>, transform_indices = @transform_3, window_bounds = array<i64: 4, 8>}, {pipeline_mode = #tpu.pipeline_mode<synchronous>, transform_indices = @transform_4, window_bounds = array<i64: 1, 8>}, {pipeline_mode = #tpu.pipeline_mode<synchronous>, transform_indices = @transform_5, window_bounds = array<i64: 36, 8>}, {pipeline_mode = #tpu.pipeline_mode<synchronous>, transform_indices = @transform_6, window_bounds = array<i64: 1, 8>}, {transform_indices = @transform_7, window_bounds = array<i64: 2, 16, 16, 16>}]} {
    %c0 = arith.constant 0 : index
    %c0_0 = arith.constant 0 : index
    %c0_1 = arith.constant 0 : index
    %c0_2 = arith.constant 0 : index
    %0 = vector.load %arg1[%c0, %c0_0, %c0_1, %c0_2] : memref<2x16x16x8xf32, #tpu.memory_space<vmem>>, vector<2x16x16x8xf32>
    %1 = vector.shape_cast %0 : vector<2x16x16x8xf32> to vector<512x8xf32>
    %c0_3 = arith.constant 0 : index
    %c0_4 = arith.constant 0 : index
    %2 = vector.load %arg2[%c0_3, %c0_4] : memref<8x4xf32, #tpu.memory_space<vmem>>, vector<8x4xf32>
    %cst = arith.constant dense<0.000000e+00> : vector<512x4xf32>
    %3 = tpu.matmul %1, %2, %cst {dimension_numbers = #tpu.dot_dimension_numbers<[1], [0], [0], [1], [0, 0, 1, 1], [], []>} : vector<512x8xf32>, vector<8x4xf32>, vector<512x4xf32> -> vector<512x4xf32>
    %c0_5 = arith.constant 0 : index
    %c0_6 = arith.constant 0 : index
    %4 = vector.load %arg3[%c0_5, %c0_6] : memref<1x4xf32, #tpu.memory_space<vmem>>, vector<1x4xf32>
    %5 = vector.broadcast %4 : vector<1x4xf32> to vector<512x4xf32>
    %6 = arith.addf %3, %5 : vector<512x4xf32>
    %cst_7 = arith.constant 0.000000e+00 : f32
    %7 = vector.broadcast %cst_7 : f32 to vector<512x4xf32>
    %8 = arith.maximumf %6, %7 : vector<512x4xf32>
    %c0_8 = arith.constant 0 : index
    %c0_9 = arith.constant 0 : index
    %9 = vector.load %arg4[%c0_8, %c0_9] : memref<4x8xf32, #tpu.memory_space<vmem>>, vector<4x8xf32>
    %cst_10 = arith.constant dense<0.000000e+00> : vector<512x8xf32>
    %10 = tpu.matmul %8, %9, %cst_10 {dimension_numbers = #tpu.dot_dimension_numbers<[1], [0], [0], [1], [0, 0, 1, 1], [], []>} : vector<512x4xf32>, vector<4x8xf32>, vector<512x8xf32> -> vector<512x8xf32>
    %c0_11 = arith.constant 0 : index
    %c0_12 = arith.constant 0 : index
    %11 = vector.load %arg5[%c0_11, %c0_12] : memref<1x8xf32, #tpu.memory_space<vmem>>, vector<1x8xf32>
    %12 = vector.broadcast %11 : vector<1x8xf32> to vector<512x8xf32>
    %13 = arith.addf %10, %12 : vector<512x8xf32>
    %cst_13 = arith.constant 0.000000e+00 : f32
    %14 = vector.broadcast %cst_13 : f32 to vector<512x8xf32>
    %15 = arith.maximumf %13, %14 : vector<512x8xf32>
    %16 = vector.shape_cast %15 : vector<512x8xf32> to vector<2x16x16x8xf32>
    %c0_14 = arith.constant 0 : index
    %c0_15 = arith.constant 0 : index
    %c0_16 = arith.constant 0 : index
    %c0_17 = arith.constant 0 : index
    %17 = vector.load %arg8[%c0_14, %c0_15, %c0_16, %c0_17] : memref<2x16x16x16xf32, #tpu.memory_space<vmem>>, vector<2x16x16x8xf32>
    tpu.vector_store %arg8[%c0_14, %c0_15, %c0_16, %c0_17], %16 {strides = array<i32>} : memref<2x16x16x16xf32, #tpu.memory_space<vmem>>, vector<2x16x16x8xf32>,
    %cst_18 = arith.constant 0.000000e+00 : f32
    %18 = vector.broadcast %cst_18 : f32 to vector<2x1x18x4xf32>
    %c0_19 = arith.constant 0 : index
    %c0_20 = arith.constant 0 : index
    %c0_21 = arith.constant 0 : index
    %c0_22 = arith.constant 0 : index
    %19 = vector.load %arg9[%c0_19, %c0_20, %c0_21, %c0_22] : memref<2x18x18x4xf32, #tpu.memory_space<vmem>>, vector<2x1x18x4xf32>
    tpu.vector_store %arg9[%c0_19, %c0_20, %c0_21, %c0_22], %18 {strides = array<i32>} : memref<2x18x18x4xf32, #tpu.memory_space<vmem>>, vector<2x1x18x4xf32>,
    %cst_23 = arith.constant 0.000000e+00 : f32
    %20 = vector.broadcast %cst_23 : f32 to vector<2x1x18x4xf32>
    %c0_24 = arith.constant 0 : index
    %c17 = arith.constant 17 : index
    %c0_25 = arith.constant 0 : index
    %c0_26 = arith.constant 0 : index
    %21 = vector.load %arg9[%c0_24, %c17, %c0_25, %c0_26] : memref<2x18x18x4xf32, #tpu.memory_space<vmem>>, vector<2x1x18x4xf32>
    tpu.vector_store %arg9[%c0_24, %c17, %c0_25, %c0_26], %20 {strides = array<i32>} : memref<2x18x18x4xf32, #tpu.memory_space<vmem>>, vector<2x1x18x4xf32>,
    %cst_27 = arith.constant 0.000000e+00 : f32
    %22 = vector.broadcast %cst_27 : f32 to vector<2x16x1x4xf32>
    %c0_28 = arith.constant 0 : index
    %c1 = arith.constant 1 : index
    %c0_29 = arith.constant 0 : index
    %c0_30 = arith.constant 0 : index
    %23 = vector.load %arg9[%c0_28, %c1, %c0_29, %c0_30] : memref<2x18x18x4xf32, #tpu.memory_space<vmem>>, vector<2x16x1x4xf32>
    tpu.vector_store %arg9[%c0_28, %c1, %c0_29, %c0_30], %22 {strides = array<i32>} : memref<2x18x18x4xf32, #tpu.memory_space<vmem>>, vector<2x16x1x4xf32>,
    %cst_31 = arith.constant 0.000000e+00 : f32
    %24 = vector.broadcast %cst_31 : f32 to vector<2x16x1x4xf32>
    %c0_32 = arith.constant 0 : index
    %c1_33 = arith.constant 1 : index
    %c17_34 = arith.constant 17 : index
    %c0_35 = arith.constant 0 : index
    %25 = vector.load %arg9[%c0_32, %c1_33, %c17_34, %c0_35] : memref<2x18x18x4xf32, #tpu.memory_space<vmem>>, vector<2x16x1x4xf32>
    tpu.vector_store %arg9[%c0_32, %c1_33, %c17_34, %c0_35], %24 {strides = array<i32>} : memref<2x18x18x4xf32, #tpu.memory_space<vmem>>, vector<2x16x1x4xf32>,
    %26 = vector.shape_cast %8 : vector<512x4xf32> to vector<2x16x16x4xf32>
    %c0_36 = arith.constant 0 : index
    %c1_37 = arith.constant 1 : index
    %c1_38 = arith.constant 1 : index
    %c0_39 = arith.constant 0 : index
    %27 = vector.load %arg9[%c0_36, %c1_37, %c1_38, %c0_39] : memref<2x18x18x4xf32, #tpu.memory_space<vmem>>, vector<2x16x16x4xf32>
    tpu.vector_store %arg9[%c0_36, %c1_37, %c1_38, %c0_39], %26 {strides = array<i32>} : memref<2x18x18x4xf32, #tpu.memory_space<vmem>>, vector<2x16x16x4xf32>,
    %c0_40 = arith.constant 0 : index
    %c0_41 = arith.constant 0 : index
    %c0_42 = arith.constant 0 : index
    %c0_43 = arith.constant 0 : index
    %28 = vector.load %arg9[%c0_40, %c0_41, %c0_42, %c0_43] : memref<2x18x18x4xf32, #tpu.memory_space<vmem>>, vector<2x16x16x4xf32>
    %c0_44 = arith.constant 0 : index
    %c0_45 = arith.constant 0 : index
    %c1_46 = arith.constant 1 : index
    %c0_47 = arith.constant 0 : index
    %29 = vector.load %arg9[%c0_44, %c0_45, %c1_46, %c0_47] : memref<2x18x18x4xf32, #tpu.memory_space<vmem>>, vector<2x16x16x4xf32>
    %c0_48 = arith.constant 0 : index
    %c0_49 = arith.constant 0 : index
    %c2 = arith.constant 2 : index
    %c0_50 = arith.constant 0 : index
    %30 = vector.load %arg9[%c0_48, %c0_49, %c2, %c0_50] : memref<2x18x18x4xf32, #tpu.memory_space<vmem>>, vector<2x16x16x4xf32>
    %c0_51 = arith.constant 0 : index
    %c1_52 = arith.constant 1 : index
    %c0_53 = arith.constant 0 : index
    %c0_54 = arith.constant 0 : index
    %31 = vector.load %arg9[%c0_51, %c1_52, %c0_53, %c0_54] : memref<2x18x18x4xf32, #tpu.memory_space<vmem>>, vector<2x16x16x4xf32>
    %c0_55 = arith.constant 0 : index
    %c1_56 = arith.constant 1 : index
    %c1_57 = arith.constant 1 : index
    %c0_58 = arith.constant 0 : index
    %32 = vector.load %arg9[%c0_55, %c1_56, %c1_57, %c0_58] : memref<2x18x18x4xf32, #tpu.memory_space<vmem>>, vector<2x16x16x4xf32>
    %c0_59 = arith.constant 0 : index
    %c1_60 = arith.constant 1 : index
    %c2_61 = arith.constant 2 : index
    %c0_62 = arith.constant 0 : index
    %33 = vector.load %arg9[%c0_59, %c1_60, %c2_61, %c0_62] : memref<2x18x18x4xf32, #tpu.memory_space<vmem>>, vector<2x16x16x4xf32>
    %c0_63 = arith.constant 0 : index
    %c2_64 = arith.constant 2 : index
    %c0_65 = arith.constant 0 : index
    %c0_66 = arith.constant 0 : index
    %34 = vector.load %arg9[%c0_63, %c2_64, %c0_65, %c0_66] : memref<2x18x18x4xf32, #tpu.memory_space<vmem>>, vector<2x16x16x4xf32>
    %c0_67 = arith.constant 0 : index
    %c2_68 = arith.constant 2 : index
    %c1_69 = arith.constant 1 : index
    %c0_70 = arith.constant 0 : index
    %35 = vector.load %arg9[%c0_67, %c2_68, %c1_69, %c0_70] : memref<2x18x18x4xf32, #tpu.memory_space<vmem>>, vector<2x16x16x4xf32>
    %c0_71 = arith.constant 0 : index
    %c2_72 = arith.constant 2 : index
    %c2_73 = arith.constant 2 : index
    %c0_74 = arith.constant 0 : index
    %36 = vector.load %arg9[%c0_71, %c2_72, %c2_73, %c0_74] : memref<2x18x18x4xf32, #tpu.memory_space<vmem>>, vector<2x16x16x4xf32>
    %37 = tpu.concatenate %28, %29, %30, %31, %32, %33, %34, %35, %36 in 3 : vector<2x16x16x4xf32>, vector<2x16x16x4xf32>, vector<2x16x16x4xf32>, vector<2x16x16x4xf32>, vector<2x16x16x4xf32>, vector<2x16x16x4xf32>, vector<2x16x16x4xf32>, vector<2x16x16x4xf32>, vector<2x16x16x4xf32> -> vector<2x16x16x36xf32>
    %38 = vector.shape_cast %37 : vector<2x16x16x36xf32> to vector<512x36xf32>
    %c0_75 = arith.constant 0 : index
    %c0_76 = arith.constant 0 : index
    %39 = vector.load %arg6[%c0_75, %c0_76] : memref<36x8xf32, #tpu.memory_space<vmem>>, vector<36x8xf32>
    %cst_77 = arith.constant dense<0.000000e+00> : vector<512x8xf32>
    %40 = tpu.matmul %38, %39, %cst_77 {dimension_numbers = #tpu.dot_dimension_numbers<[1], [0], [0], [1], [0, 0, 1, 1], [], []>} : vector<512x36xf32>, vector<36x8xf32>, vector<512x8xf32> -> vector<512x8xf32>
    %c0_78 = arith.constant 0 : index
    %c0_79 = arith.constant 0 : index
    %41 = vector.load %arg7[%c0_78, %c0_79] : memref<1x8xf32, #tpu.memory_space<vmem>>, vector<1x8xf32>
    %42 = vector.broadcast %41 : vector<1x8xf32> to vector<512x8xf32>
    %43 = arith.addf %40, %42 : vector<512x8xf32>
    %cst_80 = arith.constant 0.000000e+00 : f32
    %44 = vector.broadcast %cst_80 : f32 to vector<512x8xf32>
    %45 = arith.maximumf %43, %44 : vector<512x8xf32>
    %46 = vector.shape_cast %45 : vector<512x8xf32> to vector<2x16x16x8xf32>
    %c0_81 = arith.constant 0 : index
    %c0_82 = arith.constant 0 : index
    %c0_83 = arith.constant 0 : index
    %c8 = arith.constant 8 : index
    %47 = vector.load %arg8[%c0_81, %c0_82, %c0_83, %c8] : memref<2x16x16x16xf32, #tpu.memory_space<vmem>>, vector<2x16x16x8xf32>
    tpu.vector_store %arg8[%c0_81, %c0_82, %c0_83, %c8], %46 {strides = array<i32>} : memref<2x16x16x16xf32, #tpu.memory_space<vmem>>, vector<2x16x16x8xf32>,
    return
  }
  func.func @transform_0(%arg0: i32) -> (i32, i32, i32, i32) {
    %c0_i32 = arith.constant 0 : i32
    %c0_i32_0 = arith.constant 0 : i32
    %c0_i32_1 = arith.constant 0 : i32
    %c0_i32_2 = arith.constant 0 : i32
    return %arg0, %c0_i32, %c0_i32_0, %c0_i32_1 : i32, i32, i32, i32
  }
  func.func @transform_1(%arg0: i32) -> (i32, i32) {
    %c0_i32 = arith.constant 0 : i32
    %c0_i32_0 = arith.constant 0 : i32
    %c0_i32_1 = arith.constant 0 : i32
    return %c0_i32, %c0_i32_0 : i32, i32
  }
  func.func @transform_2(%arg0: i32) -> (i32, i32) {
    %c0_i32 = arith.constant 0 : i32
    %c0_i32_0 = arith.constant 0 : i32
    %c0_i32_1 = arith.constant 0 : i32
    return %c0_i32, %c0_i32_0 : i32, i32
  }
  func.func @transform_3(%arg0: i32) -> (i32, i32) {
    %c0_i32 = arith.constant 0 : i32
    %c0_i32_0 = arith.constant 0 : i32
    %c0_i32_1 = arith.constant 0 : i32
    return %c0_i32, %c0_i32_0 : i32, i32
  }
  func.func @transform_4(%arg0: i32) -> (i32, i32) {
    %c0_i32 = arith.constant 0 : i32
    %c0_i32_0 = arith.constant 0 : i32
    %c0_i32_1 = arith.constant 0 : i32
    return %c0_i32, %c0_i32_0 : i32, i32
  }
  func.func @transform_5(%arg0: i32) -> (i32, i32) {
    %c0_i32 = arith.constant 0 : i32
    %c0_i32_0 = arith.constant 0 : i32
    %c0_i32_1 = arith.constant 0 : i32
    return %c0_i32, %c0_i32_0 : i32, i32
  }
  func.func @transform_6(%arg0: i32) -> (i32, i32) {
    %c0_i32 = arith.constant 0 : i32
    %c0_i32_0 = arith.constant 0 : i32
    %c0_i32_1 = arith.constant 0 : i32
    return %c0_i32, %c0_i32_0 : i32, i32
  }
  func.func @transform_7(%arg0: i32) -> (i32, i32, i32, i32) {
    %c0_i32 = arith.constant 0 : i32
    %c0_i32_0 = arith.constant 0 : i32
    %c0_i32_1 = arith.constant 0 : i32
    %c0_i32_2 = arith.constant 0 : i32
    return %arg0, %c0_i32, %c0_i32_0, %c0_i32_1 : i32, i32, i32, i32
  }
}

</mosaic_0001>

<llo_original>
// kernel: tpu_custom_call.1
$region0: #{tpu_custom_call.1}
  #allocation0 [shape = 'u32[]', space=smem, size = 0x4, offset = 0x4, fixed_abs, tag = 'smem constant byte address 0x4 - core index']
  #allocation1 [shape = 'u32[72,128]{1,0:T(1,128)}', space=vmem, size = 0x9000, scoped, tag = 'internal scratch']
  #allocation2 [shape = 'f32[2,18,18,4]{3,2,1,0:T(8,128)}', space=vmem, size = 0x6c000, scoped, tag = 'scratch operand']
  %s0 = inlined_call_operand.vmem [shape: f32[2,16,16,8], index: 0, kind: input, shape index: {}]
  %s1 = inlined_call_operand.vmem [shape: f32[8,4], index: 1, kind: input, shape index: {}]
  %s2 = inlined_call_operand.vmem [shape: f32[1,4], index: 2, kind: input, shape index: {}]
  %s3 = inlined_call_operand.vmem [shape: f32[4,8], index: 3, kind: input, shape index: {}]
  %s4 = inlined_call_operand.vmem [shape: f32[1,8], index: 4, kind: input, shape index: {}]
  %s5 = inlined_call_operand.vmem [shape: f32[36,8], index: 5, kind: input, shape index: {}]
  %s6 = inlined_call_operand.vmem [shape: f32[1,8], index: 6, kind: input, shape index: {}]
  %s7 = inlined_call_operand.hbm [shape: f32[2,16,16,16], index: 7, kind: output, shape index: {}]
  %s8 = sld [smem:[#allocation0]]
  $region38: #{tpu_custom_call.1} parent=0
    _
  %s10 = ssub.s32 1, %s8
  %s11 = scalar_select 0, %s10, %s8
  $region1: #{tpu_custom_call.1} parent=0
    #allocation3 [shape = 'u8[262144]{0}', space=vmem, size = 0x40000, scoped, tag = 'output window, operand 0, single buffered']
    #allocation4 [shape = 's32[1]{0}', space=sflag, size = 0x4, scoped, tag = 'scoped memory for tpu_custom_call.1']
    %12 = vsyncpa [#allocation4], 0
    // Predicated region
    $region2: #{tpu_custom_call.1} parent=1 // pred_check
      _
    $region3: #{tpu_custom_call.1} parent=1 // pred_check_branch
      %14 = sbr.rel (0) target = $region5
    $region4: #{tpu_custom_call.1} parent=1 // pred_region
      _
    $region5: #{tpu_custom_call.1} parent=1 // pred_fallthru
      _
    // Predicated region
    $region6: #{tpu_custom_call.1} parent=1 // pred_check
      _
    $region7: #{tpu_custom_call.1} parent=1 // pred_check_branch
      %16 = sbr.rel (0) target = $region9
    $region8: #{tpu_custom_call.1} parent=1 // pred_region
      _
    $region9: #{tpu_custom_call.1} parent=1 // pred_fallthru
      _
    // Predicated region
    $region10: #{tpu_custom_call.1} parent=1 // pred_check
      _
    $region11: #{tpu_custom_call.1} parent=1 // pred_check_branch
      %18 = sbr.rel (0) target = $region13
    $region12: #{tpu_custom_call.1} parent=1 // pred_region
      _
    $region13: #{tpu_custom_call.1} parent=1 // pred_fallthru
      _
    // Predicated region
    $region14: #{tpu_custom_call.1} parent=1 // pred_check
      _
    $region15: #{tpu_custom_call.1} parent=1 // pred_check_branch
      %20 = sbr.rel (0) target = $region17
    $region16: #{tpu_custom_call.1} parent=1 // pred_region
      _
    $region17: #{tpu_custom_call.1} parent=1 // pred_fallthru
      _
    // Predicated region
    $region18: #{tpu_custom_call.1} parent=1 // pred_check
      _
    $region19: #{tpu_custom_call.1} parent=1 // pred_check_branch
      %22 = sbr.rel (0) target = $region21
    $region20: #{tpu_custom_call.1} parent=1 // pred_region
      _
    $region21: #{tpu_custom_call.1} parent=1 // pred_fallthru
      _
    // Predicated region
    $region22: #{tpu_custom_call.1} parent=1 // pred_check
      _
    $region23: #{tpu_custom_call.1} parent=1 // pred_check_branch
      %24 = sbr.rel (0) target = $region25
    $region24: #{tpu_custom_call.1} parent=1 // pred_region
      _
    $region25: #{tpu_custom_call.1} parent=1 // pred_fallthru
      _
    // Predicated region
    $region26: #{tpu_custom_call.1} parent=1 // pred_check
      _
    $region27: #{tpu_custom_call.1} parent=1 // pred_check_branch
      %26 = sbr.rel (0) target = $region29
    $region28: #{tpu_custom_call.1} parent=1 // pred_region
      _
    $region29: #{tpu_custom_call.1} parent=1 // pred_fallthru
      _
    %v27 = vld [vmem:[%s0] sm:$0xff]
    %v28 = vld [vmem:[%s0 + $0x8] sm:$0xff]
    %v29 = vld [vmem:[%s0 + $0x10] sm:$0xff]
    %v30 = vld [vmem:[%s0 + $0x18] sm:$0xff]
    %v31 = vld [vmem:[%s0 + $0x20] sm:$0xff]
    %v32 = vld [vmem:[%s0 + $0x28] sm:$0xff]
    %v33 = vld [vmem:[%s0 + $0x30] sm:$0xff]
    %v34 = vld [vmem:[%s0 + $0x38] sm:$0xff]
    %v35 = vld [vmem:[%s0 + $0x40] sm:$0xff]
    %v36 = vld [vmem:[%s0 + $0x48] sm:$0xff]
    %v37 = vld [vmem:[%s0 + $0x50] sm:$0xff]
    %v38 = vld [vmem:[%s0 + $0x58] sm:$0xff]
    %v39 = vld [vmem:[%s0 + $0x60] sm:$0xff]
    %v40 = vld [vmem:[%s0 + $0x68] sm:$0xff]
    %v41 = vld [vmem:[%s0 + $0x70] sm:$0xff]
    %v42 = vld [vmem:[%s0 + $0x78] sm:$0xff]
    %v43 = vld [vmem:[%s0 + $0x80] sm:$0xff]
    %v44 = vld [vmem:[%s0 + $0x88] sm:$0xff]
    %v45 = vld [vmem:[%s0 + $0x90] sm:$0xff]
    %v46 = vld [vmem:[%s0 + $0x98] sm:$0xff]
    %v47 = vld [vmem:[%s0 + $0xa0] sm:$0xff]
    %v48 = vld [vmem:[%s0 + $0xa8] sm:$0xff]
    %v49 = vld [vmem:[%s0 + $0xb0] sm:$0xff]
    %v50 = vld [vmem:[%s0 + $0xb8] sm:$0xff]
    %v51 = vld [vmem:[%s0 + $0xc0] sm:$0xff]
    %v52 = vld [vmem:[%s0 + $0xc8] sm:$0xff]
    %v53 = vld [vmem:[%s0 + $0xd0] sm:$0xff]
    %v54 = vld [vmem:[%s0 + $0xd8] sm:$0xff]
    %v55 = vld [vmem:[%s0 + $0xe0] sm:$0xff]
    %v56 = vld [vmem:[%s0 + $0xe8] sm:$0xff]
    %v57 = vld [vmem:[%s0 + $0xf0] sm:$0xff]
    %v58 = vld [vmem:[%s0 + $0xf8] sm:$0xff]
    %v59 = vld [vmem:[%s0 + $0x100] sm:$0xff]
    %v60 = vld [vmem:[%s0 + $0x108] sm:$0xff]
    %v61 = vld [vmem:[%s0 + $0x110] sm:$0xff]
    %v62 = vld [vmem:[%s0 + $0x118] sm:$0xff]
    %v63 = vld [vmem:[%s0 + $0x120] sm:$0xff]
    %v64 = vld [vmem:[%s0 + $0x128] sm:$0xff]
    %v65 = vld [vmem:[%s0 + $0x130] sm:$0xff]
    %v66 = vld [vmem:[%s0 + $0x138] sm:$0xff]
    %v67 = vld [vmem:[%s0 + $0x140] sm:$0xff]
    %v68 = vld [vmem:[%s0 + $0x148] sm:$0xff]
    %v69 = vld [vmem:[%s0 + $0x150] sm:$0xff]
    %v70 = vld [vmem:[%s0 + $0x158] sm:$0xff]
    %v71 = vld [vmem:[%s0 + $0x160] sm:$0xff]
    %v72 = vld [vmem:[%s0 + $0x168] sm:$0xff]
    %v73 = vld [vmem:[%s0 + $0x170] sm:$0xff]
    %v74 = vld [vmem:[%s0 + $0x178] sm:$0xff]
    %v75 = vld [vmem:[%s0 + $0x180] sm:$0xff]
    %v76 = vld [vmem:[%s0 + $0x188] sm:$0xff]
    %v77 = vld [vmem:[%s0 + $0x190] sm:$0xff]
    %v78 = vld [vmem:[%s0 + $0x198] sm:$0xff]
    %v79 = vld [vmem:[%s0 + $0x1a0] sm:$0xff]
    %v80 = vld [vmem:[%s0 + $0x1a8] sm:$0xff]
    %v81 = vld [vmem:[%s0 + $0x1b0] sm:$0xff]
    %v82 = vld [vmem:[%s0 + $0x1b8] sm:$0xff]
    %v83 = vld [vmem:[%s0 + $0x1c0] sm:$0xff]
    %v84 = vld [vmem:[%s0 + $0x1c8] sm:$0xff]
    %v85 = vld [vmem:[%s0 + $0x1d0] sm:$0xff]
    %v86 = vld [vmem:[%s0 + $0x1d8] sm:$0xff]
    %v87 = vld [vmem:[%s0 + $0x1e0] sm:$0xff]
    %v88 = vld [vmem:[%s0 + $0x1e8] sm:$0xff]
    %v89 = vld [vmem:[%s0 + $0x1f0] sm:$0xff]
    %v90 = vld [vmem:[%s0 + $0x1f8] sm:$0xff]
    %v91 = vld [vmem:[%s1] sm:$0xff]
    %v92 = vld [vmem:[%s2] sm:$0x1]
    %v94 = vperm.slane %v92, 0
    %vm96 = vcmask 64512
    %v98 = vsel %vm96, %v27, 0
    %v101 = vsel %vm96, %v28, 0
    %v104 = vsel %vm96, %v29, 0
    %v107 = vsel %vm96, %v30, 0
    %v110 = vsel %vm96, %v31, 0
    %v113 = vsel %vm96, %v32, 0
    %v116 = vsel %vm96, %v33, 0
    %v119 = vsel %vm96, %v34, 0
    %v122 = vsel %vm96, %v35, 0
    %v125 = vsel %vm96, %v36, 0
    %v128 = vsel %vm96, %v37, 0
    %v131 = vsel %vm96, %v38, 0
    %v134 = vsel %vm96, %v39, 0
    %v137 = vsel %vm96, %v40, 0
    %v140 = vsel %vm96, %v41, 0
    %v143 = vsel %vm96, %v42, 0
    %v146 = vsel %vm96, %v43, 0
    %v149 = vsel %vm96, %v44, 0
    %v152 = vsel %vm96, %v45, 0
    %v155 = vsel %vm96, %v46, 0
    %v158 = vsel %vm96, %v47, 0
    %v161 = vsel %vm96, %v48, 0
    %v164 = vsel %vm96, %v49, 0
    %v167 = vsel %vm96, %v50, 0
    %v170 = vsel %vm96, %v51, 0
    %v173 = vsel %vm96, %v52, 0
    %v176 = vsel %vm96, %v53, 0
    %v179 = vsel %vm96, %v54, 0
    %v182 = vsel %vm96, %v55, 0
    %v185 = vsel %vm96, %v56, 0
    %v188 = vsel %vm96, %v57, 0
    %v191 = vsel %vm96, %v58, 0
    %v194 = vsel %vm96, %v59, 0
    %v197 = vsel %vm96, %v60, 0
    %v200 = vsel %vm96, %v61, 0
    %v203 = vsel %vm96, %v62, 0
    %v206 = vsel %vm96, %v63, 0
    %v209 = vsel %vm96, %v64, 0
    %v212 = vsel %vm96, %v65, 0
    %v215 = vsel %vm96, %v66, 0
    %v218 = vsel %vm96, %v67, 0
    %v221 = vsel %vm96, %v68, 0
    %v224 = vsel %vm96, %v69, 0
    %v227 = vsel %vm96, %v70, 0
    %v230 = vsel %vm96, %v71, 0
    %v233 = vsel %vm96, %v72, 0
    %v236 = vsel %vm96, %v73, 0
    %v239 = vsel %vm96, %v74, 0
    %v242 = vsel %vm96, %v75, 0
    %v245 = vsel %vm96, %v76, 0
    %v248 = vsel %vm96, %v77, 0
    %v251 = vsel %vm96, %v78, 0
    %v254 = vsel %vm96, %v79, 0
    %v257 = vsel %vm96, %v80, 0
    %v260 = vsel %vm96, %v81, 0
    %v263 = vsel %vm96, %v82, 0
    %v266 = vsel %vm96, %v83, 0
    %v269 = vsel %vm96, %v84, 0
    %v272 = vsel %vm96, %v85, 0
    %v275 = vsel %vm96, %v86, 0
    %v278 = vsel %vm96, %v87, 0
    %v281 = vsel %vm96, %v88, 0
    %v284 = vsel %vm96, %v89, 0
    %v287 = vsel %vm96, %v90, 0
    %289 = vmatpush.msra.mxu0 0.0
    %290 = vmatpush.msra.mxu0 0.0
    %291 = vmatpush.msra.mxu0 0.0
    %292 = vmatpush.msra.mxu0 0.0
    %293 = vmatpush.msra.mxu0 0.0
    %294 = vmatpush.msra.mxu0 0.0
    %295 = vmatpush.msra.mxu0 0.0
    %296 = vmatpush.msra.mxu0 0.0
    %297 = vmatpush.msra.mxu0 0.0
    %298 = vmatpush.msra.mxu0 0.0
    %299 = vmatpush.msra.mxu0 0.0
    %300 = vmatpush.msra.mxu0 0.0
    %301 = vmatpush.msra.mxu0 0.0
    %302 = vmatpush.msra.mxu0 0.0
    %303 = vmatpush.msra.mxu0 0.0
    %304 = vmatpush.msra.mxu0 %v91
    %305 = vmatmul.f32.gmra.mxu0 %v98
    %v306 = vpop.f32.mrf.mxu0
    %v307 = vadd.f32 %v94, %v306
    %308 = vmatmul.f32.gmra.mxu0 %v101
    %v309 = vpop.f32.mrf.mxu0
    %v310 = vadd.f32 %v94, %v309
    %311 = vmatmul.f32.gmra.mxu0 %v104
    %v312 = vpop.f32.mrf.mxu0
    %v313 = vadd.f32 %v94, %v312
    %314 = vmatmul.f32.gmra.mxu0 %v107
    %v315 = vpop.f32.mrf.mxu0
    %v316 = vadd.f32 %v94, %v315
    %317 = vmatmul.f32.gmra.mxu0 %v110
    %v318 = vpop.f32.mrf.mxu0
    %v319 = vadd.f32 %v94, %v318
    %320 = vmatmul.f32.gmra.mxu0 %v113
    %v321 = vpop.f32.mrf.mxu0
    %v322 = vadd.f32 %v94, %v321
    %323 = vmatmul.f32.gmra.mxu0 %v116
    %v324 = vpop.f32.mrf.mxu0
    %v325 = vadd.f32 %v94, %v324
    %326 = vmatmul.f32.gmra.mxu0 %v119
    %v327 = vpop.f32.mrf.mxu0
    %v328 = vadd.f32 %v94, %v327
    %329 = vmatmul.f32.gmra.mxu0 %v122
    %v330 = vpop.f32.mrf.mxu0
    %v331 = vadd.f32 %v94, %v330
    %332 = vmatmul.f32.gmra.mxu0 %v125
    %v333 = vpop.f32.mrf.mxu0
    %v334 = vadd.f32 %v94, %v333
    %335 = vmatmul.f32.gmra.mxu0 %v128
    %v336 = vpop.f32.mrf.mxu0
    %v337 = vadd.f32 %v94, %v336
    %338 = vmatmul.f32.gmra.mxu0 %v131
    %v339 = vpop.f32.mrf.mxu0
    %v340 = vadd.f32 %v94, %v339
    %341 = vmatmul.f32.gmra.mxu0 %v134
    %v342 = vpop.f32.mrf.mxu0
    %v343 = vadd.f32 %v94, %v342
    %344 = vmatmul.f32.gmra.mxu0 %v137
    %v345 = vpop.f32.mrf.mxu0
    %v346 = vadd.f32 %v94, %v345
    %347 = vmatmul.f32.gmra.mxu0 %v140
    %v348 = vpop.f32.mrf.mxu0
    %v349 = vadd.f32 %v94, %v348
    %350 = vmatmul.f32.gmra.mxu0 %v143
    %v351 = vpop.f32.mrf.mxu0
    %v352 = vadd.f32 %v94, %v351
    %353 = vmatmul.f32.gmra.mxu0 %v146
    %v354 = vpop.f32.mrf.mxu0
    %v355 = vadd.f32 %v94, %v354
    %356 = vmatmul.f32.gmra.mxu0 %v149
    %v357 = vpop.f32.mrf.mxu0
    %v358 = vadd.f32 %v94, %v357
    %359 = vmatmul.f32.gmra.mxu0 %v152
    %v360 = vpop.f32.mrf.mxu0
    %v361 = vadd.f32 %v94, %v360
    %362 = vmatmul.f32.gmra.mxu0 %v155
    %v363 = vpop.f32.mrf.mxu0
    %v364 = vadd.f32 %v94, %v363
    %365 = vmatmul.f32.gmra.mxu0 %v158
    %v366 = vpop.f32.mrf.mxu0
    %v367 = vadd.f32 %v94, %v366
    %368 = vmatmul.f32.gmra.mxu0 %v161
    %v369 = vpop.f32.mrf.mxu0
    %v370 = vadd.f32 %v94, %v369
    %371 = vmatmul.f32.gmra.mxu0 %v164
    %v372 = vpop.f32.mrf.mxu0
    %v373 = vadd.f32 %v94, %v372
    %374 = vmatmul.f32.gmra.mxu0 %v167
    %v375 = vpop.f32.mrf.mxu0
    %v376 = vadd.f32 %v94, %v375
    %377 = vmatmul.f32.gmra.mxu0 %v170
    %v378 = vpop.f32.mrf.mxu0
    %v379 = vadd.f32 %v94, %v378
    %380 = vmatmul.f32.gmra.mxu0 %v173
    %v381 = vpop.f32.mrf.mxu0
    %v382 = vadd.f32 %v94, %v381
    %383 = vmatmul.f32.gmra.mxu0 %v176
    %v384 = vpop.f32.mrf.mxu0
    %v385 = vadd.f32 %v94, %v384
    %386 = vmatmul.f32.gmra.mxu0 %v179
    %v387 = vpop.f32.mrf.mxu0
    %v388 = vadd.f32 %v94, %v387
    %389 = vmatmul.f32.gmra.mxu0 %v182
    %v390 = vpop.f32.mrf.mxu0
    %v391 = vadd.f32 %v94, %v390
    %392 = vmatmul.f32.gmra.mxu0 %v185
    %v393 = vpop.f32.mrf.mxu0
    %v394 = vadd.f32 %v94, %v393
    %395 = vmatmul.f32.gmra.mxu0 %v188
    %v396 = vpop.f32.mrf.mxu0
    %v397 = vadd.f32 %v94, %v396
    %398 = vmatmul.f32.gmra.mxu0 %v191
    %v399 = vpop.f32.mrf.mxu0
    %v400 = vadd.f32 %v94, %v399
    %401 = vmatmul.f32.gmra.mxu0 %v194
    %v402 = vpop.f32.mrf.mxu0
    %v403 = vadd.f32 %v94, %v402
    %404 = vmatmul.f32.gmra.mxu0 %v197
    %v405 = vpop.f32.mrf.mxu0
    %v406 = vadd.f32 %v94, %v405
    %407 = vmatmul.f32.gmra.mxu0 %v200
    %v408 = vpop.f32.mrf.mxu0
    %v409 = vadd.f32 %v94, %v408
    %410 = vmatmul.f32.gmra.mxu0 %v203
    %v411 = vpop.f32.mrf.mxu0
    %v412 = vadd.f32 %v94, %v411
    %413 = vmatmul.f32.gmra.mxu0 %v206
    %v414 = vpop.f32.mrf.mxu0
    %v415 = vadd.f32 %v94, %v414
    %416 = vmatmul.f32.gmra.mxu0 %v209
    %v417 = vpop.f32.mrf.mxu0
    %v418 = vadd.f32 %v94, %v417
    %419 = vmatmul.f32.gmra.mxu0 %v212
    %v420 = vpop.f32.mrf.mxu0
    %v421 = vadd.f32 %v94, %v420
    %422 = vmatmul.f32.gmra.mxu0 %v215
    %v423 = vpop.f32.mrf.mxu0
    %v424 = vadd.f32 %v94, %v423
    %425 = vmatmul.f32.gmra.mxu0 %v218
    %v426 = vpop.f32.mrf.mxu0
    %v427 = vadd.f32 %v94, %v426
    %428 = vmatmul.f32.gmra.mxu0 %v221
    %v429 = vpop.f32.mrf.mxu0
    %v430 = vadd.f32 %v94, %v429
    %431 = vmatmul.f32.gmra.mxu0 %v224
    %v432 = vpop.f32.mrf.mxu0
    %v433 = vadd.f32 %v94, %v432
    %434 = vmatmul.f32.gmra.mxu0 %v227
    %v435 = vpop.f32.mrf.mxu0
    %v436 = vadd.f32 %v94, %v435
    %437 = vmatmul.f32.gmra.mxu0 %v230
    %v438 = vpop.f32.mrf.mxu0
    %v439 = vadd.f32 %v94, %v438
    %440 = vmatmul.f32.gmra.mxu0 %v233
    %v441 = vpop.f32.mrf.mxu0
    %v442 = vadd.f32 %v94, %v441
    %443 = vmatmul.f32.gmra.mxu0 %v236
    %v444 = vpop.f32.mrf.mxu0
    %v445 = vadd.f32 %v94, %v444
    %446 = vmatmul.f32.gmra.mxu0 %v239
    %v447 = vpop.f32.mrf.mxu0
    %v448 = vadd.f32 %v94, %v447
    %449 = vmatmul.f32.gmra.mxu0 %v242
    %v450 = vpop.f32.mrf.mxu0
    %v451 = vadd.f32 %v94, %v450
    %452 = vmatmul.f32.gmra.mxu0 %v245
    %v453 = vpop.f32.mrf.mxu0
    %v454 = vadd.f32 %v94, %v453
    %455 = vmatmul.f32.gmra.mxu0 %v248
    %v456 = vpop.f32.mrf.mxu0
    %v457 = vadd.f32 %v94, %v456
    %458 = vmatmul.f32.gmra.mxu0 %v251
    %v459 = vpop.f32.mrf.mxu0
    %v460 = vadd.f32 %v94, %v459
    %461 = vmatmul.f32.gmra.mxu0 %v254
    %v462 = vpop.f32.mrf.mxu0
    %v463 = vadd.f32 %v94, %v462
    %464 = vmatmul.f32.gmra.mxu0 %v257
    %v465 = vpop.f32.mrf.mxu0
    %v466 = vadd.f32 %v94, %v465
    %467 = vmatmul.f32.gmra.mxu0 %v260
    %v468 = vpop.f32.mrf.mxu0
    %v469 = vadd.f32 %v94, %v468
    %470 = vmatmul.f32.gmra.mxu0 %v263
    %v471 = vpop.f32.mrf.mxu0
    %v472 = vadd.f32 %v94, %v471
    %473 = vmatmul.f32.gmra.mxu0 %v266
    %v474 = vpop.f32.mrf.mxu0
    %v475 = vadd.f32 %v94, %v474
    %476 = vmatmul.f32.gmra.mxu0 %v269
    %v477 = vpop.f32.mrf.mxu0
    %v478 = vadd.f32 %v94, %v477
    %479 = vmatmul.f32.gmra.mxu0 %v272
    %v480 = vpop.f32.mrf.mxu0
    %v481 = vadd.f32 %v94, %v480
    %482 = vmatmul.f32.gmra.mxu0 %v275
    %v483 = vpop.f32.mrf.mxu0
    %v484 = vadd.f32 %v94, %v483
    %485 = vmatmul.f32.gmra.mxu0 %v278
    %v486 = vpop.f32.mrf.mxu0
    %v487 = vadd.f32 %v94, %v486
    %488 = vmatmul.f32.gmra.mxu0 %v281
    %v489 = vpop.f32.mrf.mxu0
    %v490 = vadd.f32 %v94, %v489
    %491 = vmatmul.f32.gmra.mxu0 %v284
    %v492 = vpop.f32.mrf.mxu0
    %v493 = vadd.f32 %v94, %v492
    %494 = vmatmul.f32.gmra.mxu0 %v287
    %v495 = vpop.f32.mrf.mxu0
    %v496 = vadd.f32 %v94, %v495
    %497 = vdwg.mxu0
    %v498 = vmax.f32 %v307, 0.0
    %v499 = vmax.f32 %v310, 0.0
    %v500 = vmax.f32 %v313, 0.0
    %v501 = vmax.f32 %v316, 0.0
    %v502 = vmax.f32 %v319, 0.0
    %v503 = vmax.f32 %v322, 0.0
    %v504 = vmax.f32 %v325, 0.0
    %v505 = vmax.f32 %v328, 0.0
    %v506 = vmax.f32 %v331, 0.0
    %v507 = vmax.f32 %v334, 0.0
    %v508 = vmax.f32 %v337, 0.0
    %v509 = vmax.f32 %v340, 0.0
    %v510 = vmax.f32 %v343, 0.0
    %v511 = vmax.f32 %v346, 0.0
    %v512 = vmax.f32 %v349, 0.0
    %v513 = vmax.f32 %v352, 0.0
    %v514 = vmax.f32 %v355, 0.0
    %v515 = vmax.f32 %v358, 0.0
    %v516 = vmax.f32 %v361, 0.0
    %v517 = vmax.f32 %v364, 0.0
    %v518 = vmax.f32 %v367, 0.0
    %v519 = vmax.f32 %v370, 0.0
    %v520 = vmax.f32 %v373, 0.0
    %v521 = vmax.f32 %v376, 0.0
    %v522 = vmax.f32 %v379, 0.0
    %v523 = vmax.f32 %v382, 0.0
    %v524 = vmax.f32 %v385, 0.0
    %v525 = vmax.f32 %v388, 0.0
    %v526 = vmax.f32 %v391, 0.0
    %v527 = vmax.f32 %v394, 0.0
    %v528 = vmax.f32 %v397, 0.0
    %v529 = vmax.f32 %v400, 0.0
    %v530 = vmax.f32 %v403, 0.0
    %v531 = vmax.f32 %v406, 0.0
    %v532 = vmax.f32 %v409, 0.0
    %v533 = vmax.f32 %v412, 0.0
    %v534 = vmax.f32 %v415, 0.0
    %v535 = vmax.f32 %v418, 0.0
    %v536 = vmax.f32 %v421, 0.0
    %v537 = vmax.f32 %v424, 0.0
    %v538 = vmax.f32 %v427, 0.0
    %v539 = vmax.f32 %v430, 0.0
    %v540 = vmax.f32 %v433, 0.0
    %v541 = vmax.f32 %v436, 0.0
    %v542 = vmax.f32 %v439, 0.0
    %v543 = vmax.f32 %v442, 0.0
    %v544 = vmax.f32 %v445, 0.0
    %v545 = vmax.f32 %v448, 0.0
    %v546 = vmax.f32 %v451, 0.0
    %v547 = vmax.f32 %v454, 0.0
    %v548 = vmax.f32 %v457, 0.0
    %v549 = vmax.f32 %v460, 0.0
    %v550 = vmax.f32 %v463, 0.0
    %v551 = vmax.f32 %v466, 0.0
    %v552 = vmax.f32 %v469, 0.0
    %v553 = vmax.f32 %v472, 0.0
    %v554 = vmax.f32 %v475, 0.0
    %v555 = vmax.f32 %v478, 0.0
    %v556 = vmax.f32 %v481, 0.0
    %v557 = vmax.f32 %v484, 0.0
    %v558 = vmax.f32 %v487, 0.0
    %v559 = vmax.f32 %v490, 0.0
    %v560 = vmax.f32 %v493, 0.0
    %v561 = vmax.f32 %v496, 0.0
    %v562 = vld [vmem:[%s3] sm:$0xf]
    %v563 = vld [vmem:[%s4] sm:$0x1]
    %v565 = vperm.slane %v563, 0
    %vm567 = vcmask 31744
    %v569 = vsel %vm567, %v498, 0
    %v572 = vsel %vm567, %v499, 0
    %v575 = vsel %vm567, %v500, 0
    %v578 = vsel %vm567, %v501, 0
    %v581 = vsel %vm567, %v502, 0
    %v584 = vsel %vm567, %v503, 0
    %v587 = vsel %vm567, %v504, 0
    %v590 = vsel %vm567, %v505, 0
    %v593 = vsel %vm567, %v506, 0
    %v596 = vsel %vm567, %v507, 0
    %v599 = vsel %vm567, %v508, 0
    %v602 = vsel %vm567, %v509, 0
    %v605 = vsel %vm567, %v510, 0
    %v608 = vsel %vm567, %v511, 0
    %v611 = vsel %vm567, %v512, 0
    %v614 = vsel %vm567, %v513, 0
    %v617 = vsel %vm567, %v514, 0
    %v620 = vsel %vm567, %v515, 0
    %v623 = vsel %vm567, %v516, 0
    %v626 = vsel %vm567, %v517, 0
    %v629 = vsel %vm567, %v518, 0
    %v632 = vsel %vm567, %v519, 0
    %v635 = vsel %vm567, %v520, 0
    %v638 = vsel %vm567, %v521, 0
    %v641 = vsel %vm567, %v522, 0
    %v644 = vsel %vm567, %v523, 0
    %v647 = vsel %vm567, %v524, 0
    %v650 = vsel %vm567, %v525, 0
    %v653 = vsel %vm567, %v526, 0
    %v656 = vsel %vm567, %v527, 0
    %v659 = vsel %vm567, %v528, 0
    %v662 = vsel %vm567, %v529, 0
    %v665 = vsel %vm567, %v530, 0
    %v668 = vsel %vm567, %v531, 0
    %v671 = vsel %vm567, %v532, 0
    %v674 = vsel %vm567, %v533, 0
    %v677 = vsel %vm567, %v534, 0
    %v680 = vsel %vm567, %v535, 0
    %v683 = vsel %vm567, %v536, 0
    %v686 = vsel %vm567, %v537, 0
    %v689 = vsel %vm567, %v538, 0
    %v692 = vsel %vm567, %v539, 0
    %v695 = vsel %vm567, %v540, 0
    %v698 = vsel %vm567, %v541, 0
    %v701 = vsel %vm567, %v542, 0
    %v704 = vsel %vm567, %v543, 0
    %v707 = vsel %vm567, %v544, 0
    %v710 = vsel %vm567, %v545, 0
    %v713 = vsel %vm567, %v546, 0
    %v716 = vsel %vm567, %v547, 0
    %v719 = vsel %vm567, %v548, 0
    %v722 = vsel %vm567, %v549, 0
    %v725 = vsel %vm567, %v550, 0
    %v728 = vsel %vm567, %v551, 0
    %v731 = vsel %vm567, %v552, 0
    %v734 = vsel %vm567, %v553, 0
    %v737 = vsel %vm567, %v554, 0
    %v740 = vsel %vm567, %v555, 0
    %v743 = vsel %vm567, %v556, 0
    %v746 = vsel %vm567, %v557, 0
    %v749 = vsel %vm567, %v558, 0
    %v752 = vsel %vm567, %v559, 0
    %v755 = vsel %vm567, %v560, 0
    %v758 = vsel %vm567, %v561, 0
    %vm760 = vcmask 1043456
    %v762 = vsel %vm760, %v562, 0
    %764 = vmatpush.msra.mxu0 0.0
    %765 = vmatpush.msra.mxu0 0.0
    %766 = vmatpush.msra.mxu0 0.0
    %767 = vmatpush.msra.mxu0 0.0
    %768 = vmatpush.msra.mxu0 0.0
    %769 = vmatpush.msra.mxu0 0.0
    %770 = vmatpush.msra.mxu0 0.0
    %771 = vmatpush.msra.mxu0 0.0
    %772 = vmatpush.msra.mxu0 0.0
    %773 = vmatpush.msra.mxu0 0.0
    %774 = vmatpush.msra.mxu0 0.0
    %775 = vmatpush.msra.mxu0 0.0
    %776 = vmatpush.msra.mxu0 0.0
    %777 = vmatpush.msra.mxu0 0.0
    %778 = vmatpush.msra.mxu0 0.0
    %779 = vmatpush.msra.mxu0 %v762
    %780 = vmatmul.f32.gmra.mxu0 %v569
    %v781 = vpop.f32.mrf.mxu0
    %v782 = vadd.f32 %v565, %v781
    %783 = vmatmul.f32.gmra.mxu0 %v572
    %v784 = vpop.f32.mrf.mxu0
    %v785 = vadd.f32 %v565, %v784
    %786 = vmatmul.f32.gmra.mxu0 %v575
    %v787 = vpop.f32.mrf.mxu0
    %v788 = vadd.f32 %v565, %v787
    %789 = vmatmul.f32.gmra.mxu0 %v578
    %v790 = vpop.f32.mrf.mxu0
    %v791 = vadd.f32 %v565, %v790
    %792 = vmatmul.f32.gmra.mxu0 %v581
    %v793 = vpop.f32.mrf.mxu0
    %v794 = vadd.f32 %v565, %v793
    %795 = vmatmul.f32.gmra.mxu0 %v584
    %v796 = vpop.f32.mrf.mxu0
    %v797 = vadd.f32 %v565, %v796
    %798 = vmatmul.f32.gmra.mxu0 %v587
    %v799 = vpop.f32.mrf.mxu0
    %v800 = vadd.f32 %v565, %v799
    %801 = vmatmul.f32.gmra.mxu0 %v590
    %v802 = vpop.f32.mrf.mxu0
    %v803 = vadd.f32 %v565, %v802
    %804 = vmatmul.f32.gmra.mxu0 %v593
    %v805 = vpop.f32.mrf.mxu0
    %v806 = vadd.f32 %v565, %v805
    %807 = vmatmul.f32.gmra.mxu0 %v596
    %v808 = vpop.f32.mrf.mxu0
    %v809 = vadd.f32 %v565, %v808
    %810 = vmatmul.f32.gmra.mxu0 %v599
    %v811 = vpop.f32.mrf.mxu0
    %v812 = vadd.f32 %v565, %v811
    %813 = vmatmul.f32.gmra.mxu0 %v602
    %v814 = vpop.f32.mrf.mxu0
    %v815 = vadd.f32 %v565, %v814
    %816 = vmatmul.f32.gmra.mxu0 %v605
    %v817 = vpop.f32.mrf.mxu0
    %v818 = vadd.f32 %v565, %v817
    %819 = vmatmul.f32.gmra.mxu0 %v608
    %v820 = vpop.f32.mrf.mxu0
    %v821 = vadd.f32 %v565, %v820
    %822 = vmatmul.f32.gmra.mxu0 %v611
    %v823 = vpop.f32.mrf.mxu0
    %v824 = vadd.f32 %v565, %v823
    %825 = vmatmul.f32.gmra.mxu0 %v614
    %v826 = vpop.f32.mrf.mxu0
    %v827 = vadd.f32 %v565, %v826
    %828 = vmatmul.f32.gmra.mxu0 %v617
    %v829 = vpop.f32.mrf.mxu0
    %v830 = vadd.f32 %v565, %v829
    %831 = vmatmul.f32.gmra.mxu0 %v620
    %v832 = vpop.f32.mrf.mxu0
    %v833 = vadd.f32 %v565, %v832
    %834 = vmatmul.f32.gmra.mxu0 %v623
    %v835 = vpop.f32.mrf.mxu0
    %v836 = vadd.f32 %v565, %v835
    %837 = vmatmul.f32.gmra.mxu0 %v626
    %v838 = vpop.f32.mrf.mxu0
    %v839 = vadd.f32 %v565, %v838
    %840 = vmatmul.f32.gmra.mxu0 %v629
    %v841 = vpop.f32.mrf.mxu0
    %v842 = vadd.f32 %v565, %v841
    %843 = vmatmul.f32.gmra.mxu0 %v632
    %v844 = vpop.f32.mrf.mxu0
    %v845 = vadd.f32 %v565, %v844
    %846 = vmatmul.f32.gmra.mxu0 %v635
    %v847 = vpop.f32.mrf.mxu0
    %v848 = vadd.f32 %v565, %v847
    %849 = vmatmul.f32.gmra.mxu0 %v638
    %v850 = vpop.f32.mrf.mxu0
    %v851 = vadd.f32 %v565, %v850
    %852 = vmatmul.f32.gmra.mxu0 %v641
    %v853 = vpop.f32.mrf.mxu0
    %v854 = vadd.f32 %v565, %v853
    %855 = vmatmul.f32.gmra.mxu0 %v644
    %v856 = vpop.f32.mrf.mxu0
    %v857 = vadd.f32 %v565, %v856
    %858 = vmatmul.f32.gmra.mxu0 %v647
    %v859 = vpop.f32.mrf.mxu0
    %v860 = vadd.f32 %v565, %v859
    %861 = vmatmul.f32.gmra.mxu0 %v650
    %v862 = vpop.f32.mrf.mxu0
    %v863 = vadd.f32 %v565, %v862
    %864 = vmatmul.f32.gmra.mxu0 %v653
    %v865 = vpop.f32.mrf.mxu0
    %v866 = vadd.f32 %v565, %v865
    %867 = vmatmul.f32.gmra.mxu0 %v656
    %v868 = vpop.f32.mrf.mxu0
    %v869 = vadd.f32 %v565, %v868
    %870 = vmatmul.f32.gmra.mxu0 %v659
    %v871 = vpop.f32.mrf.mxu0
    %v872 = vadd.f32 %v565, %v871
    %873 = vmatmul.f32.gmra.mxu0 %v662
    %v874 = vpop.f32.mrf.mxu0
    %v875 = vadd.f32 %v565, %v874
    %876 = vmatmul.f32.gmra.mxu0 %v665
    %v877 = vpop.f32.mrf.mxu0
    %v878 = vadd.f32 %v565, %v877
    %879 = vmatmul.f32.gmra.mxu0 %v668
    %v880 = vpop.f32.mrf.mxu0
    %v881 = vadd.f32 %v565, %v880
    %882 = vmatmul.f32.gmra.mxu0 %v671
    %v883 = vpop.f32.mrf.mxu0
    %v884 = vadd.f32 %v565, %v883
    %885 = vmatmul.f32.gmra.mxu0 %v674
    %v886 = vpop.f32.mrf.mxu0
    %v887 = vadd.f32 %v565, %v886
    %888 = vmatmul.f32.gmra.mxu0 %v677
    %v889 = vpop.f32.mrf.mxu0
    %v890 = vadd.f32 %v565, %v889
    %891 = vmatmul.f32.gmra.mxu0 %v680
    %v892 = vpop.f32.mrf.mxu0
    %v893 = vadd.f32 %v565, %v892
    %894 = vmatmul.f32.gmra.mxu0 %v683
    %v895 = vpop.f32.mrf.mxu0
    %v896 = vadd.f32 %v565, %v895
    %897 = vmatmul.f32.gmra.mxu0 %v686
    %v898 = vpop.f32.mrf.mxu0
    %v899 = vadd.f32 %v565, %v898
    %900 = vmatmul.f32.gmra.mxu0 %v689
    %v901 = vpop.f32.mrf.mxu0
    %v902 = vadd.f32 %v565, %v901
    %903 = vmatmul.f32.gmra.mxu0 %v692
    %v904 = vpop.f32.mrf.mxu0
    %v905 = vadd.f32 %v565, %v904
    %906 = vmatmul.f32.gmra.mxu0 %v695
    %v907 = vpop.f32.mrf.mxu0
    %v908 = vadd.f32 %v565, %v907
    %909 = vmatmul.f32.gmra.mxu0 %v698
    %v910 = vpop.f32.mrf.mxu0
    %v911 = vadd.f32 %v565, %v910
    %912 = vmatmul.f32.gmra.mxu0 %v701
    %v913 = vpop.f32.mrf.mxu0
    %v914 = vadd.f32 %v565, %v913
    %915 = vmatmul.f32.gmra.mxu0 %v704
    %v916 = vpop.f32.mrf.mxu0
    %v917 = vadd.f32 %v565, %v916
    %918 = vmatmul.f32.gmra.mxu0 %v707
    %v919 = vpop.f32.mrf.mxu0
    %v920 = vadd.f32 %v565, %v919
    %921 = vmatmul.f32.gmra.mxu0 %v710
    %v922 = vpop.f32.mrf.mxu0
    %v923 = vadd.f32 %v565, %v922
    %924 = vmatmul.f32.gmra.mxu0 %v713
    %v925 = vpop.f32.mrf.mxu0
    %v926 = vadd.f32 %v565, %v925
    %927 = vmatmul.f32.gmra.mxu0 %v716
    %v928 = vpop.f32.mrf.mxu0
    %v929 = vadd.f32 %v565, %v928
    %930 = vmatmul.f32.gmra.mxu0 %v719
    %v931 = vpop.f32.mrf.mxu0
    %v932 = vadd.f32 %v565, %v931
    %933 = vmatmul.f32.gmra.mxu0 %v722
    %v934 = vpop.f32.mrf.mxu0
    %v935 = vadd.f32 %v565, %v934
    %936 = vmatmul.f32.gmra.mxu0 %v725
    %v937 = vpop.f32.mrf.mxu0
    %v938 = vadd.f32 %v565, %v937
    %939 = vmatmul.f32.gmra.mxu0 %v728
    %v940 = vpop.f32.mrf.mxu0
    %v941 = vadd.f32 %v565, %v940
    %942 = vmatmul.f32.gmra.mxu0 %v731
    %v943 = vpop.f32.mrf.mxu0
    %v944 = vadd.f32 %v565, %v943
    %945 = vmatmul.f32.gmra.mxu0 %v734
    %v946 = vpop.f32.mrf.mxu0
    %v947 = vadd.f32 %v565, %v946
    %948 = vmatmul.f32.gmra.mxu0 %v737
    %v949 = vpop.f32.mrf.mxu0
    %v950 = vadd.f32 %v565, %v949
    %951 = vmatmul.f32.gmra.mxu0 %v740
    %v952 = vpop.f32.mrf.mxu0
    %v953 = vadd.f32 %v565, %v952
    %954 = vmatmul.f32.gmra.mxu0 %v743
    %v955 = vpop.f32.mrf.mxu0
    %v956 = vadd.f32 %v565, %v955
    %957 = vmatmul.f32.gmra.mxu0 %v746
    %v958 = vpop.f32.mrf.mxu0
    %v959 = vadd.f32 %v565, %v958
    %960 = vmatmul.f32.gmra.mxu0 %v749
    %v961 = vpop.f32.mrf.mxu0
    %v962 = vadd.f32 %v565, %v961
    %963 = vmatmul.f32.gmra.mxu0 %v752
    %v964 = vpop.f32.mrf.mxu0
    %v965 = vadd.f32 %v565, %v964
    %966 = vmatmul.f32.gmra.mxu0 %v755
    %v967 = vpop.f32.mrf.mxu0
    %v968 = vadd.f32 %v565, %v967
    %969 = vmatmul.f32.gmra.mxu0 %v758
    %v970 = vpop.f32.mrf.mxu0
    %v971 = vadd.f32 %v565, %v970
    %972 = vdwg.mxu0
    %v973 = vmax.f32 %v782, 0.0
    %v974 = vmax.f32 %v785, 0.0
    %v975 = vmax.f32 %v788, 0.0
    %v976 = vmax.f32 %v791, 0.0
    %v977 = vmax.f32 %v794, 0.0
    %v978 = vmax.f32 %v797, 0.0
    %v979 = vmax.f32 %v800, 0.0
    %v980 = vmax.f32 %v803, 0.0
    %v981 = vmax.f32 %v806, 0.0
    %v982 = vmax.f32 %v809, 0.0
    %v983 = vmax.f32 %v812, 0.0
    %v984 = vmax.f32 %v815, 0.0
    %v985 = vmax.f32 %v818, 0.0
    %v986 = vmax.f32 %v821, 0.0
    %v987 = vmax.f32 %v824, 0.0
    %v988 = vmax.f32 %v827, 0.0
    %v989 = vmax.f32 %v830, 0.0
    %v990 = vmax.f32 %v833, 0.0
    %v991 = vmax.f32 %v836, 0.0
    %v992 = vmax.f32 %v839, 0.0
    %v993 = vmax.f32 %v842, 0.0
    %v994 = vmax.f32 %v845, 0.0
    %v995 = vmax.f32 %v848, 0.0
    %v996 = vmax.f32 %v851, 0.0
    %v997 = vmax.f32 %v854, 0.0
    %v998 = vmax.f32 %v857, 0.0
    %v999 = vmax.f32 %v860, 0.0
    %v1000 = vmax.f32 %v863, 0.0
    %v1001 = vmax.f32 %v866, 0.0
    %v1002 = vmax.f32 %v869, 0.0
    %v1003 = vmax.f32 %v872, 0.0
    %v1004 = vmax.f32 %v875, 0.0
    %v1005 = vmax.f32 %v878, 0.0
    %v1006 = vmax.f32 %v881, 0.0
    %v1007 = vmax.f32 %v884, 0.0
    %v1008 = vmax.f32 %v887, 0.0
    %v1009 = vmax.f32 %v890, 0.0
    %v1010 = vmax.f32 %v893, 0.0
    %v1011 = vmax.f32 %v896, 0.0
    %v1012 = vmax.f32 %v899, 0.0
    %v1013 = vmax.f32 %v902, 0.0
    %v1014 = vmax.f32 %v905, 0.0
    %v1015 = vmax.f32 %v908, 0.0
    %v1016 = vmax.f32 %v911, 0.0
    %v1017 = vmax.f32 %v914, 0.0
    %v1018 = vmax.f32 %v917, 0.0
    %v1019 = vmax.f32 %v920, 0.0
    %v1020 = vmax.f32 %v923, 0.0
    %v1021 = vmax.f32 %v926, 0.0
    %v1022 = vmax.f32 %v929, 0.0
    %v1023 = vmax.f32 %v932, 0.0
    %v1024 = vmax.f32 %v935, 0.0
    %v1025 = vmax.f32 %v938, 0.0
    %v1026 = vmax.f32 %v941, 0.0
    %v1027 = vmax.f32 %v944, 0.0
    %v1028 = vmax.f32 %v947, 0.0
    %v1029 = vmax.f32 %v950, 0.0
    %v1030 = vmax.f32 %v953, 0.0
    %v1031 = vmax.f32 %v956, 0.0
    %v1032 = vmax.f32 %v959, 0.0
    %v1033 = vmax.f32 %v962, 0.0
    %v1034 = vmax.f32 %v965, 0.0
    %v1035 = vmax.f32 %v968, 0.0
    %v1036 = vmax.f32 %v971, 0.0
    %1037 = vst.msk [vmem:[#allocation3] sm:$0xff] %vm96, %v973
    %1038 = vst.msk [vmem:[#allocation3 + $0x8] sm:$0xff] %vm96, %v974
    %1039 = vst.msk [vmem:[#allocation3 + $0x10] sm:$0xff] %vm96, %v975
    %1040 = vst.msk [vmem:[#allocation3 + $0x18] sm:$0xff] %vm96, %v976
    %1041 = vst.msk [vmem:[#allocation3 + $0x20] sm:$0xff] %vm96, %v977
    %1042 = vst.msk [vmem:[#allocation3 + $0x28] sm:$0xff] %vm96, %v978
    %1043 = vst.msk [vmem:[#allocation3 + $0x30] sm:$0xff] %vm96, %v979
    %1044 = vst.msk [vmem:[#allocation3 + $0x38] sm:$0xff] %vm96, %v980
    %1045 = vst.msk [vmem:[#allocation3 + $0x40] sm:$0xff] %vm96, %v981
    %1046 = vst.msk [vmem:[#allocation3 + $0x48] sm:$0xff] %vm96, %v982
    %1047 = vst.msk [vmem:[#allocation3 + $0x50] sm:$0xff] %vm96, %v983
    %1048 = vst.msk [vmem:[#allocation3 + $0x58] sm:$0xff] %vm96, %v984
    %1049 = vst.msk [vmem:[#allocation3 + $0x60] sm:$0xff] %vm96, %v985
    %1050 = vst.msk [vmem:[#allocation3 + $0x68] sm:$0xff] %vm96, %v986
    %1051 = vst.msk [vmem:[#allocation3 + $0x70] sm:$0xff] %vm96, %v987
    %1052 = vst.msk [vmem:[#allocation3 + $0x78] sm:$0xff] %vm96, %v988
    %1053 = vst.msk [vmem:[#allocation3 + $0x80] sm:$0xff] %vm96, %v989
    %1054 = vst.msk [vmem:[#allocation3 + $0x88] sm:$0xff] %vm96, %v990
    %1055 = vst.msk [vmem:[#allocation3 + $0x90] sm:$0xff] %vm96, %v991
    %1056 = vst.msk [vmem:[#allocation3 + $0x98] sm:$0xff] %vm96, %v992
    %1057 = vst.msk [vmem:[#allocation3 + $0xa0] sm:$0xff] %vm96, %v993
    %1058 = vst.msk [vmem:[#allocation3 + $0xa8] sm:$0xff] %vm96, %v994
    %1059 = vst.msk [vmem:[#allocation3 + $0xb0] sm:$0xff] %vm96, %v995
    %1060 = vst.msk [vmem:[#allocation3 + $0xb8] sm:$0xff] %vm96, %v996
    %1061 = vst.msk [vmem:[#allocation3 + $0xc0] sm:$0xff] %vm96, %v997
    %1062 = vst.msk [vmem:[#allocation3 + $0xc8] sm:$0xff] %vm96, %v998
    %1063 = vst.msk [vmem:[#allocation3 + $0xd0] sm:$0xff] %vm96, %v999
    %1064 = vst.msk [vmem:[#allocation3 + $0xd8] sm:$0xff] %vm96, %v1000
    %1065 = vst.msk [vmem:[#allocation3 + $0xe0] sm:$0xff] %vm96, %v1001
    %1066 = vst.msk [vmem:[#allocation3 + $0xe8] sm:$0xff] %vm96, %v1002
    %1067 = vst.msk [vmem:[#allocation3 + $0xf0] sm:$0xff] %vm96, %v1003
    %1068 = vst.msk [vmem:[#allocation3 + $0xf8] sm:$0xff] %vm96, %v1004
    %1069 = vst.msk [vmem:[#allocation3 + $0x100] sm:$0xff] %vm96, %v1005
    %1070 = vst.msk [vmem:[#allocation3 + $0x108] sm:$0xff] %vm96, %v1006
    %1071 = vst.msk [vmem:[#allocation3 + $0x110] sm:$0xff] %vm96, %v1007
    %1072 = vst.msk [vmem:[#allocation3 + $0x118] sm:$0xff] %vm96, %v1008
    %1073 = vst.msk [vmem:[#allocation3 + $0x120] sm:$0xff] %vm96, %v1009
    %1074 = vst.msk [vmem:[#allocation3 + $0x128] sm:$0xff] %vm96, %v1010
    %1075 = vst.msk [vmem:[#allocation3 + $0x130] sm:$0xff] %vm96, %v1011
    %1076 = vst.msk [vmem:[#allocation3 + $0x138] sm:$0xff] %vm96, %v1012
    %1077 = vst.msk [vmem:[#allocation3 + $0x140] sm:$0xff] %vm96, %v1013
    %1078 = vst.msk [vmem:[#allocation3 + $0x148] sm:$0xff] %vm96, %v1014
    %1079 = vst.msk [vmem:[#allocation3 + $0x150] sm:$0xff] %vm96, %v1015
    %1080 = vst.msk [vmem:[#allocation3 + $0x158] sm:$0xff] %vm96, %v1016
    %1081 = vst.msk [vmem:[#allocation3 + $0x160] sm:$0xff] %vm96, %v1017
    %1082 = vst.msk [vmem:[#allocation3 + $0x168] sm:$0xff] %vm96, %v1018
    %1083 = vst.msk [vmem:[#allocation3 + $0x170] sm:$0xff] %vm96, %v1019
    %1084 = vst.msk [vmem:[#allocation3 + $0x178] sm:$0xff] %vm96, %v1020
    %1085 = vst.msk [vmem:[#allocation3 + $0x180] sm:$0xff] %vm96, %v1021
    %1086 = vst.msk [vmem:[#allocation3 + $0x188] sm:$0xff] %vm96, %v1022
    %1087 = vst.msk [vmem:[#allocation3 + $0x190] sm:$0xff] %vm96, %v1023
    %1088 = vst.msk [vmem:[#allocation3 + $0x198] sm:$0xff] %vm96, %v1024
    %1089 = vst.msk [vmem:[#allocation3 + $0x1a0] sm:$0xff] %vm96, %v1025
    %1090 = vst.msk [vmem:[#allocation3 + $0x1a8] sm:$0xff] %vm96, %v1026
    %1091 = vst.msk [vmem:[#allocation3 + $0x1b0] sm:$0xff] %vm96, %v1027
    %1092 = vst.msk [vmem:[#allocation3 + $0x1b8] sm:$0xff] %vm96, %v1028
    %1093 = vst.msk [vmem:[#allocation3 + $0x1c0] sm:$0xff] %vm96, %v1029
    %1094 = vst.msk [vmem:[#allocation3 + $0x1c8] sm:$0xff] %vm96, %v1030
    %1095 = vst.msk [vmem:[#allocation3 + $0x1d0] sm:$0xff] %vm96, %v1031
    %1096 = vst.msk [vmem:[#allocation3 + $0x1d8] sm:$0xff] %vm96, %v1032
    %1097 = vst.msk [vmem:[#allocation3 + $0x1e0] sm:$0xff] %vm96, %v1033
    %1098 = vst.msk [vmem:[#allocation3 + $0x1e8] sm:$0xff] %vm96, %v1034
    %1099 = vst.msk [vmem:[#allocation3 + $0x1f0] sm:$0xff] %vm96, %v1035
    %1100 = vst.msk [vmem:[#allocation3 + $0x1f8] sm:$0xff] %vm96, %v1036
    %1101 = vst.msk [vmem:[#allocation2] sm:$0xff] %vm567, 0.0
    %1102 = vst.msk [vmem:[#allocation2 + $0x8] sm:$0xff] %vm567, 0.0
    %vm1103 = vcmask 25600
    %1104 = vst.msk [vmem:[#allocation2 + $0x10] sm:$0x3] %vm1103, 0.0
    %1105 = vst.msk [vmem:[#allocation2 + $0x1b0] sm:$0xff] %vm567, 0.0
    %1106 = vst.msk [vmem:[#allocation2 + $0x1b8] sm:$0xff] %vm567, 0.0
    %1107 = vst.msk [vmem:[#allocation2 + $0x1c0] sm:$0x3] %vm1103, 0.0
    %s1108 = scalar_lea.vmem [#allocation2], 408
    %1109 = vst.msk [vmem:[%s1108] sm:$0xff] %vm567, 0.0
    %1110 = vst.msk [vmem:[%s1108 + $0x8] sm:$0xff] %vm567, 0.0
    %1111 = vst.msk [vmem:[%s1108 + $0x10] sm:$0x3] %vm1103, 0.0
    %1112 = vst.msk [vmem:[%s1108 + $0x1b0] sm:$0xff] %vm567, 0.0
    %1113 = vst.msk [vmem:[%s1108 + $0x1b8] sm:$0xff] %vm567, 0.0
    %1114 = vst.msk [vmem:[%s1108 + $0x1c0] sm:$0x3] %vm1103, 0.0
    %s1115 = scalar_lea.vmem [#allocation2], 24
    %vm1116 = vcmask 24576
    %1117 = vst.msk [vmem:[%s1115] sm:$0x1] %vm1116, 0.0
    %1118 = vst.msk [vmem:[%s1115 + $0x18] sm:$0x1] %vm1116, 0.0
    %1119 = vst.msk [vmem:[%s1115 + $0x30] sm:$0x1] %vm1116, 0.0
    %1120 = vst.msk [vmem:[%s1115 + $0x48] sm:$0x1] %vm1116, 0.0
    %1121 = vst.msk [vmem:[%s1115 + $0x60] sm:$0x1] %vm1116, 0.0
    %1122 = vst.msk [vmem:[%s1115 + $0x78] sm:$0x1] %vm1116, 0.0
    %1123 = vst.msk [vmem:[%s1115 + $0x90] sm:$0x1] %vm1116, 0.0
    %1124 = vst.msk [vmem:[%s1115 + $0xa8] sm:$0x1] %vm1116, 0.0
    %1125 = vst.msk [vmem:[%s1115 + $0xc0] sm:$0x1] %vm1116, 0.0
    %1126 = vst.msk [vmem:[%s1115 + $0xd8] sm:$0x1] %vm1116, 0.0
    %1127 = vst.msk [vmem:[%s1115 + $0xf0] sm:$0x1] %vm1116, 0.0
    %1128 = vst.msk [vmem:[%s1115 + $0x108] sm:$0x1] %vm1116, 0.0
    %1129 = vst.msk [vmem:[%s1115 + $0x120] sm:$0x1] %vm1116, 0.0
    %1130 = vst.msk [vmem:[%s1115 + $0x138] sm:$0x1] %vm1116, 0.0
    %1131 = vst.msk [vmem:[%s1115 + $0x150] sm:$0x1] %vm1116, 0.0
    %1132 = vst.msk [vmem:[%s1115 + $0x168] sm:$0x1] %vm1116, 0.0
    %1133 = vst.msk [vmem:[%s1115 + $0x1b0] sm:$0x1] %vm1116, 0.0
    %1134 = vst.msk [vmem:[%s1115 + $0x1c8] sm:$0x1] %vm1116, 0.0
    %1135 = vst.msk [vmem:[%s1115 + $0x1e0] sm:$0x1] %vm1116, 0.0
    %1136 = vst.msk [vmem:[%s1115 + $0x1f8] sm:$0x1] %vm1116, 0.0
    %1137 = vst.msk [vmem:[%s1115 + $0x210] sm:$0x1] %vm1116, 0.0
    %1138 = vst.msk [vmem:[%s1115 + $0x228] sm:$0x1] %vm1116, 0.0
    %1139 = vst.msk [vmem:[%s1115 + $0x240] sm:$0x1] %vm1116, 0.0
    %1140 = vst.msk [vmem:[%s1115 + $0x258] sm:$0x1] %vm1116, 0.0
    %1141 = vst.msk [vmem:[%s1115 + $0x270] sm:$0x1] %vm1116, 0.0
    %1142 = vst.msk [vmem:[%s1115 + $0x288] sm:$0x1] %vm1116, 0.0
    %1143 = vst.msk [vmem:[%s1115 + $0x2a0] sm:$0x1] %vm1116, 0.0
    %1144 = vst.msk [vmem:[%s1115 + $0x2b8] sm:$0x1] %vm1116, 0.0
    %1145 = vst.msk [vmem:[%s1115 + $0x2d0] sm:$0x1] %vm1116, 0.0
    %1146 = vst.msk [vmem:[%s1115 + $0x2e8] sm:$0x1] %vm1116, 0.0
    %1147 = vst.msk [vmem:[%s1115 + $0x300] sm:$0x1] %vm1116, 0.0
    %1148 = vst.msk [vmem:[%s1115 + $0x318] sm:$0x1] %vm1116, 0.0
    %1149 = vst.msk [vmem:[%s1115 + $0x11] sm:$0x1] %vm1116, 0.0
    %1150 = vst.msk [vmem:[%s1115 + $0x29] sm:$0x1] %vm1116, 0.0
    %1151 = vst.msk [vmem:[%s1115 + $0x41] sm:$0x1] %vm1116, 0.0
    %1152 = vst.msk [vmem:[%s1115 + $0x59] sm:$0x1] %vm1116, 0.0
    %1153 = vst.msk [vmem:[%s1115 + $0x71] sm:$0x1] %vm1116, 0.0
    %1154 = vst.msk [vmem:[%s1115 + $0x89] sm:$0x1] %vm1116, 0.0
    %1155 = vst.msk [vmem:[%s1115 + $0xa1] sm:$0x1] %vm1116, 0.0
    %1156 = vst.msk [vmem:[%s1115 + $0xb9] sm:$0x1] %vm1116, 0.0
    %1157 = vst.msk [vmem:[%s1115 + $0xd1] sm:$0x1] %vm1116, 0.0
    %1158 = vst.msk [vmem:[%s1115 + $0xe9] sm:$0x1] %vm1116, 0.0
    %1159 = vst.msk [vmem:[%s1115 + $0x101] sm:$0x1] %vm1116, 0.0
    %1160 = vst.msk [vmem:[%s1115 + $0x119] sm:$0x1] %vm1116, 0.0
    %1161 = vst.msk [vmem:[%s1115 + $0x131] sm:$0x1] %vm1116, 0.0
    %1162 = vst.msk [vmem:[%s1115 + $0x149] sm:$0x1] %vm1116, 0.0
    %1163 = vst.msk [vmem:[%s1115 + $0x161] sm:$0x1] %vm1116, 0.0
    %1164 = vst.msk [vmem:[%s1115 + $0x179] sm:$0x1] %vm1116, 0.0
    %1165 = vst.msk [vmem:[%s1115 + $0x1c1] sm:$0x1] %vm1116, 0.0
    %1166 = vst.msk [vmem:[%s1115 + $0x1d9] sm:$0x1] %vm1116, 0.0
    %1167 = vst.msk [vmem:[%s1115 + $0x1f1] sm:$0x1] %vm1116, 0.0
    %1168 = vst.msk [vmem:[%s1115 + $0x209] sm:$0x1] %vm1116, 0.0
    %1169 = vst.msk [vmem:[%s1115 + $0x221] sm:$0x1] %vm1116, 0.0
    %1170 = vst.msk [vmem:[%s1115 + $0x239] sm:$0x1] %vm1116, 0.0
    %1171 = vst.msk [vmem:[%s1115 + $0x251] sm:$0x1] %vm1116, 0.0
    %1172 = vst.msk [vmem:[%s1115 + $0x269] sm:$0x1] %vm1116, 0.0
    %1173 = vst.msk [vmem:[%s1115 + $0x281] sm:$0x1] %vm1116, 0.0
    %1174 = vst.msk [vmem:[%s1115 + $0x299] sm:$0x1] %vm1116, 0.0
    %1175 = vst.msk [vmem:[%s1115 + $0x2b1] sm:$0x1] %vm1116, 0.0
    %1176 = vst.msk [vmem:[%s1115 + $0x2c9] sm:$0x1] %vm1116, 0.0
    %1177 = vst.msk [vmem:[%s1115 + $0x2e1] sm:$0x1] %vm1116, 0.0
    %1178 = vst.msk [vmem:[%s1115 + $0x2f9] sm:$0x1] %vm1116, 0.0
    %1179 = vst.msk [vmem:[%s1115 + $0x311] sm:$0x1] %vm1116, 0.0
    %1180 = vst.msk [vmem:[%s1115 + $0x329] sm:$0x1] %vm1116, 0.0
    %1181 = vst.msk [vmem:[%s1115 + $0x1] sm:$0xff] %vm567, %v498
    %1182 = vst.msk [vmem:[%s1115 + $0x9] sm:$0xff] %vm567, %v499
    %1183 = vst.msk [vmem:[%s1115 + $0x19] sm:$0xff] %vm567, %v500
    %1184 = vst.msk [vmem:[%s1115 + $0x21] sm:$0xff] %vm567, %v501
    %1185 = vst.msk [vmem:[%s1115 + $0x31] sm:$0xff] %vm567, %v502
    %1186 = vst.msk [vmem:[%s1115 + $0x39] sm:$0xff] %vm567, %v503
    %1187 = vst.msk [vmem:[%s1115 + $0x49] sm:$0xff] %vm567, %v504
    %1188 = vst.msk [vmem:[%s1115 + $0x51] sm:$0xff] %vm567, %v505
    %1189 = vst.msk [vmem:[%s1115 + $0x61] sm:$0xff] %vm567, %v506
    %1190 = vst.msk [vmem:[%s1115 + $0x69] sm:$0xff] %vm567, %v507
    %1191 = vst.msk [vmem:[%s1115 + $0x79] sm:$0xff] %vm567, %v508
    %1192 = vst.msk [vmem:[%s1115 + $0x81] sm:$0xff] %vm567, %v509
    %1193 = vst.msk [vmem:[%s1115 + $0x91] sm:$0xff] %vm567, %v510
    %1194 = vst.msk [vmem:[%s1115 + $0x99] sm:$0xff] %vm567, %v511
    %1195 = vst.msk [vmem:[%s1115 + $0xa9] sm:$0xff] %vm567, %v512
    %1196 = vst.msk [vmem:[%s1115 + $0xb1] sm:$0xff] %vm567, %v513
    %1197 = vst.msk [vmem:[%s1115 + $0xc1] sm:$0xff] %vm567, %v514
    %1198 = vst.msk [vmem:[%s1115 + $0xc9] sm:$0xff] %vm567, %v515
    %1199 = vst.msk [vmem:[%s1115 + $0xd9] sm:$0xff] %vm567, %v516
    %1200 = vst.msk [vmem:[%s1115 + $0xe1] sm:$0xff] %vm567, %v517
    %1201 = vst.msk [vmem:[%s1115 + $0xf1] sm:$0xff] %vm567, %v518
    %1202 = vst.msk [vmem:[%s1115 + $0xf9] sm:$0xff] %vm567, %v519
    %1203 = vst.msk [vmem:[%s1115 + $0x109] sm:$0xff] %vm567, %v520
    %1204 = vst.msk [vmem:[%s1115 + $0x111] sm:$0xff] %vm567, %v521
    %1205 = vst.msk [vmem:[%s1115 + $0x121] sm:$0xff] %vm567, %v522
    %1206 = vst.msk [vmem:[%s1115 + $0x129] sm:$0xff] %vm567, %v523
    %1207 = vst.msk [vmem:[%s1115 + $0x139] sm:$0xff] %vm567, %v524
    %1208 = vst.msk [vmem:[%s1115 + $0x141] sm:$0xff] %vm567, %v525
    %1209 = vst.msk [vmem:[%s1115 + $0x151] sm:$0xff] %vm567, %v526
    %1210 = vst.msk [vmem:[%s1115 + $0x159] sm:$0xff] %vm567, %v527
    %1211 = vst.msk [vmem:[%s1115 + $0x169] sm:$0xff] %vm567, %v528
    %1212 = vst.msk [vmem:[%s1115 + $0x171] sm:$0xff] %vm567, %v529
    %1213 = vst.msk [vmem:[%s1115 + $0x1b1] sm:$0xff] %vm567, %v530
    %1214 = vst.msk [vmem:[%s1115 + $0x1b9] sm:$0xff] %vm567, %v531
    %1215 = vst.msk [vmem:[%s1115 + $0x1c9] sm:$0xff] %vm567, %v532
    %1216 = vst.msk [vmem:[%s1115 + $0x1d1] sm:$0xff] %vm567, %v533
    %1217 = vst.msk [vmem:[%s1115 + $0x1e1] sm:$0xff] %vm567, %v534
    %1218 = vst.msk [vmem:[%s1115 + $0x1e9] sm:$0xff] %vm567, %v535
    %1219 = vst.msk [vmem:[%s1115 + $0x1f9] sm:$0xff] %vm567, %v536
    %1220 = vst.msk [vmem:[%s1115 + $0x201] sm:$0xff] %vm567, %v537
    %1221 = vst.msk [vmem:[%s1115 + $0x211] sm:$0xff] %vm567, %v538
    %1222 = vst.msk [vmem:[%s1115 + $0x219] sm:$0xff] %vm567, %v539
    %1223 = vst.msk [vmem:[%s1115 + $0x229] sm:$0xff] %vm567, %v540
    %1224 = vst.msk [vmem:[%s1115 + $0x231] sm:$0xff] %vm567, %v541
    %1225 = vst.msk [vmem:[%s1115 + $0x241] sm:$0xff] %vm567, %v542
    %1226 = vst.msk [vmem:[%s1115 + $0x249] sm:$0xff] %vm567, %v543
    %1227 = vst.msk [vmem:[%s1115 + $0x259] sm:$0xff] %vm567, %v544
    %1228 = vst.msk [vmem:[%s1115 + $0x261] sm:$0xff] %vm567, %v545
    %1229 = vst.msk [vmem:[%s1115 + $0x271] sm:$0xff] %vm567, %v546
    %1230 = vst.msk [vmem:[%s1115 + $0x279] sm:$0xff] %vm567, %v547
    %1231 = vst.msk [vmem:[%s1115 + $0x289] sm:$0xff] %vm567, %v548
    %1232 = vst.msk [vmem:[%s1115 + $0x291] sm:$0xff] %vm567, %v549
    %1233 = vst.msk [vmem:[%s1115 + $0x2a1] sm:$0xff] %vm567, %v550
    %1234 = vst.msk [vmem:[%s1115 + $0x2a9] sm:$0xff] %vm567, %v551
    %1235 = vst.msk [vmem:[%s1115 + $0x2b9] sm:$0xff] %vm567, %v552
    %1236 = vst.msk [vmem:[%s1115 + $0x2c1] sm:$0xff] %vm567, %v553
    %1237 = vst.msk [vmem:[%s1115 + $0x2d1] sm:$0xff] %vm567, %v554
    %1238 = vst.msk [vmem:[%s1115 + $0x2d9] sm:$0xff] %vm567, %v555
    %1239 = vst.msk [vmem:[%s1115 + $0x2e9] sm:$0xff] %vm567, %v556
    %1240 = vst.msk [vmem:[%s1115 + $0x2f1] sm:$0xff] %vm567, %v557
    %1241 = vst.msk [vmem:[%s1115 + $0x301] sm:$0xff] %vm567, %v558
    %1242 = vst.msk [vmem:[%s1115 + $0x309] sm:$0xff] %vm567, %v559
    %1243 = vst.msk [vmem:[%s1115 + $0x319] sm:$0xff] %vm567, %v560
    %1244 = vst.msk [vmem:[%s1115 + $0x321] sm:$0xff] %vm567, %v561
    %v1245 = vld [vmem:[#allocation2] sm:$0xff]
    %v1246 = vld [vmem:[#allocation2 + $0x8] sm:$0xff]
    %v1247 = vld [vmem:[#allocation2 + $0x18] sm:$0xff]
    %v1248 = vld [vmem:[#allocation2 + $0x20] sm:$0xff]
    %v1249 = vld [vmem:[#allocation2 + $0x30] sm:$0xff]
    %v1250 = vld [vmem:[#allocation2 + $0x38] sm:$0xff]
    %v1251 = vld [vmem:[#allocation2 + $0x48] sm:$0xff]
    %v1252 = vld [vmem:[#allocation2 + $0x50] sm:$0xff]
    %v1253 = vld [vmem:[#allocation2 + $0x60] sm:$0xff]
    %v1254 = vld [vmem:[#allocation2 + $0x68] sm:$0xff]
    %v1255 = vld [vmem:[#allocation2 + $0x78] sm:$0xff]
    %v1256 = vld [vmem:[#allocation2 + $0x80] sm:$0xff]
    %v1257 = vld [vmem:[#allocation2 + $0x90] sm:$0xff]
    %v1258 = vld [vmem:[#allocation2 + $0x98] sm:$0xff]
    %v1259 = vld [vmem:[#allocation2 + $0xa8] sm:$0xff]
    %v1260 = vld [vmem:[#allocation2 + $0xb0] sm:$0xff]
    %v1261 = vld [vmem:[#allocation2 + $0xc0] sm:$0xff]
    %v1262 = vld [vmem:[#allocation2 + $0xc8] sm:$0xff]
    %v1263 = vld [vmem:[#allocation2 + $0xd8] sm:$0xff]
    %v1264 = vld [vmem:[#allocation2 + $0xe0] sm:$0xff]
    %v1265 = vld [vmem:[#allocation2 + $0xf0] sm:$0xff]
    %v1266 = vld [vmem:[#allocation2 + $0xf8] sm:$0xff]
    %v1267 = vld [vmem:[#allocation2 + $0x108] sm:$0xff]
    %v1268 = vld [vmem:[#allocation2 + $0x110] sm:$0xff]
    %v1269 = vld [vmem:[#allocation2 + $0x120] sm:$0xff]
    %v1270 = vld [vmem:[#allocation2 + $0x128] sm:$0xff]
    %v1271 = vld [vmem:[#allocation2 + $0x138] sm:$0xff]
    %v1272 = vld [vmem:[#allocation2 + $0x140] sm:$0xff]
    %v1273 = vld [vmem:[#allocation2 + $0x150] sm:$0xff]
    %v1274 = vld [vmem:[#allocation2 + $0x158] sm:$0xff]
    %v1275 = vld [vmem:[#allocation2 + $0x168] sm:$0xff]
    %v1276 = vld [vmem:[#allocation2 + $0x170] sm:$0xff]
    %v1277 = vld [vmem:[#allocation2 + $0x1b0] sm:$0xff]
    %v1278 = vld [vmem:[#allocation2 + $0x1b8] sm:$0xff]
    %v1279 = vld [vmem:[#allocation2 + $0x1c8] sm:$0xff]
    %v1280 = vld [vmem:[#allocation2 + $0x1d0] sm:$0xff]
    %v1281 = vld [vmem:[#allocation2 + $0x1e0] sm:$0xff]
    %v1282 = vld [vmem:[#allocation2 + $0x1e8] sm:$0xff]
    %v1283 = vld [vmem:[#allocation2 + $0x1f8] sm:$0xff]
    %v1284 = vld [vmem:[#allocation2 + $0x200] sm:$0xff]
    %v1285 = vld [vmem:[#allocation2 + $0x210] sm:$0xff]
    %v1286 = vld [vmem:[#allocation2 + $0x218] sm:$0xff]
    %v1287 = vld [vmem:[#allocation2 + $0x228] sm:$0xff]
    %v1288 = vld [vmem:[#allocation2 + $0x230] sm:$0xff]
    %v1289 = vld [vmem:[#allocation2 + $0x240] sm:$0xff]
    %v1290 = vld [vmem:[#allocation2 + $0x248] sm:$0xff]
    %v1291 = vld [vmem:[#allocation2 + $0x258] sm:$0xff]
    %v1292 = vld [vmem:[#allocation2 + $0x260] sm:$0xff]
    %v1293 = vld [vmem:[#allocation2 + $0x270] sm:$0xff]
    %v1294 = vld [vmem:[#allocation2 + $0x278] sm:$0xff]
    %v1295 = vld [vmem:[#allocation2 + $0x288] sm:$0xff]
    %v1296 = vld [vmem:[#allocation2 + $0x290] sm:$0xff]
    %v1297 = vld [vmem:[#allocation2 + $0x2a0] sm:$0xff]
    %v1298 = vld [vmem:[#allocation2 + $0x2a8] sm:$0xff]
    %v1299 = vld [vmem:[#allocation2 + $0x2b8] sm:$0xff]
    %v1300 = vld [vmem:[#allocation2 + $0x2c0] sm:$0xff]
    %v1301 = vld [vmem:[#allocation2 + $0x2d0] sm:$0xff]
    %v1302 = vld [vmem:[#allocation2 + $0x2d8] sm:$0xff]
    %v1303 = vld [vmem:[#allocation2 + $0x2e8] sm:$0xff]
    %v1304 = vld [vmem:[#allocation2 + $0x2f0] sm:$0xff]
    %v1305 = vld [vmem:[#allocation2 + $0x300] sm:$0xff]
    %v1306 = vld [vmem:[#allocation2 + $0x308] sm:$0xff]
    %v1307 = vld [vmem:[#allocation2 + $0x318] sm:$0xff]
    %v1308 = vld [vmem:[#allocation2 + $0x320] sm:$0xff]
    %v1309 = vld [vmem:[#allocation2 + $0x1] sm:$0xff]
    %v1310 = vld [vmem:[#allocation2 + $0x9] sm:$0xff]
    %v1311 = vld [vmem:[#allocation2 + $0x19] sm:$0xff]
    %v1312 = vld [vmem:[#allocation2 + $0x21] sm:$0xff]
    %v1313 = vld [vmem:[#allocation2 + $0x31] sm:$0xff]
    %v1314 = vld [vmem:[#allocation2 + $0x39] sm:$0xff]
    %v1315 = vld [vmem:[#allocation2 + $0x49] sm:$0xff]
    %v1316 = vld [vmem:[#allocation2 + $0x51] sm:$0xff]
    %v1317 = vld [vmem:[#allocation2 + $0x61] sm:$0xff]
    %v1318 = vld [vmem:[#allocation2 + $0x69] sm:$0xff]
    %v1319 = vld [vmem:[#allocation2 + $0x79] sm:$0xff]
    %v1320 = vld [vmem:[#allocation2 + $0x81] sm:$0xff]
    %v1321 = vld [vmem:[#allocation2 + $0x91] sm:$0xff]
    %v1322 = vld [vmem:[#allocation2 + $0x99] sm:$0xff]
    %v1323 = vld [vmem:[#allocation2 + $0xa9] sm:$0xff]
    %v1324 = vld [vmem:[#allocation2 + $0xb1] sm:$0xff]
    %v1325 = vld [vmem:[#allocation2 + $0xc1] sm:$0xff]
    %v1326 = vld [vmem:[#allocation2 + $0xc9] sm:$0xff]
    %v1327 = vld [vmem:[#allocation2 + $0xd9] sm:$0xff]
    %v1328 = vld [vmem:[#allocation2 + $0xe1] sm:$0xff]
    %v1329 = vld [vmem:[#allocation2 + $0xf1] sm:$0xff]
    %v1330 = vld [vmem:[#allocation2 + $0xf9] sm:$0xff]
    %v1331 = vld [vmem:[#allocation2 + $0x109] sm:$0xff]
    %v1332 = vld [vmem:[#allocation2 + $0x111] sm:$0xff]
    %v1333 = vld [vmem:[#allocation2 + $0x121] sm:$0xff]
    %v1334 = vld [vmem:[#allocation2 + $0x129] sm:$0xff]
    %v1335 = vld [vmem:[#allocation2 + $0x139] sm:$0xff]
    %v1336 = vld [vmem:[#allocation2 + $0x141] sm:$0xff]
    %v1337 = vld [vmem:[#allocation2 + $0x151] sm:$0xff]
    %v1338 = vld [vmem:[#allocation2 + $0x159] sm:$0xff]
    %v1339 = vld [vmem:[#allocation2 + $0x169] sm:$0xff]
    %v1340 = vld [vmem:[#allocation2 + $0x171] sm:$0xff]
    %v1341 = vld [vmem:[#allocation2 + $0x1b1] sm:$0xff]
    %v1342 = vld [vmem:[#allocation2 + $0x1b9] sm:$0xff]
    %v1343 = vld [vmem:[#allocation2 + $0x1c9] sm:$0xff]
    %v1344 = vld [vmem:[#allocation2 + $0x1d1] sm:$0xff]
    %v1345 = vld [vmem:[#allocation2 + $0x1e1] sm:$0xff]
    %v1346 = vld [vmem:[#allocation2 + $0x1e9] sm:$0xff]
    %v1347 = vld [vmem:[#allocation2 + $0x1f9] sm:$0xff]
    %v1348 = vld [vmem:[#allocation2 + $0x201] sm:$0xff]
    %v1349 = vld [vmem:[#allocation2 + $0x211] sm:$0xff]
    %v1350 = vld [vmem:[#allocation2 + $0x219] sm:$0xff]
    %v1351 = vld [vmem:[#allocation2 + $0x229] sm:$0xff]
    %v1352 = vld [vmem:[#allocation2 + $0x231] sm:$0xff]
    %v1353 = vld [vmem:[#allocation2 + $0x241] sm:$0xff]
    %v1354 = vld [vmem:[#allocation2 + $0x249] sm:$0xff]
    %v1355 = vld [vmem:[#allocation2 + $0x259] sm:$0xff]
    %v1356 = vld [vmem:[#allocation2 + $0x261] sm:$0xff]
    %v1357 = vld [vmem:[#allocation2 + $0x271] sm:$0xff]
    %v1358 = vld [vmem:[#allocation2 + $0x279] sm:$0xff]
    %v1359 = vld [vmem:[#allocation2 + $0x289] sm:$0xff]
    %v1360 = vld [vmem:[#allocation2 + $0x291] sm:$0xff]
    %v1361 = vld [vmem:[#allocation2 + $0x2a1] sm:$0xff]
    %v1362 = vld [vmem:[#allocation2 + $0x2a9] sm:$0xff]
    %v1363 = vld [vmem:[#allocation2 + $0x2b9] sm:$0xff]
    %v1364 = vld [vmem:[#allocation2 + $0x2c1] sm:$0xff]
    %v1365 = vld [vmem:[#allocation2 + $0x2d1] sm:$0xff]
    %v1366 = vld [vmem:[#allocation2 + $0x2d9] sm:$0xff]
    %v1367 = vld [vmem:[#allocation2 + $0x2e9] sm:$0xff]
    %v1368 = vld [vmem:[#allocation2 + $0x2f1] sm:$0xff]
    %v1369 = vld [vmem:[#allocation2 + $0x301] sm:$0xff]
    %v1370 = vld [vmem:[#allocation2 + $0x309] sm:$0xff]
    %v1371 = vld [vmem:[#allocation2 + $0x319] sm:$0xff]
    %v1372 = vld [vmem:[#allocation2 + $0x321] sm:$0xff]
    %v1373 = vld [vmem:[#allocation2 + $0x2] sm:$0xff]
    %v1374 = vld [vmem:[#allocation2 + $0xa] sm:$0xff]
    %v1375 = vld [vmem:[#allocation2 + $0x1a] sm:$0xff]
    %v1376 = vld [vmem:[#allocation2 + $0x22] sm:$0xff]
    %v1377 = vld [vmem:[#allocation2 + $0x32] sm:$0xff]
    %v1378 = vld [vmem:[#allocation2 + $0x3a] sm:$0xff]
    %v1379 = vld [vmem:[#allocation2 + $0x4a] sm:$0xff]
    %v1380 = vld [vmem:[#allocation2 + $0x52] sm:$0xff]
    %v1381 = vld [vmem:[#allocation2 + $0x62] sm:$0xff]
    %v1382 = vld [vmem:[#allocation2 + $0x6a] sm:$0xff]
    %v1383 = vld [vmem:[#allocation2 + $0x7a] sm:$0xff]
    %v1384 = vld [vmem:[#allocation2 + $0x82] sm:$0xff]
    %v1385 = vld [vmem:[#allocation2 + $0x92] sm:$0xff]
    %v1386 = vld [vmem:[#allocation2 + $0x9a] sm:$0xff]
    %v1387 = vld [vmem:[#allocation2 + $0xaa] sm:$0xff]
    %v1388 = vld [vmem:[#allocation2 + $0xb2] sm:$0xff]
    %v1389 = vld [vmem:[#allocation2 + $0xc2] sm:$0xff]
    %v1390 = vld [vmem:[#allocation2 + $0xca] sm:$0xff]
    %v1391 = vld [vmem:[#allocation2 + $0xda] sm:$0xff]
    %v1392 = vld [vmem:[#allocation2 + $0xe2] sm:$0xff]
    %v1393 = vld [vmem:[#allocation2 + $0xf2] sm:$0xff]
    %v1394 = vld [vmem:[#allocation2 + $0xfa] sm:$0xff]
    %v1395 = vld [vmem:[#allocation2 + $0x10a] sm:$0xff]
    %v1396 = vld [vmem:[#allocation2 + $0x112] sm:$0xff]
    %v1397 = vld [vmem:[#allocation2 + $0x122] sm:$0xff]
    %v1398 = vld [vmem:[#allocation2 + $0x12a] sm:$0xff]
    %v1399 = vld [vmem:[#allocation2 + $0x13a] sm:$0xff]
    %v1400 = vld [vmem:[#allocation2 + $0x142] sm:$0xff]
    %v1401 = vld [vmem:[#allocation2 + $0x152] sm:$0xff]
    %v1402 = vld [vmem:[#allocation2 + $0x15a] sm:$0xff]
    %v1403 = vld [vmem:[#allocation2 + $0x16a] sm:$0xff]
    %v1404 = vld [vmem:[#allocation2 + $0x172] sm:$0xff]
    %v1405 = vld [vmem:[#allocation2 + $0x1b2] sm:$0xff]
    %v1406 = vld [vmem:[#allocation2 + $0x1ba] sm:$0xff]
    %v1407 = vld [vmem:[#allocation2 + $0x1ca] sm:$0xff]
    %v1408 = vld [vmem:[#allocation2 + $0x1d2] sm:$0xff]
    %v1409 = vld [vmem:[#allocation2 + $0x1e2] sm:$0xff]
    %v1410 = vld [vmem:[#allocation2 + $0x1ea] sm:$0xff]
    %v1411 = vld [vmem:[#allocation2 + $0x1fa] sm:$0xff]
    %v1412 = vld [vmem:[#allocation2 + $0x202] sm:$0xff]
    %v1413 = vld [vmem:[#allocation2 + $0x212] sm:$0xff]
    %v1414 = vld [vmem:[#allocation2 + $0x21a] sm:$0xff]
    %v1415 = vld [vmem:[#allocation2 + $0x22a] sm:$0xff]
    %v1416 = vld [vmem:[#allocation2 + $0x232] sm:$0xff]
    %v1417 = vld [vmem:[#allocation2 + $0x242] sm:$0xff]
    %v1418 = vld [vmem:[#allocation2 + $0x24a] sm:$0xff]
    %v1419 = vld [vmem:[#allocation2 + $0x25a] sm:$0xff]
    %v1420 = vld [vmem:[#allocation2 + $0x262] sm:$0xff]
    %v1421 = vld [vmem:[#allocation2 + $0x272] sm:$0xff]
    %v1422 = vld [vmem:[#allocation2 + $0x27a] sm:$0xff]
    %v1423 = vld [vmem:[#allocation2 + $0x28a] sm:$0xff]
    %v1424 = vld [vmem:[#allocation2 + $0x292] sm:$0xff]
    %v1425 = vld [vmem:[#allocation2 + $0x2a2] sm:$0xff]
    %v1426 = vld [vmem:[#allocation2 + $0x2aa] sm:$0xff]
    %v1427 = vld [vmem:[#allocation2 + $0x2ba] sm:$0xff]
    %v1428 = vld [vmem:[#allocation2 + $0x2c2] sm:$0xff]
    %v1429 = vld [vmem:[#allocation2 + $0x2d2] sm:$0xff]
    %v1430 = vld [vmem:[#allocation2 + $0x2da] sm:$0xff]
    %v1431 = vld [vmem:[#allocation2 + $0x2ea] sm:$0xff]
    %v1432 = vld [vmem:[#allocation2 + $0x2f2] sm:$0xff]
    %v1433 = vld [vmem:[#allocation2 + $0x302] sm:$0xff]
    %v1434 = vld [vmem:[#allocation2 + $0x30a] sm:$0xff]
    %v1435 = vld [vmem:[#allocation2 + $0x31a] sm:$0xff]
    %v1436 = vld [vmem:[#allocation2 + $0x322] sm:$0xff]
    %v1437 = vld [vmem:[%s1115] sm:$0xff]
    %v1438 = vld [vmem:[%s1115 + $0x8] sm:$0xff]
    %v1439 = vld [vmem:[%s1115 + $0x18] sm:$0xff]
    %v1440 = vld [vmem:[%s1115 + $0x20] sm:$0xff]
    %v1441 = vld [vmem:[%s1115 + $0x30] sm:$0xff]
    %v1442 = vld [vmem:[%s1115 + $0x38] sm:$0xff]
    %v1443 = vld [vmem:[%s1115 + $0x48] sm:$0xff]
    %v1444 = vld [vmem:[%s1115 + $0x50] sm:$0xff]
    %v1445 = vld [vmem:[%s1115 + $0x60] sm:$0xff]
    %v1446 = vld [vmem:[%s1115 + $0x68] sm:$0xff]
    %v1447 = vld [vmem:[%s1115 + $0x78] sm:$0xff]
    %v1448 = vld [vmem:[%s1115 + $0x80] sm:$0xff]
    %v1449 = vld [vmem:[%s1115 + $0x90] sm:$0xff]
    %v1450 = vld [vmem:[%s1115 + $0x98] sm:$0xff]
    %v1451 = vld [vmem:[%s1115 + $0xa8] sm:$0xff]
    %v1452 = vld [vmem:[%s1115 + $0xb0] sm:$0xff]
    %v1453 = vld [vmem:[%s1115 + $0xc0] sm:$0xff]
    %v1454 = vld [vmem:[%s1115 + $0xc8] sm:$0xff]
    %v1455 = vld [vmem:[%s1115 + $0xd8] sm:$0xff]
    %v1456 = vld [vmem:[%s1115 + $0xe0] sm:$0xff]
    %v1457 = vld [vmem:[%s1115 + $0xf0] sm:$0xff]
    %v1458 = vld [vmem:[%s1115 + $0xf8] sm:$0xff]
    %v1459 = vld [vmem:[%s1115 + $0x108] sm:$0xff]
    %v1460 = vld [vmem:[%s1115 + $0x110] sm:$0xff]
    %v1461 = vld [vmem:[%s1115 + $0x120] sm:$0xff]
    %v1462 = vld [vmem:[%s1115 + $0x128] sm:$0xff]
    %v1463 = vld [vmem:[%s1115 + $0x138] sm:$0xff]
    %v1464 = vld [vmem:[%s1115 + $0x140] sm:$0xff]
    %v1465 = vld [vmem:[%s1115 + $0x150] sm:$0xff]
    %v1466 = vld [vmem:[%s1115 + $0x158] sm:$0xff]
    %v1467 = vld [vmem:[%s1115 + $0x168] sm:$0xff]
    %v1468 = vld [vmem:[%s1115 + $0x170] sm:$0xff]
    %v1469 = vld [vmem:[%s1115 + $0x1b0] sm:$0xff]
    %v1470 = vld [vmem:[%s1115 + $0x1b8] sm:$0xff]
    %v1471 = vld [vmem:[%s1115 + $0x1c8] sm:$0xff]
    %v1472 = vld [vmem:[%s1115 + $0x1d0] sm:$0xff]
    %v1473 = vld [vmem:[%s1115 + $0x1e0] sm:$0xff]
    %v1474 = vld [vmem:[%s1115 + $0x1e8] sm:$0xff]
    %v1475 = vld [vmem:[%s1115 + $0x1f8] sm:$0xff]
    %v1476 = vld [vmem:[%s1115 + $0x200] sm:$0xff]
    %v1477 = vld [vmem:[%s1115 + $0x210] sm:$0xff]
    %v1478 = vld [vmem:[%s1115 + $0x218] sm:$0xff]
    %v1479 = vld [vmem:[%s1115 + $0x228] sm:$0xff]
    %v1480 = vld [vmem:[%s1115 + $0x230] sm:$0xff]
    %v1481 = vld [vmem:[%s1115 + $0x240] sm:$0xff]
    %v1482 = vld [vmem:[%s1115 + $0x248] sm:$0xff]
    %v1483 = vld [vmem:[%s1115 + $0x258] sm:$0xff]
    %v1484 = vld [vmem:[%s1115 + $0x260] sm:$0xff]
    %v1485 = vld [vmem:[%s1115 + $0x270] sm:$0xff]
    %v1486 = vld [vmem:[%s1115 + $0x278] sm:$0xff]
    %v1487 = vld [vmem:[%s1115 + $0x288] sm:$0xff]
    %v1488 = vld [vmem:[%s1115 + $0x290] sm:$0xff]
    %v1489 = vld [vmem:[%s1115 + $0x2a0] sm:$0xff]
    %v1490 = vld [vmem:[%s1115 + $0x2a8] sm:$0xff]
    %v1491 = vld [vmem:[%s1115 + $0x2b8] sm:$0xff]
    %v1492 = vld [vmem:[%s1115 + $0x2c0] sm:$0xff]
    %v1493 = vld [vmem:[%s1115 + $0x2d0] sm:$0xff]
    %v1494 = vld [vmem:[%s1115 + $0x2d8] sm:$0xff]
    %v1495 = vld [vmem:[%s1115 + $0x2e8] sm:$0xff]
    %v1496 = vld [vmem:[%s1115 + $0x2f0] sm:$0xff]
    %v1497 = vld [vmem:[%s1115 + $0x300] sm:$0xff]
    %v1498 = vld [vmem:[%s1115 + $0x308] sm:$0xff]
    %v1499 = vld [vmem:[%s1115 + $0x318] sm:$0xff]
    %v1500 = vld [vmem:[%s1115 + $0x320] sm:$0xff]
    %v1501 = vld [vmem:[%s1115 + $0x1] sm:$0xff]
    %v1502 = vld [vmem:[%s1115 + $0x9] sm:$0xff]
    %v1503 = vld [vmem:[%s1115 + $0x19] sm:$0xff]
    %v1504 = vld [vmem:[%s1115 + $0x21] sm:$0xff]
    %v1505 = vld [vmem:[%s1115 + $0x31] sm:$0xff]
    %v1506 = vld [vmem:[%s1115 + $0x39] sm:$0xff]
    %v1507 = vld [vmem:[%s1115 + $0x49] sm:$0xff]
    %v1508 = vld [vmem:[%s1115 + $0x51] sm:$0xff]
    %v1509 = vld [vmem:[%s1115 + $0x61] sm:$0xff]
    %v1510 = vld [vmem:[%s1115 + $0x69] sm:$0xff]
    %v1511 = vld [vmem:[%s1115 + $0x79] sm:$0xff]
    %v1512 = vld [vmem:[%s1115 + $0x81] sm:$0xff]
    %v1513 = vld [vmem:[%s1115 + $0x91] sm:$0xff]
    %v1514 = vld [vmem:[%s1115 + $0x99] sm:$0xff]
    %v1515 = vld [vmem:[%s1115 + $0xa9] sm:$0xff]
    %v1516 = vld [vmem:[%s1115 + $0xb1] sm:$0xff]
    %v1517 = vld [vmem:[%s1115 + $0xc1] sm:$0xff]
    %v1518 = vld [vmem:[%s1115 + $0xc9] sm:$0xff]
    %v1519 = vld [vmem:[%s1115 + $0xd9] sm:$0xff]
    %v1520 = vld [vmem:[%s1115 + $0xe1] sm:$0xff]
    %v1521 = vld [vmem:[%s1115 + $0xf1] sm:$0xff]
    %v1522 = vld [vmem:[%s1115 + $0xf9] sm:$0xff]
    %v1523 = vld [vmem:[%s1115 + $0x109] sm:$0xff]
    %v1524 = vld [vmem:[%s1115 + $0x111] sm:$0xff]
    %v1525 = vld [vmem:[%s1115 + $0x121] sm:$0xff]
    %v1526 = vld [vmem:[%s1115 + $0x129] sm:$0xff]
    %v1527 = vld [vmem:[%s1115 + $0x139] sm:$0xff]
    %v1528 = vld [vmem:[%s1115 + $0x141] sm:$0xff]
    %v1529 = vld [vmem:[%s1115 + $0x151] sm:$0xff]
    %v1530 = vld [vmem:[%s1115 + $0x159] sm:$0xff]
    %v1531 = vld [vmem:[%s1115 + $0x169] sm:$0xff]
    %v1532 = vld [vmem:[%s1115 + $0x171] sm:$0xff]
    %v1533 = vld [vmem:[%s1115 + $0x1b1] sm:$0xff]
    %v1534 = vld [vmem:[%s1115 + $0x1b9] sm:$0xff]
    %v1535 = vld [vmem:[%s1115 + $0x1c9] sm:$0xff]
    %v1536 = vld [vmem:[%s1115 + $0x1d1] sm:$0xff]
    %v1537 = vld [vmem:[%s1115 + $0x1e1] sm:$0xff]
    %v1538 = vld [vmem:[%s1115 + $0x1e9] sm:$0xff]
    %v1539 = vld [vmem:[%s1115 + $0x1f9] sm:$0xff]
    %v1540 = vld [vmem:[%s1115 + $0x201] sm:$0xff]
    %v1541 = vld [vmem:[%s1115 + $0x211] sm:$0xff]
    %v1542 = vld [vmem:[%s1115 + $0x219] sm:$0xff]
    %v1543 = vld [vmem:[%s1115 + $0x229] sm:$0xff]
    %v1544 = vld [vmem:[%s1115 + $0x231] sm:$0xff]
    %v1545 = vld [vmem:[%s1115 + $0x241] sm:$0xff]
    %v1546 = vld [vmem:[%s1115 + $0x249] sm:$0xff]
    %v1547 = vld [vmem:[%s1115 + $0x259] sm:$0xff]
    %v1548 = vld [vmem:[%s1115 + $0x261] sm:$0xff]
    %v1549 = vld [vmem:[%s1115 + $0x271] sm:$0xff]
    %v1550 = vld [vmem:[%s1115 + $0x279] sm:$0xff]
    %v1551 = vld [vmem:[%s1115 + $0x289] sm:$0xff]
    %v1552 = vld [vmem:[%s1115 + $0x291] sm:$0xff]
    %v1553 = vld [vmem:[%s1115 + $0x2a1] sm:$0xff]
    %v1554 = vld [vmem:[%s1115 + $0x2a9] sm:$0xff]
    %v1555 = vld [vmem:[%s1115 + $0x2b9] sm:$0xff]
    %v1556 = vld [vmem:[%s1115 + $0x2c1] sm:$0xff]
    %v1557 = vld [vmem:[%s1115 + $0x2d1] sm:$0xff]
    %v1558 = vld [vmem:[%s1115 + $0x2d9] sm:$0xff]
    %v1559 = vld [vmem:[%s1115 + $0x2e9] sm:$0xff]
    %v1560 = vld [vmem:[%s1115 + $0x2f1] sm:$0xff]
    %v1561 = vld [vmem:[%s1115 + $0x301] sm:$0xff]
    %v1562 = vld [vmem:[%s1115 + $0x309] sm:$0xff]
    %v1563 = vld [vmem:[%s1115 + $0x319] sm:$0xff]
    %v1564 = vld [vmem:[%s1115 + $0x321] sm:$0xff]
    %v1565 = vld [vmem:[%s1115 + $0x2] sm:$0xff]
    %v1566 = vld [vmem:[%s1115 + $0xa] sm:$0xff]
    %v1567 = vld [vmem:[%s1115 + $0x1a] sm:$0xff]
    %v1568 = vld [vmem:[%s1115 + $0x22] sm:$0xff]
    %v1569 = vld [vmem:[%s1115 + $0x32] sm:$0xff]
    %v1570 = vld [vmem:[%s1115 + $0x3a] sm:$0xff]
    %v1571 = vld [vmem:[%s1115 + $0x4a] sm:$0xff]
    %v1572 = vld [vmem:[%s1115 + $0x52] sm:$0xff]
    %v1573 = vld [vmem:[%s1115 + $0x62] sm:$0xff]
    %v1574 = vld [vmem:[%s1115 + $0x6a] sm:$0xff]
    %v1575 = vld [vmem:[%s1115 + $0x7a] sm:$0xff]
    %v1576 = vld [vmem:[%s1115 + $0x82] sm:$0xff]
    %v1577 = vld [vmem:[%s1115 + $0x92] sm:$0xff]
    %v1578 = vld [vmem:[%s1115 + $0x9a] sm:$0xff]
    %v1579 = vld [vmem:[%s1115 + $0xaa] sm:$0xff]
    %v1580 = vld [vmem:[%s1115 + $0xb2] sm:$0xff]
    %v1581 = vld [vmem:[%s1115 + $0xc2] sm:$0xff]
    %v1582 = vld [vmem:[%s1115 + $0xca] sm:$0xff]
    %v1583 = vld [vmem:[%s1115 + $0xda] sm:$0xff]
    %v1584 = vld [vmem:[%s1115 + $0xe2] sm:$0xff]
    %v1585 = vld [vmem:[%s1115 + $0xf2] sm:$0xff]
    %v1586 = vld [vmem:[%s1115 + $0xfa] sm:$0xff]
    %v1587 = vld [vmem:[%s1115 + $0x10a] sm:$0xff]
    %v1588 = vld [vmem:[%s1115 + $0x112] sm:$0xff]
    %v1589 = vld [vmem:[%s1115 + $0x122] sm:$0xff]
    %v1590 = vld [vmem:[%s1115 + $0x12a] sm:$0xff]
    %v1591 = vld [vmem:[%s1115 + $0x13a] sm:$0xff]
    %v1592 = vld [vmem:[%s1115 + $0x142] sm:$0xff]
    %v1593 = vld [vmem:[%s1115 + $0x152] sm:$0xff]
    %v1594 = vld [vmem:[%s1115 + $0x15a] sm:$0xff]
    %v1595 = vld [vmem:[%s1115 + $0x16a] sm:$0xff]
    %v1596 = vld [vmem:[%s1115 + $0x172] sm:$0xff]
    %v1597 = vld [vmem:[%s1115 + $0x1b2] sm:$0xff]
    %v1598 = vld [vmem:[%s1115 + $0x1ba] sm:$0xff]
    %v1599 = vld [vmem:[%s1115 + $0x1ca] sm:$0xff]
    %v1600 = vld [vmem:[%s1115 + $0x1d2] sm:$0xff]
    %v1601 = vld [vmem:[%s1115 + $0x1e2] sm:$0xff]
    %v1602 = vld [vmem:[%s1115 + $0x1ea] sm:$0xff]
    %v1603 = vld [vmem:[%s1115 + $0x1fa] sm:$0xff]
    %v1604 = vld [vmem:[%s1115 + $0x202] sm:$0xff]
    %v1605 = vld [vmem:[%s1115 + $0x212] sm:$0xff]
    %v1606 = vld [vmem:[%s1115 + $0x21a] sm:$0xff]
    %v1607 = vld [vmem:[%s1115 + $0x22a] sm:$0xff]
    %v1608 = vld [vmem:[%s1115 + $0x232] sm:$0xff]
    %v1609 = vld [vmem:[%s1115 + $0x242] sm:$0xff]
    %v1610 = vld [vmem:[%s1115 + $0x24a] sm:$0xff]
    %v1611 = vld [vmem:[%s1115 + $0x25a] sm:$0xff]
    %v1612 = vld [vmem:[%s1115 + $0x262] sm:$0xff]
    %v1613 = vld [vmem:[%s1115 + $0x272] sm:$0xff]
    %v1614 = vld [vmem:[%s1115 + $0x27a] sm:$0xff]
    %v1615 = vld [vmem:[%s1115 + $0x28a] sm:$0xff]
    %v1616 = vld [vmem:[%s1115 + $0x292] sm:$0xff]
    %v1617 = vld [vmem:[%s1115 + $0x2a2] sm:$0xff]
    %v1618 = vld [vmem:[%s1115 + $0x2aa] sm:$0xff]
    %v1619 = vld [vmem:[%s1115 + $0x2ba] sm:$0xff]
    %v1620 = vld [vmem:[%s1115 + $0x2c2] sm:$0xff]
    %v1621 = vld [vmem:[%s1115 + $0x2d2] sm:$0xff]
    %v1622 = vld [vmem:[%s1115 + $0x2da] sm:$0xff]
    %v1623 = vld [vmem:[%s1115 + $0x2ea] sm:$0xff]
    %v1624 = vld [vmem:[%s1115 + $0x2f2] sm:$0xff]
    %v1625 = vld [vmem:[%s1115 + $0x302] sm:$0xff]
    %v1626 = vld [vmem:[%s1115 + $0x30a] sm:$0xff]
    %v1627 = vld [vmem:[%s1115 + $0x31a] sm:$0xff]
    %v1628 = vld [vmem:[%s1115 + $0x322] sm:$0xff]
    %s1629 = scalar_lea.vmem [#allocation2], 48
    %v1630 = vld [vmem:[%s1629] sm:$0xff]
    %v1631 = vld [vmem:[%s1629 + $0x8] sm:$0xff]
    %v1632 = vld [vmem:[%s1629 + $0x18] sm:$0xff]
    %v1633 = vld [vmem:[%s1629 + $0x20] sm:$0xff]
    %v1634 = vld [vmem:[%s1629 + $0x30] sm:$0xff]
    %v1635 = vld [vmem:[%s1629 + $0x38] sm:$0xff]
    %v1636 = vld [vmem:[%s1629 + $0x48] sm:$0xff]
    %v1637 = vld [vmem:[%s1629 + $0x50] sm:$0xff]
    %v1638 = vld [vmem:[%s1629 + $0x60] sm:$0xff]
    %v1639 = vld [vmem:[%s1629 + $0x68] sm:$0xff]
    %v1640 = vld [vmem:[%s1629 + $0x78] sm:$0xff]
    %v1641 = vld [vmem:[%s1629 + $0x80] sm:$0xff]
    %v1642 = vld [vmem:[%s1629 + $0x90] sm:$0xff]
    %v1643 = vld [vmem:[%s1629 + $0x98] sm:$0xff]
    %v1644 = vld [vmem:[%s1629 + $0xa8] sm:$0xff]
    %v1645 = vld [vmem:[%s1629 + $0xb0] sm:$0xff]
    %v1646 = vld [vmem:[%s1629 + $0xc0] sm:$0xff]
    %v1647 = vld [vmem:[%s1629 + $0xc8] sm:$0xff]
    %v1648 = vld [vmem:[%s1629 + $0xd8] sm:$0xff]
    %v1649 = vld [vmem:[%s1629 + $0xe0] sm:$0xff]
    %v1650 = vld [vmem:[%s1629 + $0xf0] sm:$0xff]
    %v1651 = vld [vmem:[%s1629 + $0xf8] sm:$0xff]
    %v1652 = vld [vmem:[%s1629 + $0x108] sm:$0xff]
    %v1653 = vld [vmem:[%s1629 + $0x110] sm:$0xff]
    %v1654 = vld [vmem:[%s1629 + $0x120] sm:$0xff]
    %v1655 = vld [vmem:[%s1629 + $0x128] sm:$0xff]
    %v1656 = vld [vmem:[%s1629 + $0x138] sm:$0xff]
    %v1657 = vld [vmem:[%s1629 + $0x140] sm:$0xff]
    %v1658 = vld [vmem:[%s1629 + $0x150] sm:$0xff]
    %v1659 = vld [vmem:[%s1629 + $0x158] sm:$0xff]
    %v1660 = vld [vmem:[%s1629 + $0x168] sm:$0xff]
    %v1661 = vld [vmem:[%s1629 + $0x170] sm:$0xff]
    %v1662 = vld [vmem:[%s1629 + $0x1b0] sm:$0xff]
    %v1663 = vld [vmem:[%s1629 + $0x1b8] sm:$0xff]
    %v1664 = vld [vmem:[%s1629 + $0x1c8] sm:$0xff]
    %v1665 = vld [vmem:[%s1629 + $0x1d0] sm:$0xff]
    %v1666 = vld [vmem:[%s1629 + $0x1e0] sm:$0xff]
    %v1667 = vld [vmem:[%s1629 + $0x1e8] sm:$0xff]
    %v1668 = vld [vmem:[%s1629 + $0x1f8] sm:$0xff]
    %v1669 = vld [vmem:[%s1629 + $0x200] sm:$0xff]
    %v1670 = vld [vmem:[%s1629 + $0x210] sm:$0xff]
    %v1671 = vld [vmem:[%s1629 + $0x218] sm:$0xff]
    %v1672 = vld [vmem:[%s1629 + $0x228] sm:$0xff]
    %v1673 = vld [vmem:[%s1629 + $0x230] sm:$0xff]
    %v1674 = vld [vmem:[%s1629 + $0x240] sm:$0xff]
    %v1675 = vld [vmem:[%s1629 + $0x248] sm:$0xff]
    %v1676 = vld [vmem:[%s1629 + $0x258] sm:$0xff]
    %v1677 = vld [vmem:[%s1629 + $0x260] sm:$0xff]
    %v1678 = vld [vmem:[%s1629 + $0x270] sm:$0xff]
    %v1679 = vld [vmem:[%s1629 + $0x278] sm:$0xff]
    %v1680 = vld [vmem:[%s1629 + $0x288] sm:$0xff]
    %v1681 = vld [vmem:[%s1629 + $0x290] sm:$0xff]
    %v1682 = vld [vmem:[%s1629 + $0x2a0] sm:$0xff]
    %v1683 = vld [vmem:[%s1629 + $0x2a8] sm:$0xff]
    %v1684 = vld [vmem:[%s1629 + $0x2b8] sm:$0xff]
    %v1685 = vld [vmem:[%s1629 + $0x2c0] sm:$0xff]
    %v1686 = vld [vmem:[%s1629 + $0x2d0] sm:$0xff]
    %v1687 = vld [vmem:[%s1629 + $0x2d8] sm:$0xff]
    %v1688 = vld [vmem:[%s1629 + $0x2e8] sm:$0xff]
    %v1689 = vld [vmem:[%s1629 + $0x2f0] sm:$0xff]
    %v1690 = vld [vmem:[%s1629 + $0x300] sm:$0xff]
    %v1691 = vld [vmem:[%s1629 + $0x308] sm:$0xff]
    %v1692 = vld [vmem:[%s1629 + $0x318] sm:$0xff]
    %v1693 = vld [vmem:[%s1629 + $0x320] sm:$0xff]
    %v1694 = vld [vmem:[%s1629 + $0x1] sm:$0xff]
    %v1695 = vld [vmem:[%s1629 + $0x9] sm:$0xff]
    %v1696 = vld [vmem:[%s1629 + $0x19] sm:$0xff]
    %v1697 = vld [vmem:[%s1629 + $0x21] sm:$0xff]
    %v1698 = vld [vmem:[%s1629 + $0x31] sm:$0xff]
    %v1699 = vld [vmem:[%s1629 + $0x39] sm:$0xff]
    %v1700 = vld [vmem:[%s1629 + $0x49] sm:$0xff]
    %v1701 = vld [vmem:[%s1629 + $0x51] sm:$0xff]
    %v1702 = vld [vmem:[%s1629 + $0x61] sm:$0xff]
    %v1703 = vld [vmem:[%s1629 + $0x69] sm:$0xff]
    %v1704 = vld [vmem:[%s1629 + $0x79] sm:$0xff]
    %v1705 = vld [vmem:[%s1629 + $0x81] sm:$0xff]
    %v1706 = vld [vmem:[%s1629 + $0x91] sm:$0xff]
    %v1707 = vld [vmem:[%s1629 + $0x99] sm:$0xff]
    %v1708 = vld [vmem:[%s1629 + $0xa9] sm:$0xff]
    %v1709 = vld [vmem:[%s1629 + $0xb1] sm:$0xff]
    %v1710 = vld [vmem:[%s1629 + $0xc1] sm:$0xff]
    %v1711 = vld [vmem:[%s1629 + $0xc9] sm:$0xff]
    %v1712 = vld [vmem:[%s1629 + $0xd9] sm:$0xff]
    %v1713 = vld [vmem:[%s1629 + $0xe1] sm:$0xff]
    %v1714 = vld [vmem:[%s1629 + $0xf1] sm:$0xff]
    %v1715 = vld [vmem:[%s1629 + $0xf9] sm:$0xff]
    %v1716 = vld [vmem:[%s1629 + $0x109] sm:$0xff]
    %v1717 = vld [vmem:[%s1629 + $0x111] sm:$0xff]
    %v1718 = vld [vmem:[%s1629 + $0x121] sm:$0xff]
    %v1719 = vld [vmem:[%s1629 + $0x129] sm:$0xff]
    %v1720 = vld [vmem:[%s1629 + $0x139] sm:$0xff]
    %v1721 = vld [vmem:[%s1629 + $0x141] sm:$0xff]
    %v1722 = vld [vmem:[%s1629 + $0x151] sm:$0xff]
    %v1723 = vld [vmem:[%s1629 + $0x159] sm:$0xff]
    %v1724 = vld [vmem:[%s1629 + $0x169] sm:$0xff]
    %v1725 = vld [vmem:[%s1629 + $0x171] sm:$0xff]
    %v1726 = vld [vmem:[%s1629 + $0x1b1] sm:$0xff]
    %v1727 = vld [vmem:[%s1629 + $0x1b9] sm:$0xff]
    %v1728 = vld [vmem:[%s1629 + $0x1c9] sm:$0xff]
    %v1729 = vld [vmem:[%s1629 + $0x1d1] sm:$0xff]
    %v1730 = vld [vmem:[%s1629 + $0x1e1] sm:$0xff]
    %v1731 = vld [vmem:[%s1629 + $0x1e9] sm:$0xff]
    %v1732 = vld [vmem:[%s1629 + $0x1f9] sm:$0xff]
    %v1733 = vld [vmem:[%s1629 + $0x201] sm:$0xff]
    %v1734 = vld [vmem:[%s1629 + $0x211] sm:$0xff]
    %v1735 = vld [vmem:[%s1629 + $0x219] sm:$0xff]
    %v1736 = vld [vmem:[%s1629 + $0x229] sm:$0xff]
    %v1737 = vld [vmem:[%s1629 + $0x231] sm:$0xff]
    %v1738 = vld [vmem:[%s1629 + $0x241] sm:$0xff]
    %v1739 = vld [vmem:[%s1629 + $0x249] sm:$0xff]
    %v1740 = vld [vmem:[%s1629 + $0x259] sm:$0xff]
    %v1741 = vld [vmem:[%s1629 + $0x261] sm:$0xff]
    %v1742 = vld [vmem:[%s1629 + $0x271] sm:$0xff]
    %v1743 = vld [vmem:[%s1629 + $0x279] sm:$0xff]
    %v1744 = vld [vmem:[%s1629 + $0x289] sm:$0xff]
    %v1745 = vld [vmem:[%s1629 + $0x291] sm:$0xff]
    %v1746 = vld [vmem:[%s1629 + $0x2a1] sm:$0xff]
    %v1747 = vld [vmem:[%s1629 + $0x2a9] sm:$0xff]
    %v1748 = vld [vmem:[%s1629 + $0x2b9] sm:$0xff]
    %v1749 = vld [vmem:[%s1629 + $0x2c1] sm:$0xff]
    %v1750 = vld [vmem:[%s1629 + $0x2d1] sm:$0xff]
    %v1751 = vld [vmem:[%s1629 + $0x2d9] sm:$0xff]
    %v1752 = vld [vmem:[%s1629 + $0x2e9] sm:$0xff]
    %v1753 = vld [vmem:[%s1629 + $0x2f1] sm:$0xff]
    %v1754 = vld [vmem:[%s1629 + $0x301] sm:$0xff]
    %v1755 = vld [vmem:[%s1629 + $0x309] sm:$0xff]
    %v1756 = vld [vmem:[%s1629 + $0x319] sm:$0xff]
    %v1757 = vld [vmem:[%s1629 + $0x321] sm:$0xff]
    %v1758 = vld [vmem:[%s1629 + $0x2] sm:$0xff]
    %v1759 = vld [vmem:[%s1629 + $0xa] sm:$0xff]
    %v1760 = vld [vmem:[%s1629 + $0x1a] sm:$0xff]
    %v1761 = vld [vmem:[%s1629 + $0x22] sm:$0xff]
    %v1762 = vld [vmem:[%s1629 + $0x32] sm:$0xff]
    %v1763 = vld [vmem:[%s1629 + $0x3a] sm:$0xff]
    %v1764 = vld [vmem:[%s1629 + $0x4a] sm:$0xff]
    %v1765 = vld [vmem:[%s1629 + $0x52] sm:$0xff]
    %v1766 = vld [vmem:[%s1629 + $0x62] sm:$0xff]
    %v1767 = vld [vmem:[%s1629 + $0x6a] sm:$0xff]
    %v1768 = vld [vmem:[%s1629 + $0x7a] sm:$0xff]
    %v1769 = vld [vmem:[%s1629 + $0x82] sm:$0xff]
    %v1770 = vld [vmem:[%s1629 + $0x92] sm:$0xff]
    %v1771 = vld [vmem:[%s1629 + $0x9a] sm:$0xff]
    %v1772 = vld [vmem:[%s1629 + $0xaa] sm:$0xff]
    %v1773 = vld [vmem:[%s1629 + $0xb2] sm:$0xff]
    %v1774 = vld [vmem:[%s1629 + $0xc2] sm:$0xff]
    %v1775 = vld [vmem:[%s1629 + $0xca] sm:$0xff]
    %v1776 = vld [vmem:[%s1629 + $0xda] sm:$0xff]
    %v1777 = vld [vmem:[%s1629 + $0xe2] sm:$0xff]
    %v1778 = vld [vmem:[%s1629 + $0xf2] sm:$0xff]
    %v1779 = vld [vmem:[%s1629 + $0xfa] sm:$0xff]
    %v1780 = vld [vmem:[%s1629 + $0x10a] sm:$0xff]
    %v1781 = vld [vmem:[%s1629 + $0x112] sm:$0xff]
    %v1782 = vld [vmem:[%s1629 + $0x122] sm:$0xff]
    %v1783 = vld [vmem:[%s1629 + $0x12a] sm:$0xff]
    %v1784 = vld [vmem:[%s1629 + $0x13a] sm:$0xff]
    %v1785 = vld [vmem:[%s1629 + $0x142] sm:$0xff]
    %v1786 = vld [vmem:[%s1629 + $0x152] sm:$0xff]
    %v1787 = vld [vmem:[%s1629 + $0x15a] sm:$0xff]
    %v1788 = vld [vmem:[%s1629 + $0x16a] sm:$0xff]
    %v1789 = vld [vmem:[%s1629 + $0x172] sm:$0xff]
    %v1790 = vld [vmem:[%s1629 + $0x1b2] sm:$0xff]
    %v1791 = vld [vmem:[%s1629 + $0x1ba] sm:$0xff]
    %v1792 = vld [vmem:[%s1629 + $0x1ca] sm:$0xff]
    %v1793 = vld [vmem:[%s1629 + $0x1d2] sm:$0xff]
    %v1794 = vld [vmem:[%s1629 + $0x1e2] sm:$0xff]
    %v1795 = vld [vmem:[%s1629 + $0x1ea] sm:$0xff]
    %v1796 = vld [vmem:[%s1629 + $0x1fa] sm:$0xff]
    %v1797 = vld [vmem:[%s1629 + $0x202] sm:$0xff]
    %v1798 = vld [vmem:[%s1629 + $0x212] sm:$0xff]
    %v1799 = vld [vmem:[%s1629 + $0x21a] sm:$0xff]
    %v1800 = vld [vmem:[%s1629 + $0x22a] sm:$0xff]
    %v1801 = vld [vmem:[%s1629 + $0x232] sm:$0xff]
    %v1802 = vld [vmem:[%s1629 + $0x242] sm:$0xff]
    %v1803 = vld [vmem:[%s1629 + $0x24a] sm:$0xff]
    %v1804 = vld [vmem:[%s1629 + $0x25a] sm:$0xff]
    %v1805 = vld [vmem:[%s1629 + $0x262] sm:$0xff]
    %v1806 = vld [vmem:[%s1629 + $0x272] sm:$0xff]
    %v1807 = vld [vmem:[%s1629 + $0x27a] sm:$0xff]
    %v1808 = vld [vmem:[%s1629 + $0x28a] sm:$0xff]
    %v1809 = vld [vmem:[%s1629 + $0x292] sm:$0xff]
    %v1810 = vld [vmem:[%s1629 + $0x2a2] sm:$0xff]
    %v1811 = vld [vmem:[%s1629 + $0x2aa] sm:$0xff]
    %v1812 = vld [vmem:[%s1629 + $0x2ba] sm:$0xff]
    %v1813 = vld [vmem:[%s1629 + $0x2c2] sm:$0xff]
    %v1814 = vld [vmem:[%s1629 + $0x2d2] sm:$0xff]
    %v1815 = vld [vmem:[%s1629 + $0x2da] sm:$0xff]
    %v1816 = vld [vmem:[%s1629 + $0x2ea] sm:$0xff]
    %v1817 = vld [vmem:[%s1629 + $0x2f2] sm:$0xff]
    %v1818 = vld [vmem:[%s1629 + $0x302] sm:$0xff]
    %v1819 = vld [vmem:[%s1629 + $0x30a] sm:$0xff]
    %v1820 = vld [vmem:[%s1629 + $0x31a] sm:$0xff]
    %v1821 = vld [vmem:[%s1629 + $0x322] sm:$0xff]
    %1886 = vrot.lane.b32.xlu0 %v1309, 4
    %v1887 = vpop.permute.xlu0 %1886
    %1888 = vrot.lane.b32.xlu0 %v1310, 4
    %v1889 = vpop.permute.xlu0 %1888
    %1890 = vrot.lane.b32.xlu0 %v1311, 4
    %v1891 = vpop.permute.xlu0 %1890
    %1892 = vrot.lane.b32.xlu0 %v1312, 4
    %v1893 = vpop.permute.xlu0 %1892
    %1894 = vrot.lane.b32.xlu0 %v1313, 4
    %v1895 = vpop.permute.xlu0 %1894
    %1896 = vrot.lane.b32.xlu0 %v1314, 4
    %v1897 = vpop.permute.xlu0 %1896
    %1898 = vrot.lane.b32.xlu0 %v1315, 4
    %v1899 = vpop.permute.xlu0 %1898
    %1900 = vrot.lane.b32.xlu0 %v1316, 4
    %v1901 = vpop.permute.xlu0 %1900
    %1902 = vrot.lane.b32.xlu0 %v1317, 4
    %v1903 = vpop.permute.xlu0 %1902
    %1904 = vrot.lane.b32.xlu0 %v1318, 4
    %v1905 = vpop.permute.xlu0 %1904
    %1906 = vrot.lane.b32.xlu0 %v1319, 4
    %v1907 = vpop.permute.xlu0 %1906
    %1908 = vrot.lane.b32.xlu0 %v1320, 4
    %v1909 = vpop.permute.xlu0 %1908
    %1910 = vrot.lane.b32.xlu0 %v1321, 4
    %v1911 = vpop.permute.xlu0 %1910
    %1912 = vrot.lane.b32.xlu0 %v1322, 4
    %v1913 = vpop.permute.xlu0 %1912
    %1914 = vrot.lane.b32.xlu0 %v1323, 4
    %v1915 = vpop.permute.xlu0 %1914
    %1916 = vrot.lane.b32.xlu0 %v1324, 4
    %v1917 = vpop.permute.xlu0 %1916
    %1918 = vrot.lane.b32.xlu0 %v1325, 4
    %v1919 = vpop.permute.xlu0 %1918
    %1920 = vrot.lane.b32.xlu0 %v1326, 4
    %v1921 = vpop.permute.xlu0 %1920
    %1922 = vrot.lane.b32.xlu0 %v1327, 4
    %v1923 = vpop.permute.xlu0 %1922
    %1924 = vrot.lane.b32.xlu0 %v1328, 4
    %v1925 = vpop.permute.xlu0 %1924
    %1926 = vrot.lane.b32.xlu0 %v1329, 4
    %v1927 = vpop.permute.xlu0 %1926
    %1928 = vrot.lane.b32.xlu0 %v1330, 4
    %v1929 = vpop.permute.xlu0 %1928
    %1930 = vrot.lane.b32.xlu0 %v1331, 4
    %v1931 = vpop.permute.xlu0 %1930
    %1932 = vrot.lane.b32.xlu0 %v1332, 4
    %v1933 = vpop.permute.xlu0 %1932
    %1934 = vrot.lane.b32.xlu0 %v1333, 4
    %v1935 = vpop.permute.xlu0 %1934
    %1936 = vrot.lane.b32.xlu0 %v1334, 4
    %v1937 = vpop.permute.xlu0 %1936
    %1938 = vrot.lane.b32.xlu0 %v1335, 4
    %v1939 = vpop.permute.xlu0 %1938
    %1940 = vrot.lane.b32.xlu0 %v1336, 4
    %v1941 = vpop.permute.xlu0 %1940
    %1942 = vrot.lane.b32.xlu0 %v1337, 4
    %v1943 = vpop.permute.xlu0 %1942
    %1944 = vrot.lane.b32.xlu0 %v1338, 4
    %v1945 = vpop.permute.xlu0 %1944
    %1946 = vrot.lane.b32.xlu0 %v1339, 4
    %v1947 = vpop.permute.xlu0 %1946
    %1948 = vrot.lane.b32.xlu0 %v1340, 4
    %v1949 = vpop.permute.xlu0 %1948
    %1950 = vrot.lane.b32.xlu0 %v1341, 4
    %v1951 = vpop.permute.xlu0 %1950
    %1952 = vrot.lane.b32.xlu0 %v1342, 4
    %v1953 = vpop.permute.xlu0 %1952
    %1954 = vrot.lane.b32.xlu0 %v1343, 4
    %v1955 = vpop.permute.xlu0 %1954
    %1956 = vrot.lane.b32.xlu0 %v1344, 4
    %v1957 = vpop.permute.xlu0 %1956
    %1958 = vrot.lane.b32.xlu0 %v1345, 4
    %v1959 = vpop.permute.xlu0 %1958
    %1960 = vrot.lane.b32.xlu0 %v1346, 4
    %v1961 = vpop.permute.xlu0 %1960
    %1962 = vrot.lane.b32.xlu0 %v1347, 4
    %v1963 = vpop.permute.xlu0 %1962
    %1964 = vrot.lane.b32.xlu0 %v1348, 4
    %v1965 = vpop.permute.xlu0 %1964
    %1966 = vrot.lane.b32.xlu0 %v1349, 4
    %v1967 = vpop.permute.xlu0 %1966
    %1968 = vrot.lane.b32.xlu0 %v1350, 4
    %v1969 = vpop.permute.xlu0 %1968
    %1970 = vrot.lane.b32.xlu0 %v1351, 4
    %v1971 = vpop.permute.xlu0 %1970
    %1972 = vrot.lane.b32.xlu0 %v1352, 4
    %v1973 = vpop.permute.xlu0 %1972
    %1974 = vrot.lane.b32.xlu0 %v1353, 4
    %v1975 = vpop.permute.xlu0 %1974
    %1976 = vrot.lane.b32.xlu0 %v1354, 4
    %v1977 = vpop.permute.xlu0 %1976
    %1978 = vrot.lane.b32.xlu0 %v1355, 4
    %v1979 = vpop.permute.xlu0 %1978
    %1980 = vrot.lane.b32.xlu0 %v1356, 4
    %v1981 = vpop.permute.xlu0 %1980
    %1982 = vrot.lane.b32.xlu0 %v1357, 4
    %v1983 = vpop.permute.xlu0 %1982
    %1984 = vrot.lane.b32.xlu0 %v1358, 4
    %v1985 = vpop.permute.xlu0 %1984
    %1986 = vrot.lane.b32.xlu0 %v1359, 4
    %v1987 = vpop.permute.xlu0 %1986
    %1988 = vrot.lane.b32.xlu0 %v1360, 4
    %v1989 = vpop.permute.xlu0 %1988
    %1990 = vrot.lane.b32.xlu0 %v1361, 4
    %v1991 = vpop.permute.xlu0 %1990
    %1992 = vrot.lane.b32.xlu0 %v1362, 4
    %v1993 = vpop.permute.xlu0 %1992
    %1994 = vrot.lane.b32.xlu0 %v1363, 4
    %v1995 = vpop.permute.xlu0 %1994
    %1996 = vrot.lane.b32.xlu0 %v1364, 4
    %v1997 = vpop.permute.xlu0 %1996
    %1998 = vrot.lane.b32.xlu0 %v1365, 4
    %v1999 = vpop.permute.xlu0 %1998
    %2000 = vrot.lane.b32.xlu0 %v1366, 4
    %v2001 = vpop.permute.xlu0 %2000
    %2002 = vrot.lane.b32.xlu0 %v1367, 4
    %v2003 = vpop.permute.xlu0 %2002
    %2004 = vrot.lane.b32.xlu0 %v1368, 4
    %v2005 = vpop.permute.xlu0 %2004
    %2006 = vrot.lane.b32.xlu0 %v1369, 4
    %v2007 = vpop.permute.xlu0 %2006
    %2008 = vrot.lane.b32.xlu0 %v1370, 4
    %v2009 = vpop.permute.xlu0 %2008
    %2010 = vrot.lane.b32.xlu0 %v1371, 4
    %v2011 = vpop.permute.xlu0 %2010
    %2012 = vrot.lane.b32.xlu0 %v1372, 4
    %v2013 = vpop.permute.xlu0 %2012
    %2142 = vrot.lane.b32.xlu0 %v1373, 8
    %v2143 = vpop.permute.xlu0 %2142
    %2144 = vrot.lane.b32.xlu0 %v1374, 8
    %v2145 = vpop.permute.xlu0 %2144
    %2146 = vrot.lane.b32.xlu0 %v1375, 8
    %v2147 = vpop.permute.xlu0 %2146
    %2148 = vrot.lane.b32.xlu0 %v1376, 8
    %v2149 = vpop.permute.xlu0 %2148
    %2150 = vrot.lane.b32.xlu0 %v1377, 8
    %v2151 = vpop.permute.xlu0 %2150
    %2152 = vrot.lane.b32.xlu0 %v1378, 8
    %v2153 = vpop.permute.xlu0 %2152
    %2154 = vrot.lane.b32.xlu0 %v1379, 8
    %v2155 = vpop.permute.xlu0 %2154
    %2156 = vrot.lane.b32.xlu0 %v1380, 8
    %v2157 = vpop.permute.xlu0 %2156
    %2158 = vrot.lane.b32.xlu0 %v1381, 8
    %v2159 = vpop.permute.xlu0 %2158
    %2160 = vrot.lane.b32.xlu0 %v1382, 8
    %v2161 = vpop.permute.xlu0 %2160
    %2162 = vrot.lane.b32.xlu0 %v1383, 8
    %v2163 = vpop.permute.xlu0 %2162
    %2164 = vrot.lane.b32.xlu0 %v1384, 8
    %v2165 = vpop.permute.xlu0 %2164
    %2166 = vrot.lane.b32.xlu0 %v1385, 8
    %v2167 = vpop.permute.xlu0 %2166
    %2168 = vrot.lane.b32.xlu0 %v1386, 8
    %v2169 = vpop.permute.xlu0 %2168
    %2170 = vrot.lane.b32.xlu0 %v1387, 8
    %v2171 = vpop.permute.xlu0 %2170
    %2172 = vrot.lane.b32.xlu0 %v1388, 8
    %v2173 = vpop.permute.xlu0 %2172
    %2174 = vrot.lane.b32.xlu0 %v1389, 8
    %v2175 = vpop.permute.xlu0 %2174
    %2176 = vrot.lane.b32.xlu0 %v1390, 8
    %v2177 = vpop.permute.xlu0 %2176
    %2178 = vrot.lane.b32.xlu0 %v1391, 8
    %v2179 = vpop.permute.xlu0 %2178
    %2180 = vrot.lane.b32.xlu0 %v1392, 8
    %v2181 = vpop.permute.xlu0 %2180
    %2182 = vrot.lane.b32.xlu0 %v1393, 8
    %v2183 = vpop.permute.xlu0 %2182
    %2184 = vrot.lane.b32.xlu0 %v1394, 8
    %v2185 = vpop.permute.xlu0 %2184
    %2186 = vrot.lane.b32.xlu0 %v1395, 8
    %v2187 = vpop.permute.xlu0 %2186
    %2188 = vrot.lane.b32.xlu0 %v1396, 8
    %v2189 = vpop.permute.xlu0 %2188
    %2190 = vrot.lane.b32.xlu0 %v1397, 8
    %v2191 = vpop.permute.xlu0 %2190
    %2192 = vrot.lane.b32.xlu0 %v1398, 8
    %v2193 = vpop.permute.xlu0 %2192
    %2194 = vrot.lane.b32.xlu0 %v1399, 8
    %v2195 = vpop.permute.xlu0 %2194
    %2196 = vrot.lane.b32.xlu0 %v1400, 8
    %v2197 = vpop.permute.xlu0 %2196
    %2198 = vrot.lane.b32.xlu0 %v1401, 8
    %v2199 = vpop.permute.xlu0 %2198
    %2200 = vrot.lane.b32.xlu0 %v1402, 8
    %v2201 = vpop.permute.xlu0 %2200
    %2202 = vrot.lane.b32.xlu0 %v1403, 8
    %v2203 = vpop.permute.xlu0 %2202
    %2204 = vrot.lane.b32.xlu0 %v1404, 8
    %v2205 = vpop.permute.xlu0 %2204
    %2206 = vrot.lane.b32.xlu0 %v1405, 8
    %v2207 = vpop.permute.xlu0 %2206
    %2208 = vrot.lane.b32.xlu0 %v1406, 8
    %v2209 = vpop.permute.xlu0 %2208
    %2210 = vrot.lane.b32.xlu0 %v1407, 8
    %v2211 = vpop.permute.xlu0 %2210
    %2212 = vrot.lane.b32.xlu0 %v1408, 8
    %v2213 = vpop.permute.xlu0 %2212
    %2214 = vrot.lane.b32.xlu0 %v1409, 8
    %v2215 = vpop.permute.xlu0 %2214
    %2216 = vrot.lane.b32.xlu0 %v1410, 8
    %v2217 = vpop.permute.xlu0 %2216
    %2218 = vrot.lane.b32.xlu0 %v1411, 8
    %v2219 = vpop.permute.xlu0 %2218
    %2220 = vrot.lane.b32.xlu0 %v1412, 8
    %v2221 = vpop.permute.xlu0 %2220
    %2222 = vrot.lane.b32.xlu0 %v1413, 8
    %v2223 = vpop.permute.xlu0 %2222
    %2224 = vrot.lane.b32.xlu0 %v1414, 8
    %v2225 = vpop.permute.xlu0 %2224
    %2226 = vrot.lane.b32.xlu0 %v1415, 8
    %v2227 = vpop.permute.xlu0 %2226
    %2228 = vrot.lane.b32.xlu0 %v1416, 8
    %v2229 = vpop.permute.xlu0 %2228
    %2230 = vrot.lane.b32.xlu0 %v1417, 8
    %v2231 = vpop.permute.xlu0 %2230
    %2232 = vrot.lane.b32.xlu0 %v1418, 8
    %v2233 = vpop.permute.xlu0 %2232
    %2234 = vrot.lane.b32.xlu0 %v1419, 8
    %v2235 = vpop.permute.xlu0 %2234
    %2236 = vrot.lane.b32.xlu0 %v1420, 8
    %v2237 = vpop.permute.xlu0 %2236
    %2238 = vrot.lane.b32.xlu0 %v1421, 8
    %v2239 = vpop.permute.xlu0 %2238
    %2240 = vrot.lane.b32.xlu0 %v1422, 8
    %v2241 = vpop.permute.xlu0 %2240
    %2242 = vrot.lane.b32.xlu0 %v1423, 8
    %v2243 = vpop.permute.xlu0 %2242
    %2244 = vrot.lane.b32.xlu0 %v1424, 8
    %v2245 = vpop.permute.xlu0 %2244
    %2246 = vrot.lane.b32.xlu0 %v1425, 8
    %v2247 = vpop.permute.xlu0 %2246
    %2248 = vrot.lane.b32.xlu0 %v1426, 8
    %v2249 = vpop.permute.xlu0 %2248
    %2250 = vrot.lane.b32.xlu0 %v1427, 8
    %v2251 = vpop.permute.xlu0 %2250
    %2252 = vrot.lane.b32.xlu0 %v1428, 8
    %v2253 = vpop.permute.xlu0 %2252
    %2254 = vrot.lane.b32.xlu0 %v1429, 8
    %v2255 = vpop.permute.xlu0 %2254
    %2256 = vrot.lane.b32.xlu0 %v1430, 8
    %v2257 = vpop.permute.xlu0 %2256
    %2258 = vrot.lane.b32.xlu0 %v1431, 8
    %v2259 = vpop.permute.xlu0 %2258
    %2260 = vrot.lane.b32.xlu0 %v1432, 8
    %v2261 = vpop.permute.xlu0 %2260
    %2262 = vrot.lane.b32.xlu0 %v1433, 8
    %v2263 = vpop.permute.xlu0 %2262
    %2264 = vrot.lane.b32.xlu0 %v1434, 8
    %v2265 = vpop.permute.xlu0 %2264
    %2266 = vrot.lane.b32.xlu0 %v1435, 8
    %v2267 = vpop.permute.xlu0 %2266
    %2268 = vrot.lane.b32.xlu0 %v1436, 8
    %v2269 = vpop.permute.xlu0 %2268
    %2398 = vrot.lane.b32.xlu0 %v1437, 12
    %v2399 = vpop.permute.xlu0 %2398
    %2400 = vrot.lane.b32.xlu0 %v1438, 12
    %v2401 = vpop.permute.xlu0 %2400
    %2402 = vrot.lane.b32.xlu0 %v1439, 12
    %v2403 = vpop.permute.xlu0 %2402
    %2404 = vrot.lane.b32.xlu0 %v1440, 12
    %v2405 = vpop.permute.xlu0 %2404
    %2406 = vrot.lane.b32.xlu0 %v1441, 12
    %v2407 = vpop.permute.xlu0 %2406
    %2408 = vrot.lane.b32.xlu0 %v1442, 12
    %v2409 = vpop.permute.xlu0 %2408
    %2410 = vrot.lane.b32.xlu0 %v1443, 12
    %v2411 = vpop.permute.xlu0 %2410
    %2412 = vrot.lane.b32.xlu0 %v1444, 12
    %v2413 = vpop.permute.xlu0 %2412
    %2414 = vrot.lane.b32.xlu0 %v1445, 12
    %v2415 = vpop.permute.xlu0 %2414
    %2416 = vrot.lane.b32.xlu0 %v1446, 12
    %v2417 = vpop.permute.xlu0 %2416
    %2418 = vrot.lane.b32.xlu0 %v1447, 12
    %v2419 = vpop.permute.xlu0 %2418
    %2420 = vrot.lane.b32.xlu0 %v1448, 12
    %v2421 = vpop.permute.xlu0 %2420
    %2422 = vrot.lane.b32.xlu0 %v1449, 12
    %v2423 = vpop.permute.xlu0 %2422
    %2424 = vrot.lane.b32.xlu0 %v1450, 12
    %v2425 = vpop.permute.xlu0 %2424
    %2426 = vrot.lane.b32.xlu0 %v1451, 12
    %v2427 = vpop.permute.xlu0 %2426
    %2428 = vrot.lane.b32.xlu0 %v1452, 12
    %v2429 = vpop.permute.xlu0 %2428
    %2430 = vrot.lane.b32.xlu0 %v1453, 12
    %v2431 = vpop.permute.xlu0 %2430
    %2432 = vrot.lane.b32.xlu0 %v1454, 12
    %v2433 = vpop.permute.xlu0 %2432
    %2434 = vrot.lane.b32.xlu0 %v1455, 12
    %v2435 = vpop.permute.xlu0 %2434
    %2436 = vrot.lane.b32.xlu0 %v1456, 12
    %v2437 = vpop.permute.xlu0 %2436
    %2438 = vrot.lane.b32.xlu0 %v1457, 12
    %v2439 = vpop.permute.xlu0 %2438
    %2440 = vrot.lane.b32.xlu0 %v1458, 12
    %v2441 = vpop.permute.xlu0 %2440
    %2442 = vrot.lane.b32.xlu0 %v1459, 12
    %v2443 = vpop.permute.xlu0 %2442
    %2444 = vrot.lane.b32.xlu0 %v1460, 12
    %v2445 = vpop.permute.xlu0 %2444
    %2446 = vrot.lane.b32.xlu0 %v1461, 12
    %v2447 = vpop.permute.xlu0 %2446
    %2448 = vrot.lane.b32.xlu0 %v1462, 12
    %v2449 = vpop.permute.xlu0 %2448
    %2450 = vrot.lane.b32.xlu0 %v1463, 12
    %v2451 = vpop.permute.xlu0 %2450
    %2452 = vrot.lane.b32.xlu0 %v1464, 12
    %v2453 = vpop.permute.xlu0 %2452
    %2454 = vrot.lane.b32.xlu0 %v1465, 12
    %v2455 = vpop.permute.xlu0 %2454
    %2456 = vrot.lane.b32.xlu0 %v1466, 12
    %v2457 = vpop.permute.xlu0 %2456
    %2458 = vrot.lane.b32.xlu0 %v1467, 12
    %v2459 = vpop.permute.xlu0 %2458
    %2460 = vrot.lane.b32.xlu0 %v1468, 12
    %v2461 = vpop.permute.xlu0 %2460
    %2462 = vrot.lane.b32.xlu0 %v1469, 12
    %v2463 = vpop.permute.xlu0 %2462
    %2464 = vrot.lane.b32.xlu0 %v1470, 12
    %v2465 = vpop.permute.xlu0 %2464
    %2466 = vrot.lane.b32.xlu0 %v1471, 12
    %v2467 = vpop.permute.xlu0 %2466
    %2468 = vrot.lane.b32.xlu0 %v1472, 12
    %v2469 = vpop.permute.xlu0 %2468
    %2470 = vrot.lane.b32.xlu0 %v1473, 12
    %v2471 = vpop.permute.xlu0 %2470
    %2472 = vrot.lane.b32.xlu0 %v1474, 12
    %v2473 = vpop.permute.xlu0 %2472
    %2474 = vrot.lane.b32.xlu0 %v1475, 12
    %v2475 = vpop.permute.xlu0 %2474
    %2476 = vrot.lane.b32.xlu0 %v1476, 12
    %v2477 = vpop.permute.xlu0 %2476
    %2478 = vrot.lane.b32.xlu0 %v1477, 12
    %v2479 = vpop.permute.xlu0 %2478
    %2480 = vrot.lane.b32.xlu0 %v1478, 12
    %v2481 = vpop.permute.xlu0 %2480
    %2482 = vrot.lane.b32.xlu0 %v1479, 12
    %v2483 = vpop.permute.xlu0 %2482
    %2484 = vrot.lane.b32.xlu0 %v1480, 12
    %v2485 = vpop.permute.xlu0 %2484
    %2486 = vrot.lane.b32.xlu0 %v1481, 12
    %v2487 = vpop.permute.xlu0 %2486
    %2488 = vrot.lane.b32.xlu0 %v1482, 12
    %v2489 = vpop.permute.xlu0 %2488
    %2490 = vrot.lane.b32.xlu0 %v1483, 12
    %v2491 = vpop.permute.xlu0 %2490
    %2492 = vrot.lane.b32.xlu0 %v1484, 12
    %v2493 = vpop.permute.xlu0 %2492
    %2494 = vrot.lane.b32.xlu0 %v1485, 12
    %v2495 = vpop.permute.xlu0 %2494
    %2496 = vrot.lane.b32.xlu0 %v1486, 12
    %v2497 = vpop.permute.xlu0 %2496
    %2498 = vrot.lane.b32.xlu0 %v1487, 12
    %v2499 = vpop.permute.xlu0 %2498
    %2500 = vrot.lane.b32.xlu0 %v1488, 12
    %v2501 = vpop.permute.xlu0 %2500
    %2502 = vrot.lane.b32.xlu0 %v1489, 12
    %v2503 = vpop.permute.xlu0 %2502
    %2504 = vrot.lane.b32.xlu0 %v1490, 12
    %v2505 = vpop.permute.xlu0 %2504
    %2506 = vrot.lane.b32.xlu0 %v1491, 12
    %v2507 = vpop.permute.xlu0 %2506
    %2508 = vrot.lane.b32.xlu0 %v1492, 12
    %v2509 = vpop.permute.xlu0 %2508
    %2510 = vrot.lane.b32.xlu0 %v1493, 12
    %v2511 = vpop.permute.xlu0 %2510
    %2512 = vrot.lane.b32.xlu0 %v1494, 12
    %v2513 = vpop.permute.xlu0 %2512
    %2514 = vrot.lane.b32.xlu0 %v1495, 12
    %v2515 = vpop.permute.xlu0 %2514
    %2516 = vrot.lane.b32.xlu0 %v1496, 12
    %v2517 = vpop.permute.xlu0 %2516
    %2518 = vrot.lane.b32.xlu0 %v1497, 12
    %v2519 = vpop.permute.xlu0 %2518
    %2520 = vrot.lane.b32.xlu0 %v1498, 12
    %v2521 = vpop.permute.xlu0 %2520
    %2522 = vrot.lane.b32.xlu0 %v1499, 12
    %v2523 = vpop.permute.xlu0 %2522
    %2524 = vrot.lane.b32.xlu0 %v1500, 12
    %v2525 = vpop.permute.xlu0 %2524
    %2654 = vrot.lane.b32.xlu0 %v1501, 16
    %v2655 = vpop.permute.xlu0 %2654
    %2656 = vrot.lane.b32.xlu0 %v1502, 16
    %v2657 = vpop.permute.xlu0 %2656
    %2658 = vrot.lane.b32.xlu0 %v1503, 16
    %v2659 = vpop.permute.xlu0 %2658
    %2660 = vrot.lane.b32.xlu0 %v1504, 16
    %v2661 = vpop.permute.xlu0 %2660
    %2662 = vrot.lane.b32.xlu0 %v1505, 16
    %v2663 = vpop.permute.xlu0 %2662
    %2664 = vrot.lane.b32.xlu0 %v1506, 16
    %v2665 = vpop.permute.xlu0 %2664
    %2666 = vrot.lane.b32.xlu0 %v1507, 16
    %v2667 = vpop.permute.xlu0 %2666
    %2668 = vrot.lane.b32.xlu0 %v1508, 16
    %v2669 = vpop.permute.xlu0 %2668
    %2670 = vrot.lane.b32.xlu0 %v1509, 16
    %v2671 = vpop.permute.xlu0 %2670
    %2672 = vrot.lane.b32.xlu0 %v1510, 16
    %v2673 = vpop.permute.xlu0 %2672
    %2674 = vrot.lane.b32.xlu0 %v1511, 16
    %v2675 = vpop.permute.xlu0 %2674
    %2676 = vrot.lane.b32.xlu0 %v1512, 16
    %v2677 = vpop.permute.xlu0 %2676
    %2678 = vrot.lane.b32.xlu0 %v1513, 16
    %v2679 = vpop.permute.xlu0 %2678
    %2680 = vrot.lane.b32.xlu0 %v1514, 16
    %v2681 = vpop.permute.xlu0 %2680
    %2682 = vrot.lane.b32.xlu0 %v1515, 16
    %v2683 = vpop.permute.xlu0 %2682
    %2684 = vrot.lane.b32.xlu0 %v1516, 16
    %v2685 = vpop.permute.xlu0 %2684
    %2686 = vrot.lane.b32.xlu0 %v1517, 16
    %v2687 = vpop.permute.xlu0 %2686
    %2688 = vrot.lane.b32.xlu0 %v1518, 16
    %v2689 = vpop.permute.xlu0 %2688
    %2690 = vrot.lane.b32.xlu0 %v1519, 16
    %v2691 = vpop.permute.xlu0 %2690
    %2692 = vrot.lane.b32.xlu0 %v1520, 16
    %v2693 = vpop.permute.xlu0 %2692
    %2694 = vrot.lane.b32.xlu0 %v1521, 16
    %v2695 = vpop.permute.xlu0 %2694
    %2696 = vrot.lane.b32.xlu0 %v1522, 16
    %v2697 = vpop.permute.xlu0 %2696
    %2698 = vrot.lane.b32.xlu0 %v1523, 16
    %v2699 = vpop.permute.xlu0 %2698
    %2700 = vrot.lane.b32.xlu0 %v1524, 16
    %v2701 = vpop.permute.xlu0 %2700
    %2702 = vrot.lane.b32.xlu0 %v1525, 16
    %v2703 = vpop.permute.xlu0 %2702
    %2704 = vrot.lane.b32.xlu0 %v1526, 16
    %v2705 = vpop.permute.xlu0 %2704
    %2706 = vrot.lane.b32.xlu0 %v1527, 16
    %v2707 = vpop.permute.xlu0 %2706
    %2708 = vrot.lane.b32.xlu0 %v1528, 16
    %v2709 = vpop.permute.xlu0 %2708
    %2710 = vrot.lane.b32.xlu0 %v1529, 16
    %v2711 = vpop.permute.xlu0 %2710
    %2712 = vrot.lane.b32.xlu0 %v1530, 16
    %v2713 = vpop.permute.xlu0 %2712
    %2714 = vrot.lane.b32.xlu0 %v1531, 16
    %v2715 = vpop.permute.xlu0 %2714
    %2716 = vrot.lane.b32.xlu0 %v1532, 16
    %v2717 = vpop.permute.xlu0 %2716
    %2718 = vrot.lane.b32.xlu0 %v1533, 16
    %v2719 = vpop.permute.xlu0 %2718
    %2720 = vrot.lane.b32.xlu0 %v1534, 16
    %v2721 = vpop.permute.xlu0 %2720
    %2722 = vrot.lane.b32.xlu0 %v1535, 16
    %v2723 = vpop.permute.xlu0 %2722
    %2724 = vrot.lane.b32.xlu0 %v1536, 16
    %v2725 = vpop.permute.xlu0 %2724
    %2726 = vrot.lane.b32.xlu0 %v1537, 16
    %v2727 = vpop.permute.xlu0 %2726
    %2728 = vrot.lane.b32.xlu0 %v1538, 16
    %v2729 = vpop.permute.xlu0 %2728
    %2730 = vrot.lane.b32.xlu0 %v1539, 16
    %v2731 = vpop.permute.xlu0 %2730
    %2732 = vrot.lane.b32.xlu0 %v1540, 16
    %v2733 = vpop.permute.xlu0 %2732
    %2734 = vrot.lane.b32.xlu0 %v1541, 16
    %v2735 = vpop.permute.xlu0 %2734
    %2736 = vrot.lane.b32.xlu0 %v1542, 16
    %v2737 = vpop.permute.xlu0 %2736
    %2738 = vrot.lane.b32.xlu0 %v1543, 16
    %v2739 = vpop.permute.xlu0 %2738
    %2740 = vrot.lane.b32.xlu0 %v1544, 16
    %v2741 = vpop.permute.xlu0 %2740
    %2742 = vrot.lane.b32.xlu0 %v1545, 16
    %v2743 = vpop.permute.xlu0 %2742
    %2744 = vrot.lane.b32.xlu0 %v1546, 16
    %v2745 = vpop.permute.xlu0 %2744
    %2746 = vrot.lane.b32.xlu0 %v1547, 16
    %v2747 = vpop.permute.xlu0 %2746
    %2748 = vrot.lane.b32.xlu0 %v1548, 16
    %v2749 = vpop.permute.xlu0 %2748
    %2750 = vrot.lane.b32.xlu0 %v1549, 16
    %v2751 = vpop.permute.xlu0 %2750
    %2752 = vrot.lane.b32.xlu0 %v1550, 16
    %v2753 = vpop.permute.xlu0 %2752
    %2754 = vrot.lane.b32.xlu0 %v1551, 16
    %v2755 = vpop.permute.xlu0 %2754
    %2756 = vrot.lane.b32.xlu0 %v1552, 16
    %v2757 = vpop.permute.xlu0 %2756
    %2758 = vrot.lane.b32.xlu0 %v1553, 16
    %v2759 = vpop.permute.xlu0 %2758
    %2760 = vrot.lane.b32.xlu0 %v1554, 16
    %v2761 = vpop.permute.xlu0 %2760
    %2762 = vrot.lane.b32.xlu0 %v1555, 16
    %v2763 = vpop.permute.xlu0 %2762
    %2764 = vrot.lane.b32.xlu0 %v1556, 16
    %v2765 = vpop.permute.xlu0 %2764
    %2766 = vrot.lane.b32.xlu0 %v1557, 16
    %v2767 = vpop.permute.xlu0 %2766
    %2768 = vrot.lane.b32.xlu0 %v1558, 16
    %v2769 = vpop.permute.xlu0 %2768
    %2770 = vrot.lane.b32.xlu0 %v1559, 16
    %v2771 = vpop.permute.xlu0 %2770
    %2772 = vrot.lane.b32.xlu0 %v1560, 16
    %v2773 = vpop.permute.xlu0 %2772
    %2774 = vrot.lane.b32.xlu0 %v1561, 16
    %v2775 = vpop.permute.xlu0 %2774
    %2776 = vrot.lane.b32.xlu0 %v1562, 16
    %v2777 = vpop.permute.xlu0 %2776
    %2778 = vrot.lane.b32.xlu0 %v1563, 16
    %v2779 = vpop.permute.xlu0 %2778
    %2780 = vrot.lane.b32.xlu0 %v1564, 16
    %v2781 = vpop.permute.xlu0 %2780
    %2910 = vrot.lane.b32.xlu0 %v1565, 20
    %v2911 = vpop.permute.xlu0 %2910
    %2912 = vrot.lane.b32.xlu0 %v1566, 20
    %v2913 = vpop.permute.xlu0 %2912
    %2914 = vrot.lane.b32.xlu0 %v1567, 20
    %v2915 = vpop.permute.xlu0 %2914
    %2916 = vrot.lane.b32.xlu0 %v1568, 20
    %v2917 = vpop.permute.xlu0 %2916
    %2918 = vrot.lane.b32.xlu0 %v1569, 20
    %v2919 = vpop.permute.xlu0 %2918
    %2920 = vrot.lane.b32.xlu0 %v1570, 20
    %v2921 = vpop.permute.xlu0 %2920
    %2922 = vrot.lane.b32.xlu0 %v1571, 20
    %v2923 = vpop.permute.xlu0 %2922
    %2924 = vrot.lane.b32.xlu0 %v1572, 20
    %v2925 = vpop.permute.xlu0 %2924
    %2926 = vrot.lane.b32.xlu0 %v1573, 20
    %v2927 = vpop.permute.xlu0 %2926
    %2928 = vrot.lane.b32.xlu0 %v1574, 20
    %v2929 = vpop.permute.xlu0 %2928
    %2930 = vrot.lane.b32.xlu0 %v1575, 20
    %v2931 = vpop.permute.xlu0 %2930
    %2932 = vrot.lane.b32.xlu0 %v1576, 20
    %v2933 = vpop.permute.xlu0 %2932
    %2934 = vrot.lane.b32.xlu0 %v1577, 20
    %v2935 = vpop.permute.xlu0 %2934
    %2936 = vrot.lane.b32.xlu0 %v1578, 20
    %v2937 = vpop.permute.xlu0 %2936
    %2938 = vrot.lane.b32.xlu0 %v1579, 20
    %v2939 = vpop.permute.xlu0 %2938
    %2940 = vrot.lane.b32.xlu0 %v1580, 20
    %v2941 = vpop.permute.xlu0 %2940
    %2942 = vrot.lane.b32.xlu0 %v1581, 20
    %v2943 = vpop.permute.xlu0 %2942
    %2944 = vrot.lane.b32.xlu0 %v1582, 20
    %v2945 = vpop.permute.xlu0 %2944
    %2946 = vrot.lane.b32.xlu0 %v1583, 20
    %v2947 = vpop.permute.xlu0 %2946
    %2948 = vrot.lane.b32.xlu0 %v1584, 20
    %v2949 = vpop.permute.xlu0 %2948
    %2950 = vrot.lane.b32.xlu0 %v1585, 20
    %v2951 = vpop.permute.xlu0 %2950
    %2952 = vrot.lane.b32.xlu0 %v1586, 20
    %v2953 = vpop.permute.xlu0 %2952
    %2954 = vrot.lane.b32.xlu0 %v1587, 20
    %v2955 = vpop.permute.xlu0 %2954
    %2956 = vrot.lane.b32.xlu0 %v1588, 20
    %v2957 = vpop.permute.xlu0 %2956
    %2958 = vrot.lane.b32.xlu0 %v1589, 20
    %v2959 = vpop.permute.xlu0 %2958
    %2960 = vrot.lane.b32.xlu0 %v1590, 20
    %v2961 = vpop.permute.xlu0 %2960
    %2962 = vrot.lane.b32.xlu0 %v1591, 20
    %v2963 = vpop.permute.xlu0 %2962
    %2964 = vrot.lane.b32.xlu0 %v1592, 20
    %v2965 = vpop.permute.xlu0 %2964
    %2966 = vrot.lane.b32.xlu0 %v1593, 20
    %v2967 = vpop.permute.xlu0 %2966
    %2968 = vrot.lane.b32.xlu0 %v1594, 20
    %v2969 = vpop.permute.xlu0 %2968
    %2970 = vrot.lane.b32.xlu0 %v1595, 20
    %v2971 = vpop.permute.xlu0 %2970
    %2972 = vrot.lane.b32.xlu0 %v1596, 20
    %v2973 = vpop.permute.xlu0 %2972
    %2974 = vrot.lane.b32.xlu0 %v1597, 20
    %v2975 = vpop.permute.xlu0 %2974
    %2976 = vrot.lane.b32.xlu0 %v1598, 20
    %v2977 = vpop.permute.xlu0 %2976
    %2978 = vrot.lane.b32.xlu0 %v1599, 20
    %v2979 = vpop.permute.xlu0 %2978
    %2980 = vrot.lane.b32.xlu0 %v1600, 20
    %v2981 = vpop.permute.xlu0 %2980
    %2982 = vrot.lane.b32.xlu0 %v1601, 20
    %v2983 = vpop.permute.xlu0 %2982
    %2984 = vrot.lane.b32.xlu0 %v1602, 20
    %v2985 = vpop.permute.xlu0 %2984
    %2986 = vrot.lane.b32.xlu0 %v1603, 20
    %v2987 = vpop.permute.xlu0 %2986
    %2988 = vrot.lane.b32.xlu0 %v1604, 20
    %v2989 = vpop.permute.xlu0 %2988
    %2990 = vrot.lane.b32.xlu0 %v1605, 20
    %v2991 = vpop.permute.xlu0 %2990
    %2992 = vrot.lane.b32.xlu0 %v1606, 20
    %v2993 = vpop.permute.xlu0 %2992
    %2994 = vrot.lane.b32.xlu0 %v1607, 20
    %v2995 = vpop.permute.xlu0 %2994
    %2996 = vrot.lane.b32.xlu0 %v1608, 20
    %v2997 = vpop.permute.xlu0 %2996
    %2998 = vrot.lane.b32.xlu0 %v1609, 20
    %v2999 = vpop.permute.xlu0 %2998
    %3000 = vrot.lane.b32.xlu0 %v1610, 20
    %v3001 = vpop.permute.xlu0 %3000
    %3002 = vrot.lane.b32.xlu0 %v1611, 20
    %v3003 = vpop.permute.xlu0 %3002
    %3004 = vrot.lane.b32.xlu0 %v1612, 20
    %v3005 = vpop.permute.xlu0 %3004
    %3006 = vrot.lane.b32.xlu0 %v1613, 20
    %v3007 = vpop.permute.xlu0 %3006
    %3008 = vrot.lane.b32.xlu0 %v1614, 20
    %v3009 = vpop.permute.xlu0 %3008
    %3010 = vrot.lane.b32.xlu0 %v1615, 20
    %v3011 = vpop.permute.xlu0 %3010
    %3012 = vrot.lane.b32.xlu0 %v1616, 20
    %v3013 = vpop.permute.xlu0 %3012
    %3014 = vrot.lane.b32.xlu0 %v1617, 20
    %v3015 = vpop.permute.xlu0 %3014
    %3016 = vrot.lane.b32.xlu0 %v1618, 20
    %v3017 = vpop.permute.xlu0 %3016
    %3018 = vrot.lane.b32.xlu0 %v1619, 20
    %v3019 = vpop.permute.xlu0 %3018
    %3020 = vrot.lane.b32.xlu0 %v1620, 20
    %v3021 = vpop.permute.xlu0 %3020
    %3022 = vrot.lane.b32.xlu0 %v1621, 20
    %v3023 = vpop.permute.xlu0 %3022
    %3024 = vrot.lane.b32.xlu0 %v1622, 20
    %v3025 = vpop.permute.xlu0 %3024
    %3026 = vrot.lane.b32.xlu0 %v1623, 20
    %v3027 = vpop.permute.xlu0 %3026
    %3028 = vrot.lane.b32.xlu0 %v1624, 20
    %v3029 = vpop.permute.xlu0 %3028
    %3030 = vrot.lane.b32.xlu0 %v1625, 20
    %v3031 = vpop.permute.xlu0 %3030
    %3032 = vrot.lane.b32.xlu0 %v1626, 20
    %v3033 = vpop.permute.xlu0 %3032
    %3034 = vrot.lane.b32.xlu0 %v1627, 20
    %v3035 = vpop.permute.xlu0 %3034
    %3036 = vrot.lane.b32.xlu0 %v1628, 20
    %v3037 = vpop.permute.xlu0 %3036
    %3166 = vrot.lane.b32.xlu0 %v1630, 24
    %v3167 = vpop.permute.xlu0 %3166
    %3168 = vrot.lane.b32.xlu0 %v1631, 24
    %v3169 = vpop.permute.xlu0 %3168
    %3170 = vrot.lane.b32.xlu0 %v1632, 24
    %v3171 = vpop.permute.xlu0 %3170
    %3172 = vrot.lane.b32.xlu0 %v1633, 24
    %v3173 = vpop.permute.xlu0 %3172
    %3174 = vrot.lane.b32.xlu0 %v1634, 24
    %v3175 = vpop.permute.xlu0 %3174
    %3176 = vrot.lane.b32.xlu0 %v1635, 24
    %v3177 = vpop.permute.xlu0 %3176
    %3178 = vrot.lane.b32.xlu0 %v1636, 24
    %v3179 = vpop.permute.xlu0 %3178
    %3180 = vrot.lane.b32.xlu0 %v1637, 24
    %v3181 = vpop.permute.xlu0 %3180
    %3182 = vrot.lane.b32.xlu0 %v1638, 24
    %v3183 = vpop.permute.xlu0 %3182
    %3184 = vrot.lane.b32.xlu0 %v1639, 24
    %v3185 = vpop.permute.xlu0 %3184
    %3186 = vrot.lane.b32.xlu0 %v1640, 24
    %v3187 = vpop.permute.xlu0 %3186
    %3188 = vrot.lane.b32.xlu0 %v1641, 24
    %v3189 = vpop.permute.xlu0 %3188
    %3190 = vrot.lane.b32.xlu0 %v1642, 24
    %v3191 = vpop.permute.xlu0 %3190
    %3192 = vrot.lane.b32.xlu0 %v1643, 24
    %v3193 = vpop.permute.xlu0 %3192
    %3194 = vrot.lane.b32.xlu0 %v1644, 24
    %v3195 = vpop.permute.xlu0 %3194
    %3196 = vrot.lane.b32.xlu0 %v1645, 24
    %v3197 = vpop.permute.xlu0 %3196
    %3198 = vrot.lane.b32.xlu0 %v1646, 24
    %v3199 = vpop.permute.xlu0 %3198
    %3200 = vrot.lane.b32.xlu0 %v1647, 24
    %v3201 = vpop.permute.xlu0 %3200
    %3202 = vrot.lane.b32.xlu0 %v1648, 24
    %v3203 = vpop.permute.xlu0 %3202
    %3204 = vrot.lane.b32.xlu0 %v1649, 24
    %v3205 = vpop.permute.xlu0 %3204
    %3206 = vrot.lane.b32.xlu0 %v1650, 24
    %v3207 = vpop.permute.xlu0 %3206
    %3208 = vrot.lane.b32.xlu0 %v1651, 24
    %v3209 = vpop.permute.xlu0 %3208
    %3210 = vrot.lane.b32.xlu0 %v1652, 24
    %v3211 = vpop.permute.xlu0 %3210
    %3212 = vrot.lane.b32.xlu0 %v1653, 24
    %v3213 = vpop.permute.xlu0 %3212
    %3214 = vrot.lane.b32.xlu0 %v1654, 24
    %v3215 = vpop.permute.xlu0 %3214
    %3216 = vrot.lane.b32.xlu0 %v1655, 24
    %v3217 = vpop.permute.xlu0 %3216
    %3218 = vrot.lane.b32.xlu0 %v1656, 24
    %v3219 = vpop.permute.xlu0 %3218
    %3220 = vrot.lane.b32.xlu0 %v1657, 24
    %v3221 = vpop.permute.xlu0 %3220
    %3222 = vrot.lane.b32.xlu0 %v1658, 24
    %v3223 = vpop.permute.xlu0 %3222
    %3224 = vrot.lane.b32.xlu0 %v1659, 24
    %v3225 = vpop.permute.xlu0 %3224
    %3226 = vrot.lane.b32.xlu0 %v1660, 24
    %v3227 = vpop.permute.xlu0 %3226
    %3228 = vrot.lane.b32.xlu0 %v1661, 24
    %v3229 = vpop.permute.xlu0 %3228
    %3230 = vrot.lane.b32.xlu0 %v1662, 24
    %v3231 = vpop.permute.xlu0 %3230
    %3232 = vrot.lane.b32.xlu0 %v1663, 24
    %v3233 = vpop.permute.xlu0 %3232
    %3234 = vrot.lane.b32.xlu0 %v1664, 24
    %v3235 = vpop.permute.xlu0 %3234
    %3236 = vrot.lane.b32.xlu0 %v1665, 24
    %v3237 = vpop.permute.xlu0 %3236
    %3238 = vrot.lane.b32.xlu0 %v1666, 24
    %v3239 = vpop.permute.xlu0 %3238
    %3240 = vrot.lane.b32.xlu0 %v1667, 24
    %v3241 = vpop.permute.xlu0 %3240
    %3242 = vrot.lane.b32.xlu0 %v1668, 24
    %v3243 = vpop.permute.xlu0 %3242
    %3244 = vrot.lane.b32.xlu0 %v1669, 24
    %v3245 = vpop.permute.xlu0 %3244
    %3246 = vrot.lane.b32.xlu0 %v1670, 24
    %v3247 = vpop.permute.xlu0 %3246
    %3248 = vrot.lane.b32.xlu0 %v1671, 24
    %v3249 = vpop.permute.xlu0 %3248
    %3250 = vrot.lane.b32.xlu0 %v1672, 24
    %v3251 = vpop.permute.xlu0 %3250
    %3252 = vrot.lane.b32.xlu0 %v1673, 24
    %v3253 = vpop.permute.xlu0 %3252
    %3254 = vrot.lane.b32.xlu0 %v1674, 24
    %v3255 = vpop.permute.xlu0 %3254
    %3256 = vrot.lane.b32.xlu0 %v1675, 24
    %v3257 = vpop.permute.xlu0 %3256
    %3258 = vrot.lane.b32.xlu0 %v1676, 24
    %v3259 = vpop.permute.xlu0 %3258
    %3260 = vrot.lane.b32.xlu0 %v1677, 24
    %v3261 = vpop.permute.xlu0 %3260
    %3262 = vrot.lane.b32.xlu0 %v1678, 24
    %v3263 = vpop.permute.xlu0 %3262
    %3264 = vrot.lane.b32.xlu0 %v1679, 24
    %v3265 = vpop.permute.xlu0 %3264
    %3266 = vrot.lane.b32.xlu0 %v1680, 24
    %v3267 = vpop.permute.xlu0 %3266
    %3268 = vrot.lane.b32.xlu0 %v1681, 24
    %v3269 = vpop.permute.xlu0 %3268
    %3270 = vrot.lane.b32.xlu0 %v1682, 24
    %v3271 = vpop.permute.xlu0 %3270
    %3272 = vrot.lane.b32.xlu0 %v1683, 24
    %v3273 = vpop.permute.xlu0 %3272
    %3274 = vrot.lane.b32.xlu0 %v1684, 24
    %v3275 = vpop.permute.xlu0 %3274
    %3276 = vrot.lane.b32.xlu0 %v1685, 24
    %v3277 = vpop.permute.xlu0 %3276
    %3278 = vrot.lane.b32.xlu0 %v1686, 24
    %v3279 = vpop.permute.xlu0 %3278
    %3280 = vrot.lane.b32.xlu0 %v1687, 24
    %v3281 = vpop.permute.xlu0 %3280
    %3282 = vrot.lane.b32.xlu0 %v1688, 24
    %v3283 = vpop.permute.xlu0 %3282
    %3284 = vrot.lane.b32.xlu0 %v1689, 24
    %v3285 = vpop.permute.xlu0 %3284
    %3286 = vrot.lane.b32.xlu0 %v1690, 24
    %v3287 = vpop.permute.xlu0 %3286
    %3288 = vrot.lane.b32.xlu0 %v1691, 24
    %v3289 = vpop.permute.xlu0 %3288
    %3290 = vrot.lane.b32.xlu0 %v1692, 24
    %v3291 = vpop.permute.xlu0 %3290
    %3292 = vrot.lane.b32.xlu0 %v1693, 24
    %v3293 = vpop.permute.xlu0 %3292
    %3422 = vrot.lane.b32.xlu0 %v1694, 28
    %v3423 = vpop.permute.xlu0 %3422
    %3424 = vrot.lane.b32.xlu0 %v1695, 28
    %v3425 = vpop.permute.xlu0 %3424
    %3426 = vrot.lane.b32.xlu0 %v1696, 28
    %v3427 = vpop.permute.xlu0 %3426
    %3428 = vrot.lane.b32.xlu0 %v1697, 28
    %v3429 = vpop.permute.xlu0 %3428
    %3430 = vrot.lane.b32.xlu0 %v1698, 28
    %v3431 = vpop.permute.xlu0 %3430
    %3432 = vrot.lane.b32.xlu0 %v1699, 28
    %v3433 = vpop.permute.xlu0 %3432
    %3434 = vrot.lane.b32.xlu0 %v1700, 28
    %v3435 = vpop.permute.xlu0 %3434
    %3436 = vrot.lane.b32.xlu0 %v1701, 28
    %v3437 = vpop.permute.xlu0 %3436
    %3438 = vrot.lane.b32.xlu0 %v1702, 28
    %v3439 = vpop.permute.xlu0 %3438
    %3440 = vrot.lane.b32.xlu0 %v1703, 28
    %v3441 = vpop.permute.xlu0 %3440
    %3442 = vrot.lane.b32.xlu0 %v1704, 28
    %v3443 = vpop.permute.xlu0 %3442
    %3444 = vrot.lane.b32.xlu0 %v1705, 28
    %v3445 = vpop.permute.xlu0 %3444
    %3446 = vrot.lane.b32.xlu0 %v1706, 28
    %v3447 = vpop.permute.xlu0 %3446
    %3448 = vrot.lane.b32.xlu0 %v1707, 28
    %v3449 = vpop.permute.xlu0 %3448
    %3450 = vrot.lane.b32.xlu0 %v1708, 28
    %v3451 = vpop.permute.xlu0 %3450
    %3452 = vrot.lane.b32.xlu0 %v1709, 28
    %v3453 = vpop.permute.xlu0 %3452
    %3454 = vrot.lane.b32.xlu0 %v1710, 28
    %v3455 = vpop.permute.xlu0 %3454
    %3456 = vrot.lane.b32.xlu0 %v1711, 28
    %v3457 = vpop.permute.xlu0 %3456
    %3458 = vrot.lane.b32.xlu0 %v1712, 28
    %v3459 = vpop.permute.xlu0 %3458
    %3460 = vrot.lane.b32.xlu0 %v1713, 28
    %v3461 = vpop.permute.xlu0 %3460
    %3462 = vrot.lane.b32.xlu0 %v1714, 28
    %v3463 = vpop.permute.xlu0 %3462
    %3464 = vrot.lane.b32.xlu0 %v1715, 28
    %v3465 = vpop.permute.xlu0 %3464
    %3466 = vrot.lane.b32.xlu0 %v1716, 28
    %v3467 = vpop.permute.xlu0 %3466
    %3468 = vrot.lane.b32.xlu0 %v1717, 28
    %v3469 = vpop.permute.xlu0 %3468
    %3470 = vrot.lane.b32.xlu0 %v1718, 28
    %v3471 = vpop.permute.xlu0 %3470
    %3472 = vrot.lane.b32.xlu0 %v1719, 28
    %v3473 = vpop.permute.xlu0 %3472
    %3474 = vrot.lane.b32.xlu0 %v1720, 28
    %v3475 = vpop.permute.xlu0 %3474
    %3476 = vrot.lane.b32.xlu0 %v1721, 28
    %v3477 = vpop.permute.xlu0 %3476
    %3478 = vrot.lane.b32.xlu0 %v1722, 28
    %v3479 = vpop.permute.xlu0 %3478
    %3480 = vrot.lane.b32.xlu0 %v1723, 28
    %v3481 = vpop.permute.xlu0 %3480
    %3482 = vrot.lane.b32.xlu0 %v1724, 28
    %v3483 = vpop.permute.xlu0 %3482
    %3484 = vrot.lane.b32.xlu0 %v1725, 28
    %v3485 = vpop.permute.xlu0 %3484
    %3486 = vrot.lane.b32.xlu0 %v1726, 28
    %v3487 = vpop.permute.xlu0 %3486
    %3488 = vrot.lane.b32.xlu0 %v1727, 28
    %v3489 = vpop.permute.xlu0 %3488
    %3490 = vrot.lane.b32.xlu0 %v1728, 28
    %v3491 = vpop.permute.xlu0 %3490
    %3492 = vrot.lane.b32.xlu0 %v1729, 28
    %v3493 = vpop.permute.xlu0 %3492
    %3494 = vrot.lane.b32.xlu0 %v1730, 28
    %v3495 = vpop.permute.xlu0 %3494
    %3496 = vrot.lane.b32.xlu0 %v1731, 28
    %v3497 = vpop.permute.xlu0 %3496
    %3498 = vrot.lane.b32.xlu0 %v1732, 28
    %v3499 = vpop.permute.xlu0 %3498
    %3500 = vrot.lane.b32.xlu0 %v1733, 28
    %v3501 = vpop.permute.xlu0 %3500
    %3502 = vrot.lane.b32.xlu0 %v1734, 28
    %v3503 = vpop.permute.xlu0 %3502
    %3504 = vrot.lane.b32.xlu0 %v1735, 28
    %v3505 = vpop.permute.xlu0 %3504
    %3506 = vrot.lane.b32.xlu0 %v1736, 28
    %v3507 = vpop.permute.xlu0 %3506
    %3508 = vrot.lane.b32.xlu0 %v1737, 28
    %v3509 = vpop.permute.xlu0 %3508
    %3510 = vrot.lane.b32.xlu0 %v1738, 28
    %v3511 = vpop.permute.xlu0 %3510
    %3512 = vrot.lane.b32.xlu0 %v1739, 28
    %v3513 = vpop.permute.xlu0 %3512
    %3514 = vrot.lane.b32.xlu0 %v1740, 28
    %v3515 = vpop.permute.xlu0 %3514
    %3516 = vrot.lane.b32.xlu0 %v1741, 28
    %v3517 = vpop.permute.xlu0 %3516
    %3518 = vrot.lane.b32.xlu0 %v1742, 28
    %v3519 = vpop.permute.xlu0 %3518
    %3520 = vrot.lane.b32.xlu0 %v1743, 28
    %v3521 = vpop.permute.xlu0 %3520
    %3522 = vrot.lane.b32.xlu0 %v1744, 28
    %v3523 = vpop.permute.xlu0 %3522
    %3524 = vrot.lane.b32.xlu0 %v1745, 28
    %v3525 = vpop.permute.xlu0 %3524
    %3526 = vrot.lane.b32.xlu0 %v1746, 28
    %v3527 = vpop.permute.xlu0 %3526
    %3528 = vrot.lane.b32.xlu0 %v1747, 28
    %v3529 = vpop.permute.xlu0 %3528
    %3530 = vrot.lane.b32.xlu0 %v1748, 28
    %v3531 = vpop.permute.xlu0 %3530
    %3532 = vrot.lane.b32.xlu0 %v1749, 28
    %v3533 = vpop.permute.xlu0 %3532
    %3534 = vrot.lane.b32.xlu0 %v1750, 28
    %v3535 = vpop.permute.xlu0 %3534
    %3536 = vrot.lane.b32.xlu0 %v1751, 28
    %v3537 = vpop.permute.xlu0 %3536
    %3538 = vrot.lane.b32.xlu0 %v1752, 28
    %v3539 = vpop.permute.xlu0 %3538
    %3540 = vrot.lane.b32.xlu0 %v1753, 28
    %v3541 = vpop.permute.xlu0 %3540
    %3542 = vrot.lane.b32.xlu0 %v1754, 28
    %v3543 = vpop.permute.xlu0 %3542
    %3544 = vrot.lane.b32.xlu0 %v1755, 28
    %v3545 = vpop.permute.xlu0 %3544
    %3546 = vrot.lane.b32.xlu0 %v1756, 28
    %v3547 = vpop.permute.xlu0 %3546
    %3548 = vrot.lane.b32.xlu0 %v1757, 28
    %v3549 = vpop.permute.xlu0 %3548
    %3678 = vrot.lane.b32.xlu0 %v1758, 32
    %v3679 = vpop.permute.xlu0 %3678
    %3680 = vrot.lane.b32.xlu0 %v1759, 32
    %v3681 = vpop.permute.xlu0 %3680
    %3682 = vrot.lane.b32.xlu0 %v1760, 32
    %v3683 = vpop.permute.xlu0 %3682
    %3684 = vrot.lane.b32.xlu0 %v1761, 32
    %v3685 = vpop.permute.xlu0 %3684
    %3686 = vrot.lane.b32.xlu0 %v1762, 32
    %v3687 = vpop.permute.xlu0 %3686
    %3688 = vrot.lane.b32.xlu0 %v1763, 32
    %v3689 = vpop.permute.xlu0 %3688
    %3690 = vrot.lane.b32.xlu0 %v1764, 32
    %v3691 = vpop.permute.xlu0 %3690
    %3692 = vrot.lane.b32.xlu0 %v1765, 32
    %v3693 = vpop.permute.xlu0 %3692
    %3694 = vrot.lane.b32.xlu0 %v1766, 32
    %v3695 = vpop.permute.xlu0 %3694
    %3696 = vrot.lane.b32.xlu0 %v1767, 32
    %v3697 = vpop.permute.xlu0 %3696
    %3698 = vrot.lane.b32.xlu0 %v1768, 32
    %v3699 = vpop.permute.xlu0 %3698
    %3700 = vrot.lane.b32.xlu0 %v1769, 32
    %v3701 = vpop.permute.xlu0 %3700
    %3702 = vrot.lane.b32.xlu0 %v1770, 32
    %v3703 = vpop.permute.xlu0 %3702
    %3704 = vrot.lane.b32.xlu0 %v1771, 32
    %v3705 = vpop.permute.xlu0 %3704
    %3706 = vrot.lane.b32.xlu0 %v1772, 32
    %v3707 = vpop.permute.xlu0 %3706
    %3708 = vrot.lane.b32.xlu0 %v1773, 32
    %v3709 = vpop.permute.xlu0 %3708
    %3710 = vrot.lane.b32.xlu0 %v1774, 32
    %v3711 = vpop.permute.xlu0 %3710
    %3712 = vrot.lane.b32.xlu0 %v1775, 32
    %v3713 = vpop.permute.xlu0 %3712
    %3714 = vrot.lane.b32.xlu0 %v1776, 32
    %v3715 = vpop.permute.xlu0 %3714
    %3716 = vrot.lane.b32.xlu0 %v1777, 32
    %v3717 = vpop.permute.xlu0 %3716
    %3718 = vrot.lane.b32.xlu0 %v1778, 32
    %v3719 = vpop.permute.xlu0 %3718
    %3720 = vrot.lane.b32.xlu0 %v1779, 32
    %v3721 = vpop.permute.xlu0 %3720
    %3722 = vrot.lane.b32.xlu0 %v1780, 32
    %v3723 = vpop.permute.xlu0 %3722
    %3724 = vrot.lane.b32.xlu0 %v1781, 32
    %v3725 = vpop.permute.xlu0 %3724
    %3726 = vrot.lane.b32.xlu0 %v1782, 32
    %v3727 = vpop.permute.xlu0 %3726
    %3728 = vrot.lane.b32.xlu0 %v1783, 32
    %v3729 = vpop.permute.xlu0 %3728
    %3730 = vrot.lane.b32.xlu0 %v1784, 32
    %v3731 = vpop.permute.xlu0 %3730
    %3732 = vrot.lane.b32.xlu0 %v1785, 32
    %v3733 = vpop.permute.xlu0 %3732
    %3734 = vrot.lane.b32.xlu0 %v1786, 32
    %v3735 = vpop.permute.xlu0 %3734
    %3736 = vrot.lane.b32.xlu0 %v1787, 32
    %v3737 = vpop.permute.xlu0 %3736
    %3738 = vrot.lane.b32.xlu0 %v1788, 32
    %v3739 = vpop.permute.xlu0 %3738
    %3740 = vrot.lane.b32.xlu0 %v1789, 32
    %v3741 = vpop.permute.xlu0 %3740
    %3742 = vrot.lane.b32.xlu0 %v1790, 32
    %v3743 = vpop.permute.xlu0 %3742
    %3744 = vrot.lane.b32.xlu0 %v1791, 32
    %v3745 = vpop.permute.xlu0 %3744
    %3746 = vrot.lane.b32.xlu0 %v1792, 32
    %v3747 = vpop.permute.xlu0 %3746
    %3748 = vrot.lane.b32.xlu0 %v1793, 32
    %v3749 = vpop.permute.xlu0 %3748
    %3750 = vrot.lane.b32.xlu0 %v1794, 32
    %v3751 = vpop.permute.xlu0 %3750
    %3752 = vrot.lane.b32.xlu0 %v1795, 32
    %v3753 = vpop.permute.xlu0 %3752
    %3754 = vrot.lane.b32.xlu0 %v1796, 32
    %v3755 = vpop.permute.xlu0 %3754
    %3756 = vrot.lane.b32.xlu0 %v1797, 32
    %v3757 = vpop.permute.xlu0 %3756
    %3758 = vrot.lane.b32.xlu0 %v1798, 32
    %v3759 = vpop.permute.xlu0 %3758
    %3760 = vrot.lane.b32.xlu0 %v1799, 32
    %v3761 = vpop.permute.xlu0 %3760
    %3762 = vrot.lane.b32.xlu0 %v1800, 32
    %v3763 = vpop.permute.xlu0 %3762
    %3764 = vrot.lane.b32.xlu0 %v1801, 32
    %v3765 = vpop.permute.xlu0 %3764
    %3766 = vrot.lane.b32.xlu0 %v1802, 32
    %v3767 = vpop.permute.xlu0 %3766
    %3768 = vrot.lane.b32.xlu0 %v1803, 32
    %v3769 = vpop.permute.xlu0 %3768
    %3770 = vrot.lane.b32.xlu0 %v1804, 32
    %v3771 = vpop.permute.xlu0 %3770
    %3772 = vrot.lane.b32.xlu0 %v1805, 32
    %v3773 = vpop.permute.xlu0 %3772
    %3774 = vrot.lane.b32.xlu0 %v1806, 32
    %v3775 = vpop.permute.xlu0 %3774
    %3776 = vrot.lane.b32.xlu0 %v1807, 32
    %v3777 = vpop.permute.xlu0 %3776
    %3778 = vrot.lane.b32.xlu0 %v1808, 32
    %v3779 = vpop.permute.xlu0 %3778
    %3780 = vrot.lane.b32.xlu0 %v1809, 32
    %v3781 = vpop.permute.xlu0 %3780
    %3782 = vrot.lane.b32.xlu0 %v1810, 32
    %v3783 = vpop.permute.xlu0 %3782
    %3784 = vrot.lane.b32.xlu0 %v1811, 32
    %v3785 = vpop.permute.xlu0 %3784
    %3786 = vrot.lane.b32.xlu0 %v1812, 32
    %v3787 = vpop.permute.xlu0 %3786
    %3788 = vrot.lane.b32.xlu0 %v1813, 32
    %v3789 = vpop.permute.xlu0 %3788
    %3790 = vrot.lane.b32.xlu0 %v1814, 32
    %v3791 = vpop.permute.xlu0 %3790
    %3792 = vrot.lane.b32.xlu0 %v1815, 32
    %v3793 = vpop.permute.xlu0 %3792
    %3794 = vrot.lane.b32.xlu0 %v1816, 32
    %v3795 = vpop.permute.xlu0 %3794
    %3796 = vrot.lane.b32.xlu0 %v1817, 32
    %v3797 = vpop.permute.xlu0 %3796
    %3798 = vrot.lane.b32.xlu0 %v1818, 32
    %v3799 = vpop.permute.xlu0 %3798
    %3800 = vrot.lane.b32.xlu0 %v1819, 32
    %v3801 = vpop.permute.xlu0 %3800
    %3802 = vrot.lane.b32.xlu0 %v1820, 32
    %v3803 = vpop.permute.xlu0 %3802
    %3804 = vrot.lane.b32.xlu0 %v1821, 32
    %v3805 = vpop.permute.xlu0 %3804
    %v3870 = vsel %vm567, %v1245, %v1887
    %v3871 = vsel %vm567, %v1246, %v1889
    %v3872 = vsel %vm567, %v1247, %v1891
    %v3873 = vsel %vm567, %v1248, %v1893
    %v3874 = vsel %vm567, %v1249, %v1895
    %v3875 = vsel %vm567, %v1250, %v1897
    %v3876 = vsel %vm567, %v1251, %v1899
    %v3877 = vsel %vm567, %v1252, %v1901
    %v3878 = vsel %vm567, %v1253, %v1903
    %v3879 = vsel %vm567, %v1254, %v1905
    %v3880 = vsel %vm567, %v1255, %v1907
    %v3881 = vsel %vm567, %v1256, %v1909
    %v3882 = vsel %vm567, %v1257, %v1911
    %v3883 = vsel %vm567, %v1258, %v1913
    %v3884 = vsel %vm567, %v1259, %v1915
    %v3885 = vsel %vm567, %v1260, %v1917
    %v3886 = vsel %vm567, %v1261, %v1919
    %v3887 = vsel %vm567, %v1262, %v1921
    %v3888 = vsel %vm567, %v1263, %v1923
    %v3889 = vsel %vm567, %v1264, %v1925
    %v3890 = vsel %vm567, %v1265, %v1927
    %v3891 = vsel %vm567, %v1266, %v1929
    %v3892 = vsel %vm567, %v1267, %v1931
    %v3893 = vsel %vm567, %v1268, %v1933
    %v3894 = vsel %vm567, %v1269, %v1935
    %v3895 = vsel %vm567, %v1270, %v1937
    %v3896 = vsel %vm567, %v1271, %v1939
    %v3897 = vsel %vm567, %v1272, %v1941
    %v3898 = vsel %vm567, %v1273, %v1943
    %v3899 = vsel %vm567, %v1274, %v1945
    %v3900 = vsel %vm567, %v1275, %v1947
    %v3901 = vsel %vm567, %v1276, %v1949
    %v3902 = vsel %vm567, %v1277, %v1951
    %v3903 = vsel %vm567, %v1278, %v1953
    %v3904 = vsel %vm567, %v1279, %v1955
    %v3905 = vsel %vm567, %v1280, %v1957
    %v3906 = vsel %vm567, %v1281, %v1959
    %v3907 = vsel %vm567, %v1282, %v1961
    %v3908 = vsel %vm567, %v1283, %v1963
    %v3909 = vsel %vm567, %v1284, %v1965
    %v3910 = vsel %vm567, %v1285, %v1967
    %v3911 = vsel %vm567, %v1286, %v1969
    %v3912 = vsel %vm567, %v1287, %v1971
    %v3913 = vsel %vm567, %v1288, %v1973
    %v3914 = vsel %vm567, %v1289, %v1975
    %v3915 = vsel %vm567, %v1290, %v1977
    %v3916 = vsel %vm567, %v1291, %v1979
    %v3917 = vsel %vm567, %v1292, %v1981
    %v3918 = vsel %vm567, %v1293, %v1983
    %v3919 = vsel %vm567, %v1294, %v1985
    %v3920 = vsel %vm567, %v1295, %v1987
    %v3921 = vsel %vm567, %v1296, %v1989
    %v3922 = vsel %vm567, %v1297, %v1991
    %v3923 = vsel %vm567, %v1298, %v1993
    %v3924 = vsel %vm567, %v1299, %v1995
    %v3925 = vsel %vm567, %v1300, %v1997
    %v3926 = vsel %vm567, %v1301, %v1999
    %v3927 = vsel %vm567, %v1302, %v2001
    %v3928 = vsel %vm567, %v1303, %v2003
    %v3929 = vsel %vm567, %v1304, %v2005
    %v3930 = vsel %vm567, %v1305, %v2007
    %v3931 = vsel %vm567, %v1306, %v2009
    %v3932 = vsel %vm567, %v1307, %v2011
    %v3933 = vsel %vm567, %v1308, %v2013
    %v3934 = vsel %vm96, %v3870, %v2143
    %v3935 = vsel %vm96, %v3871, %v2145
    %v3936 = vsel %vm96, %v3872, %v2147
    %v3937 = vsel %vm96, %v3873, %v2149
    %v3938 = vsel %vm96, %v3874, %v2151
    %v3939 = vsel %vm96, %v3875, %v2153
    %v3940 = vsel %vm96, %v3876, %v2155
    %v3941 = vsel %vm96, %v3877, %v2157
    %v3942 = vsel %vm96, %v3878, %v2159
    %v3943 = vsel %vm96, %v3879, %v2161
    %v3944 = vsel %vm96, %v3880, %v2163
    %v3945 = vsel %vm96, %v3881, %v2165
    %v3946 = vsel %vm96, %v3882, %v2167
    %v3947 = vsel %vm96, %v3883, %v2169
    %v3948 = vsel %vm96, %v3884, %v2171
    %v3949 = vsel %vm96, %v3885, %v2173
    %v3950 = vsel %vm96, %v3886, %v2175
    %v3951 = vsel %vm96, %v3887, %v2177
    %v3952 = vsel %vm96, %v3888, %v2179
    %v3953 = vsel %vm96, %v3889, %v2181
    %v3954 = vsel %vm96, %v3890, %v2183
    %v3955 = vsel %vm96, %v3891, %v2185
    %v3956 = vsel %vm96, %v3892, %v2187
    %v3957 = vsel %vm96, %v3893, %v2189
    %v3958 = vsel %vm96, %v3894, %v2191
    %v3959 = vsel %vm96, %v3895, %v2193
    %v3960 = vsel %vm96, %v3896, %v2195
    %v3961 = vsel %vm96, %v3897, %v2197
    %v3962 = vsel %vm96, %v3898, %v2199
    %v3963 = vsel %vm96, %v3899, %v2201
    %v3964 = vsel %vm96, %v3900, %v2203
    %v3965 = vsel %vm96, %v3901, %v2205
    %v3966 = vsel %vm96, %v3902, %v2207
    %v3967 = vsel %vm96, %v3903, %v2209
    %v3968 = vsel %vm96, %v3904, %v2211
    %v3969 = vsel %vm96, %v3905, %v2213
    %v3970 = vsel %vm96, %v3906, %v2215
    %v3971 = vsel %vm96, %v3907, %v2217
    %v3972 = vsel %vm96, %v3908, %v2219
    %v3973 = vsel %vm96, %v3909, %v2221
    %v3974 = vsel %vm96, %v3910, %v2223
    %v3975 = vsel %vm96, %v3911, %v2225
    %v3976 = vsel %vm96, %v3912, %v2227
    %v3977 = vsel %vm96, %v3913, %v2229
    %v3978 = vsel %vm96, %v3914, %v2231
    %v3979 = vsel %vm96, %v3915, %v2233
    %v3980 = vsel %vm96, %v3916, %v2235
    %v3981 = vsel %vm96, %v3917, %v2237
    %v3982 = vsel %vm96, %v3918, %v2239
    %v3983 = vsel %vm96, %v3919, %v2241
    %v3984 = vsel %vm96, %v3920, %v2243
    %v3985 = vsel %vm96, %v3921, %v2245
    %v3986 = vsel %vm96, %v3922, %v2247
    %v3987 = vsel %vm96, %v3923, %v2249
    %v3988 = vsel %vm96, %v3924, %v2251
    %v3989 = vsel %vm96, %v3925, %v2253
    %v3990 = vsel %vm96, %v3926, %v2255
    %v3991 = vsel %vm96, %v3927, %v2257
    %v3992 = vsel %vm96, %v3928, %v2259
    %v3993 = vsel %vm96, %v3929, %v2261
    %v3994 = vsel %vm96, %v3930, %v2263
    %v3995 = vsel %vm96, %v3931, %v2265
    %v3996 = vsel %vm96, %v3932, %v2267
    %v3997 = vsel %vm96, %v3933, %v2269
    %vm3998 = vcmask 97280
    %v3999 = vsel %vm3998, %v3934, %v2399
    %v4000 = vsel %vm3998, %v3935, %v2401
    %v4001 = vsel %vm3998, %v3936, %v2403
    %v4002 = vsel %vm3998, %v3937, %v2405
    %v4003 = vsel %vm3998, %v3938, %v2407
    %v4004 = vsel %vm3998, %v3939, %v2409
    %v4005 = vsel %vm3998, %v3940, %v2411
    %v4006 = vsel %vm3998, %v3941, %v2413
    %v4007 = vsel %vm3998, %v3942, %v2415
    %v4008 = vsel %vm3998, %v3943, %v2417
    %v4009 = vsel %vm3998, %v3944, %v2419
    %v4010 = vsel %vm3998, %v3945, %v2421
    %v4011 = vsel %vm3998, %v3946, %v2423
    %v4012 = vsel %vm3998, %v3947, %v2425
    %v4013 = vsel %vm3998, %v3948, %v2427
    %v4014 = vsel %vm3998, %v3949, %v2429
    %v4015 = vsel %vm3998, %v3950, %v2431
    %v4016 = vsel %vm3998, %v3951, %v2433
    %v4017 = vsel %vm3998, %v3952, %v2435
    %v4018 = vsel %vm3998, %v3953, %v2437
    %v4019 = vsel %vm3998, %v3954, %v2439
    %v4020 = vsel %vm3998, %v3955, %v2441
    %v4021 = vsel %vm3998, %v3956, %v2443
    %v4022 = vsel %vm3998, %v3957, %v2445
    %v4023 = vsel %vm3998, %v3958, %v2447
    %v4024 = vsel %vm3998, %v3959, %v2449
    %v4025 = vsel %vm3998, %v3960, %v2451
    %v4026 = vsel %vm3998, %v3961, %v2453
    %v4027 = vsel %vm3998, %v3962, %v2455
    %v4028 = vsel %vm3998, %v3963, %v2457
    %v4029 = vsel %vm3998, %v3964, %v2459
    %v4030 = vsel %vm3998, %v3965, %v2461
    %v4031 = vsel %vm3998, %v3966, %v2463
    %v4032 = vsel %vm3998, %v3967, %v2465
    %v4033 = vsel %vm3998, %v3968, %v2467
    %v4034 = vsel %vm3998, %v3969, %v2469
    %v4035 = vsel %vm3998, %v3970, %v2471
    %v4036 = vsel %vm3998, %v3971, %v2473
    %v4037 = vsel %vm3998, %v3972, %v2475
    %v4038 = vsel %vm3998, %v3973, %v2477
    %v4039 = vsel %vm3998, %v3974, %v2479
    %v4040 = vsel %vm3998, %v3975, %v2481
    %v4041 = vsel %vm3998, %v3976, %v2483
    %v4042 = vsel %vm3998, %v3977, %v2485
    %v4043 = vsel %vm3998, %v3978, %v2487
    %v4044 = vsel %vm3998, %v3979, %v2489
    %v4045 = vsel %vm3998, %v3980, %v2491
    %v4046 = vsel %vm3998, %v3981, %v2493
    %v4047 = vsel %vm3998, %v3982, %v2495
    %v4048 = vsel %vm3998, %v3983, %v2497
    %v4049 = vsel %vm3998, %v3984, %v2499
    %v4050 = vsel %vm3998, %v3985, %v2501
    %v4051 = vsel %vm3998, %v3986, %v2503
    %v4052 = vsel %vm3998, %v3987, %v2505
    %v4053 = vsel %vm3998, %v3988, %v2507
    %v4054 = vsel %vm3998, %v3989, %v2509
    %v4055 = vsel %vm3998, %v3990, %v2511
    %v4056 = vsel %vm3998, %v3991, %v2513
    %v4057 = vsel %vm3998, %v3992, %v2515
    %v4058 = vsel %vm3998, %v3993, %v2517
    %v4059 = vsel %vm3998, %v3994, %v2519
    %v4060 = vsel %vm3998, %v3995, %v2521
    %v4061 = vsel %vm3998, %v3996, %v2523
    %v4062 = vsel %vm3998, %v3997, %v2525
    %vm4063 = vcmask 130048
    %v4064 = vsel %vm4063, %v3999, %v2655
    %v4065 = vsel %vm4063, %v4000, %v2657
    %v4066 = vsel %vm4063, %v4001, %v2659
    %v4067 = vsel %vm4063, %v4002, %v2661
    %v4068 = vsel %vm4063, %v4003, %v2663
    %v4069 = vsel %vm4063, %v4004, %v2665
    %v4070 = vsel %vm4063, %v4005, %v2667
    %v4071 = vsel %vm4063, %v4006, %v2669
    %v4072 = vsel %vm4063, %v4007, %v2671
    %v4073 = vsel %vm4063, %v4008, %v2673
    %v4074 = vsel %vm4063, %v4009, %v2675
    %v4075 = vsel %vm4063, %v4010, %v2677
    %v4076 = vsel %vm4063, %v4011, %v2679
    %v4077 = vsel %vm4063, %v4012, %v2681
    %v4078 = vsel %vm4063, %v4013, %v2683
    %v4079 = vsel %vm4063, %v4014, %v2685
    %v4080 = vsel %vm4063, %v4015, %v2687
    %v4081 = vsel %vm4063, %v4016, %v2689
    %v4082 = vsel %vm4063, %v4017, %v2691
    %v4083 = vsel %vm4063, %v4018, %v2693
    %v4084 = vsel %vm4063, %v4019, %v2695
    %v4085 = vsel %vm4063, %v4020, %v2697
    %v4086 = vsel %vm4063, %v4021, %v2699
    %v4087 = vsel %vm4063, %v4022, %v2701
    %v4088 = vsel %vm4063, %v4023, %v2703
    %v4089 = vsel %vm4063, %v4024, %v2705
    %v4090 = vsel %vm4063, %v4025, %v2707
    %v4091 = vsel %vm4063, %v4026, %v2709
    %v4092 = vsel %vm4063, %v4027, %v2711
    %v4093 = vsel %vm4063, %v4028, %v2713
    %v4094 = vsel %vm4063, %v4029, %v2715
    %v4095 = vsel %vm4063, %v4030, %v2717
    %v4096 = vsel %vm4063, %v4031, %v2719
    %v4097 = vsel %vm4063, %v4032, %v2721
    %v4098 = vsel %vm4063, %v4033, %v2723
    %v4099 = vsel %vm4063, %v4034, %v2725
    %v4100 = vsel %vm4063, %v4035, %v2727
    %v4101 = vsel %vm4063, %v4036, %v2729
    %v4102 = vsel %vm4063, %v4037, %v2731
    %v4103 = vsel %vm4063, %v4038, %v2733
    %v4104 = vsel %vm4063, %v4039, %v2735
    %v4105 = vsel %vm4063, %v4040, %v2737
    %v4106 = vsel %vm4063, %v4041, %v2739
    %v4107 = vsel %vm4063, %v4042, %v2741
    %v4108 = vsel %vm4063, %v4043, %v2743
    %v4109 = vsel %vm4063, %v4044, %v2745
    %v4110 = vsel %vm4063, %v4045, %v2747
    %v4111 = vsel %vm4063, %v4046, %v2749
    %v4112 = vsel %vm4063, %v4047, %v2751
    %v4113 = vsel %vm4063, %v4048, %v2753
    %v4114 = vsel %vm4063, %v4049, %v2755
    %v4115 = vsel %vm4063, %v4050, %v2757
    %v4116 = vsel %vm4063, %v4051, %v2759
    %v4117 = vsel %vm4063, %v4052, %v2761
    %v4118 = vsel %vm4063, %v4053, %v2763
    %v4119 = vsel %vm4063, %v4054, %v2765
    %v4120 = vsel %vm4063, %v4055, %v2767
    %v4121 = vsel %vm4063, %v4056, %v2769
    %v4122 = vsel %vm4063, %v4057, %v2771
    %v4123 = vsel %vm4063, %v4058, %v2773
    %v4124 = vsel %vm4063, %v4059, %v2775
    %v4125 = vsel %vm4063, %v4060, %v2777
    %v4126 = vsel %vm4063, %v4061, %v2779
    %v4127 = vsel %vm4063, %v4062, %v2781
    %vm4128 = vcmask 162816
    %v4129 = vsel %vm4128, %v4064, %v2911
    %v4130 = vsel %vm4128, %v4065, %v2913
    %v4131 = vsel %vm4128, %v4066, %v2915
    %v4132 = vsel %vm4128, %v4067, %v2917
    %v4133 = vsel %vm4128, %v4068, %v2919
    %v4134 = vsel %vm4128, %v4069, %v2921
    %v4135 = vsel %vm4128, %v4070, %v2923
    %v4136 = vsel %vm4128, %v4071, %v2925
    %v4137 = vsel %vm4128, %v4072, %v2927
    %v4138 = vsel %vm4128, %v4073, %v2929
    %v4139 = vsel %vm4128, %v4074, %v2931
    %v4140 = vsel %vm4128, %v4075, %v2933
    %v4141 = vsel %vm4128, %v4076, %v2935
    %v4142 = vsel %vm4128, %v4077, %v2937
    %v4143 = vsel %vm4128, %v4078, %v2939
    %v4144 = vsel %vm4128, %v4079, %v2941
    %v4145 = vsel %vm4128, %v4080, %v2943
    %v4146 = vsel %vm4128, %v4081, %v2945
    %v4147 = vsel %vm4128, %v4082, %v2947
    %v4148 = vsel %vm4128, %v4083, %v2949
    %v4149 = vsel %vm4128, %v4084, %v2951
    %v4150 = vsel %vm4128, %v4085, %v2953
    %v4151 = vsel %vm4128, %v4086, %v2955
    %v4152 = vsel %vm4128, %v4087, %v2957
    %v4153 = vsel %vm4128, %v4088, %v2959
    %v4154 = vsel %vm4128, %v4089, %v2961
    %v4155 = vsel %vm4128, %v4090, %v2963
    %v4156 = vsel %vm4128, %v4091, %v2965
    %v4157 = vsel %vm4128, %v4092, %v2967
    %v4158 = vsel %vm4128, %v4093, %v2969
    %v4159 = vsel %vm4128, %v4094, %v2971
    %v4160 = vsel %vm4128, %v4095, %v2973
    %v4161 = vsel %vm4128, %v4096, %v2975
    %v4162 = vsel %vm4128, %v4097, %v2977
    %v4163 = vsel %vm4128, %v4098, %v2979
    %v4164 = vsel %vm4128, %v4099, %v2981
    %v4165 = vsel %vm4128, %v4100, %v2983
    %v4166 = vsel %vm4128, %v4101, %v2985
    %v4167 = vsel %vm4128, %v4102, %v2987
    %v4168 = vsel %vm4128, %v4103, %v2989
    %v4169 = vsel %vm4128, %v4104, %v2991
    %v4170 = vsel %vm4128, %v4105, %v2993
    %v4171 = vsel %vm4128, %v4106, %v2995
    %v4172 = vsel %vm4128, %v4107, %v2997
    %v4173 = vsel %vm4128, %v4108, %v2999
    %v4174 = vsel %vm4128, %v4109, %v3001
    %v4175 = vsel %vm4128, %v4110, %v3003
    %v4176 = vsel %vm4128, %v4111, %v3005
    %v4177 = vsel %vm4128, %v4112, %v3007
    %v4178 = vsel %vm4128, %v4113, %v3009
    %v4179 = vsel %vm4128, %v4114, %v3011
    %v4180 = vsel %vm4128, %v4115, %v3013
    %v4181 = vsel %vm4128, %v4116, %v3015
    %v4182 = vsel %vm4128, %v4117, %v3017
    %v4183 = vsel %vm4128, %v4118, %v3019
    %v4184 = vsel %vm4128, %v4119, %v3021
    %v4185 = vsel %vm4128, %v4120, %v3023
    %v4186 = vsel %vm4128, %v4121, %v3025
    %v4187 = vsel %vm4128, %v4122, %v3027
    %v4188 = vsel %vm4128, %v4123, %v3029
    %v4189 = vsel %vm4128, %v4124, %v3031
    %v4190 = vsel %vm4128, %v4125, %v3033
    %v4191 = vsel %vm4128, %v4126, %v3035
    %v4192 = vsel %vm4128, %v4127, %v3037
    %vm4193 = vcmask 195584
    %v4194 = vsel %vm4193, %v4129, %v3167
    %v4195 = vsel %vm4193, %v4130, %v3169
    %v4196 = vsel %vm4193, %v4131, %v3171
    %v4197 = vsel %vm4193, %v4132, %v3173
    %v4198 = vsel %vm4193, %v4133, %v3175
    %v4199 = vsel %vm4193, %v4134, %v3177
    %v4200 = vsel %vm4193, %v4135, %v3179
    %v4201 = vsel %vm4193, %v4136, %v3181
    %v4202 = vsel %vm4193, %v4137, %v3183
    %v4203 = vsel %vm4193, %v4138, %v3185
    %v4204 = vsel %vm4193, %v4139, %v3187
    %v4205 = vsel %vm4193, %v4140, %v3189
    %v4206 = vsel %vm4193, %v4141, %v3191
    %v4207 = vsel %vm4193, %v4142, %v3193
    %v4208 = vsel %vm4193, %v4143, %v3195
    %v4209 = vsel %vm4193, %v4144, %v3197
    %v4210 = vsel %vm4193, %v4145, %v3199
    %v4211 = vsel %vm4193, %v4146, %v3201
    %v4212 = vsel %vm4193, %v4147, %v3203
    %v4213 = vsel %vm4193, %v4148, %v3205
    %v4214 = vsel %vm4193, %v4149, %v3207
    %v4215 = vsel %vm4193, %v4150, %v3209
    %v4216 = vsel %vm4193, %v4151, %v3211
    %v4217 = vsel %vm4193, %v4152, %v3213
    %v4218 = vsel %vm4193, %v4153, %v3215
    %v4219 = vsel %vm4193, %v4154, %v3217
    %v4220 = vsel %vm4193, %v4155, %v3219
    %v4221 = vsel %vm4193, %v4156, %v3221
    %v4222 = vsel %vm4193, %v4157, %v3223
    %v4223 = vsel %vm4193, %v4158, %v3225
    %v4224 = vsel %vm4193, %v4159, %v3227
    %v4225 = vsel %vm4193, %v4160, %v3229
    %v4226 = vsel %vm4193, %v4161, %v3231
    %v4227 = vsel %vm4193, %v4162, %v3233
    %v4228 = vsel %vm4193, %v4163, %v3235
    %v4229 = vsel %vm4193, %v4164, %v3237
    %v4230 = vsel %vm4193, %v4165, %v3239
    %v4231 = vsel %vm4193, %v4166, %v3241
    %v4232 = vsel %vm4193, %v4167, %v3243
    %v4233 = vsel %vm4193, %v4168, %v3245
    %v4234 = vsel %vm4193, %v4169, %v3247
    %v4235 = vsel %vm4193, %v4170, %v3249
    %v4236 = vsel %vm4193, %v4171, %v3251
    %v4237 = vsel %vm4193, %v4172, %v3253
    %v4238 = vsel %vm4193, %v4173, %v3255
    %v4239 = vsel %vm4193, %v4174, %v3257
    %v4240 = vsel %vm4193, %v4175, %v3259
    %v4241 = vsel %vm4193, %v4176, %v3261
    %v4242 = vsel %vm4193, %v4177, %v3263
    %v4243 = vsel %vm4193, %v4178, %v3265
    %v4244 = vsel %vm4193, %v4179, %v3267
    %v4245 = vsel %vm4193, %v4180, %v3269
    %v4246 = vsel %vm4193, %v4181, %v3271
    %v4247 = vsel %vm4193, %v4182, %v3273
    %v4248 = vsel %vm4193, %v4183, %v3275
    %v4249 = vsel %vm4193, %v4184, %v3277
    %v4250 = vsel %vm4193, %v4185, %v3279
    %v4251 = vsel %vm4193, %v4186, %v3281
    %v4252 = vsel %vm4193, %v4187, %v3283
    %v4253 = vsel %vm4193, %v4188, %v3285
    %v4254 = vsel %vm4193, %v4189, %v3287
    %v4255 = vsel %vm4193, %v4190, %v3289
    %v4256 = vsel %vm4193, %v4191, %v3291
    %v4257 = vsel %vm4193, %v4192, %v3293
    %vm4258 = vcmask 228352
    %v4259 = vsel %vm4258, %v4194, %v3423
    %v4260 = vsel %vm4258, %v4195, %v3425
    %v4261 = vsel %vm4258, %v4196, %v3427
    %v4262 = vsel %vm4258, %v4197, %v3429
    %v4263 = vsel %vm4258, %v4198, %v3431
    %v4264 = vsel %vm4258, %v4199, %v3433
    %v4265 = vsel %vm4258, %v4200, %v3435
    %v4266 = vsel %vm4258, %v4201, %v3437
    %v4267 = vsel %vm4258, %v4202, %v3439
    %v4268 = vsel %vm4258, %v4203, %v3441
    %v4269 = vsel %vm4258, %v4204, %v3443
    %v4270 = vsel %vm4258, %v4205, %v3445
    %v4271 = vsel %vm4258, %v4206, %v3447
    %v4272 = vsel %vm4258, %v4207, %v3449
    %v4273 = vsel %vm4258, %v4208, %v3451
    %v4274 = vsel %vm4258, %v4209, %v3453
    %v4275 = vsel %vm4258, %v4210, %v3455
    %v4276 = vsel %vm4258, %v4211, %v3457
    %v4277 = vsel %vm4258, %v4212, %v3459
    %v4278 = vsel %vm4258, %v4213, %v3461
    %v4279 = vsel %vm4258, %v4214, %v3463
    %v4280 = vsel %vm4258, %v4215, %v3465
    %v4281 = vsel %vm4258, %v4216, %v3467
    %v4282 = vsel %vm4258, %v4217, %v3469
    %v4283 = vsel %vm4258, %v4218, %v3471
    %v4284 = vsel %vm4258, %v4219, %v3473
    %v4285 = vsel %vm4258, %v4220, %v3475
    %v4286 = vsel %vm4258, %v4221, %v3477
    %v4287 = vsel %vm4258, %v4222, %v3479
    %v4288 = vsel %vm4258, %v4223, %v3481
    %v4289 = vsel %vm4258, %v4224, %v3483
    %v4290 = vsel %vm4258, %v4225, %v3485
    %v4291 = vsel %vm4258, %v4226, %v3487
    %v4292 = vsel %vm4258, %v4227, %v3489
    %v4293 = vsel %vm4258, %v4228, %v3491
    %v4294 = vsel %vm4258, %v4229, %v3493
    %v4295 = vsel %vm4258, %v4230, %v3495
    %v4296 = vsel %vm4258, %v4231, %v3497
    %v4297 = vsel %vm4258, %v4232, %v3499
    %v4298 = vsel %vm4258, %v4233, %v3501
    %v4299 = vsel %vm4258, %v4234, %v3503
    %v4300 = vsel %vm4258, %v4235, %v3505
    %v4301 = vsel %vm4258, %v4236, %v3507
    %v4302 = vsel %vm4258, %v4237, %v3509
    %v4303 = vsel %vm4258, %v4238, %v3511
    %v4304 = vsel %vm4258, %v4239, %v3513
    %v4305 = vsel %vm4258, %v4240, %v3515
    %v4306 = vsel %vm4258, %v4241, %v3517
    %v4307 = vsel %vm4258, %v4242, %v3519
    %v4308 = vsel %vm4258, %v4243, %v3521
    %v4309 = vsel %vm4258, %v4244, %v3523
    %v4310 = vsel %vm4258, %v4245, %v3525
    %v4311 = vsel %vm4258, %v4246, %v3527
    %v4312 = vsel %vm4258, %v4247, %v3529
    %v4313 = vsel %vm4258, %v4248, %v3531
    %v4314 = vsel %vm4258, %v4249, %v3533
    %v4315 = vsel %vm4258, %v4250, %v3535
    %v4316 = vsel %vm4258, %v4251, %v3537
    %v4317 = vsel %vm4258, %v4252, %v3539
    %v4318 = vsel %vm4258, %v4253, %v3541
    %v4319 = vsel %vm4258, %v4254, %v3543
    %v4320 = vsel %vm4258, %v4255, %v3545
    %v4321 = vsel %vm4258, %v4256, %v3547
    %v4322 = vsel %vm4258, %v4257, %v3549
    %vm4323 = vcmask 261120
    %v4324 = vsel %vm4323, %v4259, %v3679
    %v4325 = vsel %vm4323, %v4260, %v3681
    %v4326 = vsel %vm4323, %v4261, %v3683
    %v4327 = vsel %vm4323, %v4262, %v3685
    %v4328 = vsel %vm4323, %v4263, %v3687
    %v4329 = vsel %vm4323, %v4264, %v3689
    %v4330 = vsel %vm4323, %v4265, %v3691
    %v4331 = vsel %vm4323, %v4266, %v3693
    %v4332 = vsel %vm4323, %v4267, %v3695
    %v4333 = vsel %vm4323, %v4268, %v3697
    %v4334 = vsel %vm4323, %v4269, %v3699
    %v4335 = vsel %vm4323, %v4270, %v3701
    %v4336 = vsel %vm4323, %v4271, %v3703
    %v4337 = vsel %vm4323, %v4272, %v3705
    %v4338 = vsel %vm4323, %v4273, %v3707
    %v4339 = vsel %vm4323, %v4274, %v3709
    %v4340 = vsel %vm4323, %v4275, %v3711
    %v4341 = vsel %vm4323, %v4276, %v3713
    %v4342 = vsel %vm4323, %v4277, %v3715
    %v4343 = vsel %vm4323, %v4278, %v3717
    %v4344 = vsel %vm4323, %v4279, %v3719
    %v4345 = vsel %vm4323, %v4280, %v3721
    %v4346 = vsel %vm4323, %v4281, %v3723
    %v4347 = vsel %vm4323, %v4282, %v3725
    %v4348 = vsel %vm4323, %v4283, %v3727
    %v4349 = vsel %vm4323, %v4284, %v3729
    %v4350 = vsel %vm4323, %v4285, %v3731
    %v4351 = vsel %vm4323, %v4286, %v3733
    %v4352 = vsel %vm4323, %v4287, %v3735
    %v4353 = vsel %vm4323, %v4288, %v3737
    %v4354 = vsel %vm4323, %v4289, %v3739
    %v4355 = vsel %vm4323, %v4290, %v3741
    %v4356 = vsel %vm4323, %v4291, %v3743
    %v4357 = vsel %vm4323, %v4292, %v3745
    %v4358 = vsel %vm4323, %v4293, %v3747
    %v4359 = vsel %vm4323, %v4294, %v3749
    %v4360 = vsel %vm4323, %v4295, %v3751
    %v4361 = vsel %vm4323, %v4296, %v3753
    %v4362 = vsel %vm4323, %v4297, %v3755
    %v4363 = vsel %vm4323, %v4298, %v3757
    %v4364 = vsel %vm4323, %v4299, %v3759
    %v4365 = vsel %vm4323, %v4300, %v3761
    %v4366 = vsel %vm4323, %v4301, %v3763
    %v4367 = vsel %vm4323, %v4302, %v3765
    %v4368 = vsel %vm4323, %v4303, %v3767
    %v4369 = vsel %vm4323, %v4304, %v3769
    %v4370 = vsel %vm4323, %v4305, %v3771
    %v4371 = vsel %vm4323, %v4306, %v3773
    %v4372 = vsel %vm4323, %v4307, %v3775
    %v4373 = vsel %vm4323, %v4308, %v3777
    %v4374 = vsel %vm4323, %v4309, %v3779
    %v4375 = vsel %vm4323, %v4310, %v3781
    %v4376 = vsel %vm4323, %v4311, %v3783
    %v4377 = vsel %vm4323, %v4312, %v3785
    %v4378 = vsel %vm4323, %v4313, %v3787
    %v4379 = vsel %vm4323, %v4314, %v3789
    %v4380 = vsel %vm4323, %v4315, %v3791
    %v4381 = vsel %vm4323, %v4316, %v3793
    %v4382 = vsel %vm4323, %v4317, %v3795
    %v4383 = vsel %vm4323, %v4318, %v3797
    %v4384 = vsel %vm4323, %v4319, %v3799
    %v4385 = vsel %vm4323, %v4320, %v3801
    %v4386 = vsel %vm4323, %v4321, %v3803
    %v4387 = vsel %vm4323, %v4322, %v3805
    %v4388 = vld [vmem:[%s5] sm:$0xff]
    %v4389 = vld [vmem:[%s5 + $0x8] sm:$0xff]
    %v4390 = vld [vmem:[%s5 + $0x10] sm:$0xff]
    %v4391 = vld [vmem:[%s5 + $0x18] sm:$0xff]
    %v4392 = vld [vmem:[%s5 + $0x20] sm:$0xf]
    %v4393 = vld [vmem:[%s6] sm:$0x1]
    %v4395 = vperm.slane %v4393, 0
    %vm4397 = vcmask 293888
    %v4399 = vsel %vm4397, %v4324, 0
    %v4402 = vsel %vm4397, %v4325, 0
    %v4405 = vsel %vm4397, %v4326, 0
    %v4408 = vsel %vm4397, %v4327, 0
    %v4411 = vsel %vm4397, %v4328, 0
    %v4414 = vsel %vm4397, %v4329, 0
    %v4417 = vsel %vm4397, %v4330, 0
    %v4420 = vsel %vm4397, %v4331, 0
    %v4423 = vsel %vm4397, %v4332, 0
    %v4426 = vsel %vm4397, %v4333, 0
    %v4429 = vsel %vm4397, %v4334, 0
    %v4432 = vsel %vm4397, %v4335, 0
    %v4435 = vsel %vm4397, %v4336, 0
    %v4438 = vsel %vm4397, %v4337, 0
    %v4441 = vsel %vm4397, %v4338, 0
    %v4444 = vsel %vm4397, %v4339, 0
    %v4447 = vsel %vm4397, %v4340, 0
    %v4450 = vsel %vm4397, %v4341, 0
    %v4453 = vsel %vm4397, %v4342, 0
    %v4456 = vsel %vm4397, %v4343, 0
    %v4459 = vsel %vm4397, %v4344, 0
    %v4462 = vsel %vm4397, %v4345, 0
    %v4465 = vsel %vm4397, %v4346, 0
    %v4468 = vsel %vm4397, %v4347, 0
    %v4471 = vsel %vm4397, %v4348, 0
    %v4474 = vsel %vm4397, %v4349, 0
    %v4477 = vsel %vm4397, %v4350, 0
    %v4480 = vsel %vm4397, %v4351, 0
    %v4483 = vsel %vm4397, %v4352, 0
    %v4486 = vsel %vm4397, %v4353, 0
    %v4489 = vsel %vm4397, %v4354, 0
    %v4492 = vsel %vm4397, %v4355, 0
    %v4495 = vsel %vm4397, %v4356, 0
    %v4498 = vsel %vm4397, %v4357, 0
    %v4501 = vsel %vm4397, %v4358, 0
    %v4504 = vsel %vm4397, %v4359, 0
    %v4507 = vsel %vm4397, %v4360, 0
    %v4510 = vsel %vm4397, %v4361, 0
    %v4513 = vsel %vm4397, %v4362, 0
    %v4516 = vsel %vm4397, %v4363, 0
    %v4519 = vsel %vm4397, %v4364, 0
    %v4522 = vsel %vm4397, %v4365, 0
    %v4525 = vsel %vm4397, %v4366, 0
    %v4528 = vsel %vm4397, %v4367, 0
    %v4531 = vsel %vm4397, %v4368, 0
    %v4534 = vsel %vm4397, %v4369, 0
    %v4537 = vsel %vm4397, %v4370, 0
    %v4540 = vsel %vm4397, %v4371, 0
    %v4543 = vsel %vm4397, %v4372, 0
    %v4546 = vsel %vm4397, %v4373, 0
    %v4549 = vsel %vm4397, %v4374, 0
    %v4552 = vsel %vm4397, %v4375, 0
    %v4555 = vsel %vm4397, %v4376, 0
    %v4558 = vsel %vm4397, %v4377, 0
    %v4561 = vsel %vm4397, %v4378, 0
    %v4564 = vsel %vm4397, %v4379, 0
    %v4567 = vsel %vm4397, %v4380, 0
    %v4570 = vsel %vm4397, %v4381, 0
    %v4573 = vsel %vm4397, %v4382, 0
    %v4576 = vsel %vm4397, %v4383, 0
    %v4579 = vsel %vm4397, %v4384, 0
    %v4582 = vsel %vm4397, %v4385, 0
    %v4585 = vsel %vm4397, %v4386, 0
    %v4588 = vsel %vm4397, %v4387, 0
    %v4591 = vsel %vm760, %v4392, 0
    %4593 = vmatpush.msra.mxu0 0.0
    %4594 = vmatpush.msra.mxu0 0.0
    %4595 = vmatpush.msra.mxu0 0.0
    %4596 = vmatpush.msra.mxu0 0.0
    %4597 = vmatpush.msra.mxu0 0.0
    %4598 = vmatpush.msra.mxu0 0.0
    %4599 = vmatpush.msra.mxu0 0.0
    %4600 = vmatpush.msra.mxu0 0.0
    %4601 = vmatpush.msra.mxu0 0.0
    %4602 = vmatpush.msra.mxu0 0.0
    %4603 = vmatpush.msra.mxu0 0.0
    %4604 = vmatpush.msra.mxu0 %v4591
    %4605 = vmatpush.msra.mxu0 %v4391
    %4606 = vmatpush.msra.mxu0 %v4390
    %4607 = vmatpush.msra.mxu0 %v4389
    %4608 = vmatpush.msra.mxu0 %v4388
    %4609 = vmatmul.f32.gmra.mxu0 %v4399
    %v4610 = vpop.f32.mrf.mxu0
    %v4611 = vadd.f32 %v4395, %v4610
    %4612 = vmatmul.f32.gmra.mxu0 %v4402
    %v4613 = vpop.f32.mrf.mxu0
    %v4614 = vadd.f32 %v4395, %v4613
    %4615 = vmatmul.f32.gmra.mxu0 %v4405
    %v4616 = vpop.f32.mrf.mxu0
    %v4617 = vadd.f32 %v4395, %v4616
    %4618 = vmatmul.f32.gmra.mxu0 %v4408
    %v4619 = vpop.f32.mrf.mxu0
    %v4620 = vadd.f32 %v4395, %v4619
    %4621 = vmatmul.f32.gmra.mxu0 %v4411
    %v4622 = vpop.f32.mrf.mxu0
    %v4623 = vadd.f32 %v4395, %v4622
    %4624 = vmatmul.f32.gmra.mxu0 %v4414
    %v4625 = vpop.f32.mrf.mxu0
    %v4626 = vadd.f32 %v4395, %v4625
    %4627 = vmatmul.f32.gmra.mxu0 %v4417
    %v4628 = vpop.f32.mrf.mxu0
    %v4629 = vadd.f32 %v4395, %v4628
    %4630 = vmatmul.f32.gmra.mxu0 %v4420
    %v4631 = vpop.f32.mrf.mxu0
    %v4632 = vadd.f32 %v4395, %v4631
    %4633 = vmatmul.f32.gmra.mxu0 %v4423
    %v4634 = vpop.f32.mrf.mxu0
    %v4635 = vadd.f32 %v4395, %v4634
    %4636 = vmatmul.f32.gmra.mxu0 %v4426
    %v4637 = vpop.f32.mrf.mxu0
    %v4638 = vadd.f32 %v4395, %v4637
    %4639 = vmatmul.f32.gmra.mxu0 %v4429
    %v4640 = vpop.f32.mrf.mxu0
    %v4641 = vadd.f32 %v4395, %v4640
    %4642 = vmatmul.f32.gmra.mxu0 %v4432
    %v4643 = vpop.f32.mrf.mxu0
    %v4644 = vadd.f32 %v4395, %v4643
    %4645 = vmatmul.f32.gmra.mxu0 %v4435
    %v4646 = vpop.f32.mrf.mxu0
    %v4647 = vadd.f32 %v4395, %v4646
    %4648 = vmatmul.f32.gmra.mxu0 %v4438
    %v4649 = vpop.f32.mrf.mxu0
    %v4650 = vadd.f32 %v4395, %v4649
    %4651 = vmatmul.f32.gmra.mxu0 %v4441
    %v4652 = vpop.f32.mrf.mxu0
    %v4653 = vadd.f32 %v4395, %v4652
    %4654 = vmatmul.f32.gmra.mxu0 %v4444
    %v4655 = vpop.f32.mrf.mxu0
    %v4656 = vadd.f32 %v4395, %v4655
    %4657 = vmatmul.f32.gmra.mxu0 %v4447
    %v4658 = vpop.f32.mrf.mxu0
    %v4659 = vadd.f32 %v4395, %v4658
    %4660 = vmatmul.f32.gmra.mxu0 %v4450
    %v4661 = vpop.f32.mrf.mxu0
    %v4662 = vadd.f32 %v4395, %v4661
    %4663 = vmatmul.f32.gmra.mxu0 %v4453
    %v4664 = vpop.f32.mrf.mxu0
    %v4665 = vadd.f32 %v4395, %v4664
    %4666 = vmatmul.f32.gmra.mxu0 %v4456
    %v4667 = vpop.f32.mrf.mxu0
    %v4668 = vadd.f32 %v4395, %v4667
    %4669 = vmatmul.f32.gmra.mxu0 %v4459
    %v4670 = vpop.f32.mrf.mxu0
    %v4671 = vadd.f32 %v4395, %v4670
    %4672 = vmatmul.f32.gmra.mxu0 %v4462
    %v4673 = vpop.f32.mrf.mxu0
    %v4674 = vadd.f32 %v4395, %v4673
    %4675 = vmatmul.f32.gmra.mxu0 %v4465
    %v4676 = vpop.f32.mrf.mxu0
    %v4677 = vadd.f32 %v4395, %v4676
    %4678 = vmatmul.f32.gmra.mxu0 %v4468
    %v4679 = vpop.f32.mrf.mxu0
    %v4680 = vadd.f32 %v4395, %v4679
    %4681 = vmatmul.f32.gmra.mxu0 %v4471
    %v4682 = vpop.f32.mrf.mxu0
    %v4683 = vadd.f32 %v4395, %v4682
    %4684 = vmatmul.f32.gmra.mxu0 %v4474
    %v4685 = vpop.f32.mrf.mxu0
    %v4686 = vadd.f32 %v4395, %v4685
    %4687 = vmatmul.f32.gmra.mxu0 %v4477
    %v4688 = vpop.f32.mrf.mxu0
    %v4689 = vadd.f32 %v4395, %v4688
    %4690 = vmatmul.f32.gmra.mxu0 %v4480
    %v4691 = vpop.f32.mrf.mxu0
    %v4692 = vadd.f32 %v4395, %v4691
    %4693 = vmatmul.f32.gmra.mxu0 %v4483
    %v4694 = vpop.f32.mrf.mxu0
    %v4695 = vadd.f32 %v4395, %v4694
    %4696 = vmatmul.f32.gmra.mxu0 %v4486
    %v4697 = vpop.f32.mrf.mxu0
    %v4698 = vadd.f32 %v4395, %v4697
    %4699 = vmatmul.f32.gmra.mxu0 %v4489
    %v4700 = vpop.f32.mrf.mxu0
    %v4701 = vadd.f32 %v4395, %v4700
    %4702 = vmatmul.f32.gmra.mxu0 %v4492
    %v4703 = vpop.f32.mrf.mxu0
    %v4704 = vadd.f32 %v4395, %v4703
    %4705 = vmatmul.f32.gmra.mxu0 %v4495
    %v4706 = vpop.f32.mrf.mxu0
    %v4707 = vadd.f32 %v4395, %v4706
    %4708 = vmatmul.f32.gmra.mxu0 %v4498
    %v4709 = vpop.f32.mrf.mxu0
    %v4710 = vadd.f32 %v4395, %v4709
    %4711 = vmatmul.f32.gmra.mxu0 %v4501
    %v4712 = vpop.f32.mrf.mxu0
    %v4713 = vadd.f32 %v4395, %v4712
    %4714 = vmatmul.f32.gmra.mxu0 %v4504
    %v4715 = vpop.f32.mrf.mxu0
    %v4716 = vadd.f32 %v4395, %v4715
    %4717 = vmatmul.f32.gmra.mxu0 %v4507
    %v4718 = vpop.f32.mrf.mxu0
    %v4719 = vadd.f32 %v4395, %v4718
    %4720 = vmatmul.f32.gmra.mxu0 %v4510
    %v4721 = vpop.f32.mrf.mxu0
    %v4722 = vadd.f32 %v4395, %v4721
    %4723 = vmatmul.f32.gmra.mxu0 %v4513
    %v4724 = vpop.f32.mrf.mxu0
    %v4725 = vadd.f32 %v4395, %v4724
    %4726 = vmatmul.f32.gmra.mxu0 %v4516
    %v4727 = vpop.f32.mrf.mxu0
    %v4728 = vadd.f32 %v4395, %v4727
    %4729 = vmatmul.f32.gmra.mxu0 %v4519
    %v4730 = vpop.f32.mrf.mxu0
    %v4731 = vadd.f32 %v4395, %v4730
    %4732 = vmatmul.f32.gmra.mxu0 %v4522
    %v4733 = vpop.f32.mrf.mxu0
    %v4734 = vadd.f32 %v4395, %v4733
    %4735 = vmatmul.f32.gmra.mxu0 %v4525
    %v4736 = vpop.f32.mrf.mxu0
    %v4737 = vadd.f32 %v4395, %v4736
    %4738 = vmatmul.f32.gmra.mxu0 %v4528
    %v4739 = vpop.f32.mrf.mxu0
    %v4740 = vadd.f32 %v4395, %v4739
    %4741 = vmatmul.f32.gmra.mxu0 %v4531
    %v4742 = vpop.f32.mrf.mxu0
    %v4743 = vadd.f32 %v4395, %v4742
    %4744 = vmatmul.f32.gmra.mxu0 %v4534
    %v4745 = vpop.f32.mrf.mxu0
    %v4746 = vadd.f32 %v4395, %v4745
    %4747 = vmatmul.f32.gmra.mxu0 %v4537
    %v4748 = vpop.f32.mrf.mxu0
    %v4749 = vadd.f32 %v4395, %v4748
    %4750 = vmatmul.f32.gmra.mxu0 %v4540
    %v4751 = vpop.f32.mrf.mxu0
    %v4752 = vadd.f32 %v4395, %v4751
    %4753 = vmatmul.f32.gmra.mxu0 %v4543
    %v4754 = vpop.f32.mrf.mxu0
    %v4755 = vadd.f32 %v4395, %v4754
    %4756 = vmatmul.f32.gmra.mxu0 %v4546
    %v4757 = vpop.f32.mrf.mxu0
    %v4758 = vadd.f32 %v4395, %v4757
    %4759 = vmatmul.f32.gmra.mxu0 %v4549
    %v4760 = vpop.f32.mrf.mxu0
    %v4761 = vadd.f32 %v4395, %v4760
    %4762 = vmatmul.f32.gmra.mxu0 %v4552
    %v4763 = vpop.f32.mrf.mxu0
    %v4764 = vadd.f32 %v4395, %v4763
    %4765 = vmatmul.f32.gmra.mxu0 %v4555
    %v4766 = vpop.f32.mrf.mxu0
    %v4767 = vadd.f32 %v4395, %v4766
    %4768 = vmatmul.f32.gmra.mxu0 %v4558
    %v4769 = vpop.f32.mrf.mxu0
    %v4770 = vadd.f32 %v4395, %v4769
    %4771 = vmatmul.f32.gmra.mxu0 %v4561
    %v4772 = vpop.f32.mrf.mxu0
    %v4773 = vadd.f32 %v4395, %v4772
    %4774 = vmatmul.f32.gmra.mxu0 %v4564
    %v4775 = vpop.f32.mrf.mxu0
    %v4776 = vadd.f32 %v4395, %v4775
    %4777 = vmatmul.f32.gmra.mxu0 %v4567
    %v4778 = vpop.f32.mrf.mxu0
    %v4779 = vadd.f32 %v4395, %v4778
    %4780 = vmatmul.f32.gmra.mxu0 %v4570
    %v4781 = vpop.f32.mrf.mxu0
    %v4782 = vadd.f32 %v4395, %v4781
    %4783 = vmatmul.f32.gmra.mxu0 %v4573
    %v4784 = vpop.f32.mrf.mxu0
    %v4785 = vadd.f32 %v4395, %v4784
    %4786 = vmatmul.f32.gmra.mxu0 %v4576
    %v4787 = vpop.f32.mrf.mxu0
    %v4788 = vadd.f32 %v4395, %v4787
    %4789 = vmatmul.f32.gmra.mxu0 %v4579
    %v4790 = vpop.f32.mrf.mxu0
    %v4791 = vadd.f32 %v4395, %v4790
    %4792 = vmatmul.f32.gmra.mxu0 %v4582
    %v4793 = vpop.f32.mrf.mxu0
    %v4794 = vadd.f32 %v4395, %v4793
    %4795 = vmatmul.f32.gmra.mxu0 %v4585
    %v4796 = vpop.f32.mrf.mxu0
    %v4797 = vadd.f32 %v4395, %v4796
    %4798 = vmatmul.f32.gmra.mxu0 %v4588
    %v4799 = vpop.f32.mrf.mxu0
    %v4800 = vadd.f32 %v4395, %v4799
    %4801 = vdwg.mxu0
    %v4802 = vmax.f32 %v4611, 0.0
    %v4803 = vmax.f32 %v4614, 0.0
    %v4804 = vmax.f32 %v4617, 0.0
    %v4805 = vmax.f32 %v4620, 0.0
    %v4806 = vmax.f32 %v4623, 0.0
    %v4807 = vmax.f32 %v4626, 0.0
    %v4808 = vmax.f32 %v4629, 0.0
    %v4809 = vmax.f32 %v4632, 0.0
    %v4810 = vmax.f32 %v4635, 0.0
    %v4811 = vmax.f32 %v4638, 0.0
    %v4812 = vmax.f32 %v4641, 0.0
    %v4813 = vmax.f32 %v4644, 0.0
    %v4814 = vmax.f32 %v4647, 0.0
    %v4815 = vmax.f32 %v4650, 0.0
    %v4816 = vmax.f32 %v4653, 0.0
    %v4817 = vmax.f32 %v4656, 0.0
    %v4818 = vmax.f32 %v4659, 0.0
    %v4819 = vmax.f32 %v4662, 0.0
    %v4820 = vmax.f32 %v4665, 0.0
    %v4821 = vmax.f32 %v4668, 0.0
    %v4822 = vmax.f32 %v4671, 0.0
    %v4823 = vmax.f32 %v4674, 0.0
    %v4824 = vmax.f32 %v4677, 0.0
    %v4825 = vmax.f32 %v4680, 0.0
    %v4826 = vmax.f32 %v4683, 0.0
    %v4827 = vmax.f32 %v4686, 0.0
    %v4828 = vmax.f32 %v4689, 0.0
    %v4829 = vmax.f32 %v4692, 0.0
    %v4830 = vmax.f32 %v4695, 0.0
    %v4831 = vmax.f32 %v4698, 0.0
    %v4832 = vmax.f32 %v4701, 0.0
    %v4833 = vmax.f32 %v4704, 0.0
    %v4834 = vmax.f32 %v4707, 0.0
    %v4835 = vmax.f32 %v4710, 0.0
    %v4836 = vmax.f32 %v4713, 0.0
    %v4837 = vmax.f32 %v4716, 0.0
    %v4838 = vmax.f32 %v4719, 0.0
    %v4839 = vmax.f32 %v4722, 0.0
    %v4840 = vmax.f32 %v4725, 0.0
    %v4841 = vmax.f32 %v4728, 0.0
    %v4842 = vmax.f32 %v4731, 0.0
    %v4843 = vmax.f32 %v4734, 0.0
    %v4844 = vmax.f32 %v4737, 0.0
    %v4845 = vmax.f32 %v4740, 0.0
    %v4846 = vmax.f32 %v4743, 0.0
    %v4847 = vmax.f32 %v4746, 0.0
    %v4848 = vmax.f32 %v4749, 0.0
    %v4849 = vmax.f32 %v4752, 0.0
    %v4850 = vmax.f32 %v4755, 0.0
    %v4851 = vmax.f32 %v4758, 0.0
    %v4852 = vmax.f32 %v4761, 0.0
    %v4853 = vmax.f32 %v4764, 0.0
    %v4854 = vmax.f32 %v4767, 0.0
    %v4855 = vmax.f32 %v4770, 0.0
    %v4856 = vmax.f32 %v4773, 0.0
    %v4857 = vmax.f32 %v4776, 0.0
    %v4858 = vmax.f32 %v4779, 0.0
    %v4859 = vmax.f32 %v4782, 0.0
    %v4860 = vmax.f32 %v4785, 0.0
    %v4861 = vmax.f32 %v4788, 0.0
    %v4862 = vmax.f32 %v4791, 0.0
    %v4863 = vmax.f32 %v4794, 0.0
    %v4864 = vmax.f32 %v4797, 0.0
    %v4865 = vmax.f32 %v4800, 0.0
    %4930 = vrot.lane.b32.xlu0 %v4802, 8
    %v4931 = vpop.permute.xlu0 %4930
    %4932 = vrot.lane.b32.xlu0 %v4803, 8
    %v4933 = vpop.permute.xlu0 %4932
    %4934 = vrot.lane.b32.xlu0 %v4804, 8
    %v4935 = vpop.permute.xlu0 %4934
    %4936 = vrot.lane.b32.xlu0 %v4805, 8
    %v4937 = vpop.permute.xlu0 %4936
    %4938 = vrot.lane.b32.xlu0 %v4806, 8
    %v4939 = vpop.permute.xlu0 %4938
    %4940 = vrot.lane.b32.xlu0 %v4807, 8
    %v4941 = vpop.permute.xlu0 %4940
    %4942 = vrot.lane.b32.xlu0 %v4808, 8
    %v4943 = vpop.permute.xlu0 %4942
    %4944 = vrot.lane.b32.xlu0 %v4809, 8
    %v4945 = vpop.permute.xlu0 %4944
    %4946 = vrot.lane.b32.xlu0 %v4810, 8
    %v4947 = vpop.permute.xlu0 %4946
    %4948 = vrot.lane.b32.xlu0 %v4811, 8
    %v4949 = vpop.permute.xlu0 %4948
    %4950 = vrot.lane.b32.xlu0 %v4812, 8
    %v4951 = vpop.permute.xlu0 %4950
    %4952 = vrot.lane.b32.xlu0 %v4813, 8
    %v4953 = vpop.permute.xlu0 %4952
    %4954 = vrot.lane.b32.xlu0 %v4814, 8
    %v4955 = vpop.permute.xlu0 %4954
    %4956 = vrot.lane.b32.xlu0 %v4815, 8
    %v4957 = vpop.permute.xlu0 %4956
    %4958 = vrot.lane.b32.xlu0 %v4816, 8
    %v4959 = vpop.permute.xlu0 %4958
    %4960 = vrot.lane.b32.xlu0 %v4817, 8
    %v4961 = vpop.permute.xlu0 %4960
    %4962 = vrot.lane.b32.xlu0 %v4818, 8
    %v4963 = vpop.permute.xlu0 %4962
    %4964 = vrot.lane.b32.xlu0 %v4819, 8
    %v4965 = vpop.permute.xlu0 %4964
    %4966 = vrot.lane.b32.xlu0 %v4820, 8
    %v4967 = vpop.permute.xlu0 %4966
    %4968 = vrot.lane.b32.xlu0 %v4821, 8
    %v4969 = vpop.permute.xlu0 %4968
    %4970 = vrot.lane.b32.xlu0 %v4822, 8
    %v4971 = vpop.permute.xlu0 %4970
    %4972 = vrot.lane.b32.xlu0 %v4823, 8
    %v4973 = vpop.permute.xlu0 %4972
    %4974 = vrot.lane.b32.xlu0 %v4824, 8
    %v4975 = vpop.permute.xlu0 %4974
    %4976 = vrot.lane.b32.xlu0 %v4825, 8
    %v4977 = vpop.permute.xlu0 %4976
    %4978 = vrot.lane.b32.xlu0 %v4826, 8
    %v4979 = vpop.permute.xlu0 %4978
    %4980 = vrot.lane.b32.xlu0 %v4827, 8
    %v4981 = vpop.permute.xlu0 %4980
    %4982 = vrot.lane.b32.xlu0 %v4828, 8
    %v4983 = vpop.permute.xlu0 %4982
    %4984 = vrot.lane.b32.xlu0 %v4829, 8
    %v4985 = vpop.permute.xlu0 %4984
    %4986 = vrot.lane.b32.xlu0 %v4830, 8
    %v4987 = vpop.permute.xlu0 %4986
    %4988 = vrot.lane.b32.xlu0 %v4831, 8
    %v4989 = vpop.permute.xlu0 %4988
    %4990 = vrot.lane.b32.xlu0 %v4832, 8
    %v4991 = vpop.permute.xlu0 %4990
    %4992 = vrot.lane.b32.xlu0 %v4833, 8
    %v4993 = vpop.permute.xlu0 %4992
    %4994 = vrot.lane.b32.xlu0 %v4834, 8
    %v4995 = vpop.permute.xlu0 %4994
    %4996 = vrot.lane.b32.xlu0 %v4835, 8
    %v4997 = vpop.permute.xlu0 %4996
    %4998 = vrot.lane.b32.xlu0 %v4836, 8
    %v4999 = vpop.permute.xlu0 %4998
    %5000 = vrot.lane.b32.xlu0 %v4837, 8
    %v5001 = vpop.permute.xlu0 %5000
    %5002 = vrot.lane.b32.xlu0 %v4838, 8
    %v5003 = vpop.permute.xlu0 %5002
    %5004 = vrot.lane.b32.xlu0 %v4839, 8
    %v5005 = vpop.permute.xlu0 %5004
    %5006 = vrot.lane.b32.xlu0 %v4840, 8
    %v5007 = vpop.permute.xlu0 %5006
    %5008 = vrot.lane.b32.xlu0 %v4841, 8
    %v5009 = vpop.permute.xlu0 %5008
    %5010 = vrot.lane.b32.xlu0 %v4842, 8
    %v5011 = vpop.permute.xlu0 %5010
    %5012 = vrot.lane.b32.xlu0 %v4843, 8
    %v5013 = vpop.permute.xlu0 %5012
    %5014 = vrot.lane.b32.xlu0 %v4844, 8
    %v5015 = vpop.permute.xlu0 %5014
    %5016 = vrot.lane.b32.xlu0 %v4845, 8
    %v5017 = vpop.permute.xlu0 %5016
    %5018 = vrot.lane.b32.xlu0 %v4846, 8
    %v5019 = vpop.permute.xlu0 %5018
    %5020 = vrot.lane.b32.xlu0 %v4847, 8
    %v5021 = vpop.permute.xlu0 %5020
    %5022 = vrot.lane.b32.xlu0 %v4848, 8
    %v5023 = vpop.permute.xlu0 %5022
    %5024 = vrot.lane.b32.xlu0 %v4849, 8
    %v5025 = vpop.permute.xlu0 %5024
    %5026 = vrot.lane.b32.xlu0 %v4850, 8
    %v5027 = vpop.permute.xlu0 %5026
    %5028 = vrot.lane.b32.xlu0 %v4851, 8
    %v5029 = vpop.permute.xlu0 %5028
    %5030 = vrot.lane.b32.xlu0 %v4852, 8
    %v5031 = vpop.permute.xlu0 %5030
    %5032 = vrot.lane.b32.xlu0 %v4853, 8
    %v5033 = vpop.permute.xlu0 %5032
    %5034 = vrot.lane.b32.xlu0 %v4854, 8
    %v5035 = vpop.permute.xlu0 %5034
    %5036 = vrot.lane.b32.xlu0 %v4855, 8
    %v5037 = vpop.permute.xlu0 %5036
    %5038 = vrot.lane.b32.xlu0 %v4856, 8
    %v5039 = vpop.permute.xlu0 %5038
    %5040 = vrot.lane.b32.xlu0 %v4857, 8
    %v5041 = vpop.permute.xlu0 %5040
    %5042 = vrot.lane.b32.xlu0 %v4858, 8
    %v5043 = vpop.permute.xlu0 %5042
    %5044 = vrot.lane.b32.xlu0 %v4859, 8
    %v5045 = vpop.permute.xlu0 %5044
    %5046 = vrot.lane.b32.xlu0 %v4860, 8
    %v5047 = vpop.permute.xlu0 %5046
    %5048 = vrot.lane.b32.xlu0 %v4861, 8
    %v5049 = vpop.permute.xlu0 %5048
    %5050 = vrot.lane.b32.xlu0 %v4862, 8
    %v5051 = vpop.permute.xlu0 %5050
    %5052 = vrot.lane.b32.xlu0 %v4863, 8
    %v5053 = vpop.permute.xlu0 %5052
    %5054 = vrot.lane.b32.xlu0 %v4864, 8
    %v5055 = vpop.permute.xlu0 %5054
    %5056 = vrot.lane.b32.xlu0 %v4865, 8
    %v5057 = vpop.permute.xlu0 %5056
    %vm5122 = vcmask 130112
    %5123 = vst.msk [vmem:[#allocation3] sm:$0xff] %vm5122, %v4931
    %5124 = vst.msk [vmem:[#allocation3 + $0x8] sm:$0xff] %vm5122, %v4933
    %5125 = vst.msk [vmem:[#allocation3 + $0x10] sm:$0xff] %vm5122, %v4935
    %5126 = vst.msk [vmem:[#allocation3 + $0x18] sm:$0xff] %vm5122, %v4937
    %5127 = vst.msk [vmem:[#allocation3 + $0x20] sm:$0xff] %vm5122, %v4939
    %5128 = vst.msk [vmem:[#allocation3 + $0x28] sm:$0xff] %vm5122, %v4941
    %5129 = vst.msk [vmem:[#allocation3 + $0x30] sm:$0xff] %vm5122, %v4943
    %5130 = vst.msk [vmem:[#allocation3 + $0x38] sm:$0xff] %vm5122, %v4945
    %5131 = vst.msk [vmem:[#allocation3 + $0x40] sm:$0xff] %vm5122, %v4947
    %5132 = vst.msk [vmem:[#allocation3 + $0x48] sm:$0xff] %vm5122, %v4949
    %5133 = vst.msk [vmem:[#allocation3 + $0x50] sm:$0xff] %vm5122, %v4951
    %5134 = vst.msk [vmem:[#allocation3 + $0x58] sm:$0xff] %vm5122, %v4953
    %5135 = vst.msk [vmem:[#allocation3 + $0x60] sm:$0xff] %vm5122, %v4955
    %5136 = vst.msk [vmem:[#allocation3 + $0x68] sm:$0xff] %vm5122, %v4957
    %5137 = vst.msk [vmem:[#allocation3 + $0x70] sm:$0xff] %vm5122, %v4959
    %5138 = vst.msk [vmem:[#allocation3 + $0x78] sm:$0xff] %vm5122, %v4961
    %5139 = vst.msk [vmem:[#allocation3 + $0x80] sm:$0xff] %vm5122, %v4963
    %5140 = vst.msk [vmem:[#allocation3 + $0x88] sm:$0xff] %vm5122, %v4965
    %5141 = vst.msk [vmem:[#allocation3 + $0x90] sm:$0xff] %vm5122, %v4967
    %5142 = vst.msk [vmem:[#allocation3 + $0x98] sm:$0xff] %vm5122, %v4969
    %5143 = vst.msk [vmem:[#allocation3 + $0xa0] sm:$0xff] %vm5122, %v4971
    %5144 = vst.msk [vmem:[#allocation3 + $0xa8] sm:$0xff] %vm5122, %v4973
    %5145 = vst.msk [vmem:[#allocation3 + $0xb0] sm:$0xff] %vm5122, %v4975
    %5146 = vst.msk [vmem:[#allocation3 + $0xb8] sm:$0xff] %vm5122, %v4977
    %5147 = vst.msk [vmem:[#allocation3 + $0xc0] sm:$0xff] %vm5122, %v4979
    %5148 = vst.msk [vmem:[#allocation3 + $0xc8] sm:$0xff] %vm5122, %v4981
    %5149 = vst.msk [vmem:[#allocation3 + $0xd0] sm:$0xff] %vm5122, %v4983
    %5150 = vst.msk [vmem:[#allocation3 + $0xd8] sm:$0xff] %vm5122, %v4985
    %5151 = vst.msk [vmem:[#allocation3 + $0xe0] sm:$0xff] %vm5122, %v4987
    %5152 = vst.msk [vmem:[#allocation3 + $0xe8] sm:$0xff] %vm5122, %v4989
    %5153 = vst.msk [vmem:[#allocation3 + $0xf0] sm:$0xff] %vm5122, %v4991
    %5154 = vst.msk [vmem:[#allocation3 + $0xf8] sm:$0xff] %vm5122, %v4993
    %5155 = vst.msk [vmem:[#allocation3 + $0x100] sm:$0xff] %vm5122, %v4995
    %5156 = vst.msk [vmem:[#allocation3 + $0x108] sm:$0xff] %vm5122, %v4997
    %5157 = vst.msk [vmem:[#allocation3 + $0x110] sm:$0xff] %vm5122, %v4999
    %5158 = vst.msk [vmem:[#allocation3 + $0x118] sm:$0xff] %vm5122, %v5001
    %5159 = vst.msk [vmem:[#allocation3 + $0x120] sm:$0xff] %vm5122, %v5003
    %5160 = vst.msk [vmem:[#allocation3 + $0x128] sm:$0xff] %vm5122, %v5005
    %5161 = vst.msk [vmem:[#allocation3 + $0x130] sm:$0xff] %vm5122, %v5007
    %5162 = vst.msk [vmem:[#allocation3 + $0x138] sm:$0xff] %vm5122, %v5009
    %5163 = vst.msk [vmem:[#allocation3 + $0x140] sm:$0xff] %vm5122, %v5011
    %5164 = vst.msk [vmem:[#allocation3 + $0x148] sm:$0xff] %vm5122, %v5013
    %5165 = vst.msk [vmem:[#allocation3 + $0x150] sm:$0xff] %vm5122, %v5015
    %5166 = vst.msk [vmem:[#allocation3 + $0x158] sm:$0xff] %vm5122, %v5017
    %5167 = vst.msk [vmem:[#allocation3 + $0x160] sm:$0xff] %vm5122, %v5019
    %5168 = vst.msk [vmem:[#allocation3 + $0x168] sm:$0xff] %vm5122, %v5021
    %5169 = vst.msk [vmem:[#allocation3 + $0x170] sm:$0xff] %vm5122, %v5023
    %5170 = vst.msk [vmem:[#allocation3 + $0x178] sm:$0xff] %vm5122, %v5025
    %5171 = vst.msk [vmem:[#allocation3 + $0x180] sm:$0xff] %vm5122, %v5027
    %5172 = vst.msk [vmem:[#allocation3 + $0x188] sm:$0xff] %vm5122, %v5029
    %5173 = vst.msk [vmem:[#allocation3 + $0x190] sm:$0xff] %vm5122, %v5031
    %5174 = vst.msk [vmem:[#allocation3 + $0x198] sm:$0xff] %vm5122, %v5033
    %5175 = vst.msk [vmem:[#allocation3 + $0x1a0] sm:$0xff] %vm5122, %v5035
    %5176 = vst.msk [vmem:[#allocation3 + $0x1a8] sm:$0xff] %vm5122, %v5037
    %5177 = vst.msk [vmem:[#allocation3 + $0x1b0] sm:$0xff] %vm5122, %v5039
    %5178 = vst.msk [vmem:[#allocation3 + $0x1b8] sm:$0xff] %vm5122, %v5041
    %5179 = vst.msk [vmem:[#allocation3 + $0x1c0] sm:$0xff] %vm5122, %v5043
    %5180 = vst.msk [vmem:[#allocation3 + $0x1c8] sm:$0xff] %vm5122, %v5045
    %5181 = vst.msk [vmem:[#allocation3 + $0x1d0] sm:$0xff] %vm5122, %v5047
    %5182 = vst.msk [vmem:[#allocation3 + $0x1d8] sm:$0xff] %vm5122, %v5049
    %5183 = vst.msk [vmem:[#allocation3 + $0x1e0] sm:$0xff] %vm5122, %v5051
    %5184 = vst.msk [vmem:[#allocation3 + $0x1e8] sm:$0xff] %vm5122, %v5053
    %5185 = vst.msk [vmem:[#allocation3 + $0x1f0] sm:$0xff] %vm5122, %v5055
    %5186 = vst.msk [vmem:[#allocation3 + $0x1f8] sm:$0xff] %vm5122, %v5057
    // Predicated region
    $region30: #{tpu_custom_call.1} parent=1 // pred_check
      _
    $region31: #{tpu_custom_call.1} parent=1 // pred_check_branch
      %5188 = sbr.rel (0) target = $region33
    $region32: #{tpu_custom_call.1} parent=1 // pred_region
      %5190 = vsyncadd [#allocation4], 0
      %s5191 = sshll.u32 [#allocation3], 4
      %s5192 = int_to_ptr.vmem [resolvable:$true] %s5191
      %s5193 = sshll.u32 %s7, 4
      %s5194 = int_to_ptr.hbm [resolvable:$true] %s5193
      %5199 = dma.vmem_to_hbm [thread:$0]  %s5192, 8192, %s5194, [#allocation4], 128, 128, 8
    $region33: #{tpu_custom_call.1} parent=1 // pred_fallthru
      _
    // Predicated region
    $region34: #{tpu_custom_call.1} parent=1 // pred_check
      _
    $region35: #{tpu_custom_call.1} parent=1 // pred_check_branch
      %5201 = sbr.rel (0) target = $region37
    $region36: #{tpu_custom_call.1} parent=1 // pred_region
      %5203 = dma.done [#allocation4], 8192
    $region37: #{tpu_custom_call.1} parent=1 // pred_fallthru
      _
    %5204 = vsyncpa [#allocation4], 1

</llo_original>
